<compile_context>
chip_gen: v5e
topology: v5e:2x2
jax: 0.10.0
libtpu: 0.0.40
codegen_flags: <defaults>
</compile_context>

<pallas_src>
import functools

import jax
import jax.numpy as jnp
from jax.experimental import pallas as pl
from jax.experimental.pallas import tpu as pltpu

NEG_SLOPE = 0.2     # GATv2Conv default negative_slope
MASK_VAL = -1e30    # exp(MASK_VAL - max) underflows to exactly 0.0 in f32


# ------------------------- fused GATv2 layer kernel -------------------------

def _gatv2_layer_kernel(x_ref, w_ref, b_ref, att_ref, adj_ref, bias_ref,
                        o_ref, acc_ref, *, heads, att_ch, blk_ch, apply_relu):
    """Whole GATv2Conv layer: projection + attention + aggregation + bias."""
    hcb = heads * blk_ch

    # Fused projection: x @ [W_l | W_r] + [b_l | b_r] on the MXU
    # (bf16 operands, f32 accumulation; score/softmax math stays f32).
    x = x_ref[...].astype(jnp.bfloat16)
    xw = jnp.dot(x, w_ref[...], preferred_element_type=jnp.float32) + b_ref[...]
    xl = xw[:, :hcb]                      # [N, H*Cb] source-side features
    xr = xw[:, hcb:]                      # [N, H*Cb] target-side features
    xl_t = jnp.transpose(xl)              # [H*Cb, N] so channel rows broadcast on lanes (j)
    xl_bf = xl.astype(jnp.bfloat16)       # aggregation RHS, cast once

    # Adjacency -> additive mask, computed ONCE per kernel (integer compare,
    # hoisted out of the head loop; adj stays int8 in HBM/VMEM).
    neg_bias = jnp.where(adj_ref[...].astype(jnp.int32) == 0, MASK_VAL, 0.0)  # [N, N] f32

    for h in range(heads):                # heads unrolled inside one call
        base = h * blk_ch

        # GATv2 scores accumulated as lane-dense [N, N] FMAs (lane axis = j):
        #   e[i, j] = mask[i, j] + sum_c att[h, c] * leaky_relu(xr[i, c] + xl[j, c])
        # No [N, N, C] rank-3 intermediate, no cross-lane channel reduce.
        e = neg_bias
        for c in range(att_ch):
            idx = base + c
            z = xr[:, idx:idx + 1] + xl_t[idx:idx + 1, :]      # [N, N]
            z = jnp.maximum(z, NEG_SLOPE * z)                   # leaky_relu (0<slope<1)
            e = e + att_ref[h, c] * z                           # scalar from SMEM

        # Softmax over incoming edges j (lane axis).  Self loops guarantee at
        # least one unmasked entry per row, so the approx reciprocal never
        # sees a zero denominator.
        m = jnp.max(e, axis=1, keepdims=True)
        p = jnp.exp(e - m)
        inv = pl.reciprocal(jnp.sum(p, axis=1, keepdims=True), approx=True)

        # Aggregate messages on the MXU; normalize AFTER the matmul so the
        # multiply is [N, C] instead of [N, N].
        out_h = jnp.dot(p.astype(jnp.bfloat16), xl_bf[:, base:base + blk_ch],
                        preferred_element_type=jnp.float32) * inv        # [N, Cb]

        if heads == 1:
            out = out_h + bias_ref[...]
            if apply_relu:
                out = jnp.maximum(out, 0.0)
            o_ref[...] = out              # single lane-dense store
        else:
            acc_ref[:, base:base + blk_ch] = out_h

    if heads > 1:
        out = acc_ref[...] + bias_ref[...]
        if apply_relu:
            out = jnp.maximum(out, 0.0)
        o_ref[...] = out                  # single lane-dense [N, H*Cb] store


def gatv2_layer(x, adj, prep, cfg, apply_relu):
    """One fused GATv2Conv layer: [N, F] -> [N, heads*blk_ch] (lane padded)."""
    n = x.shape[0]
    heads, att_ch, blk_ch = cfg["heads"], cfg["att_ch"], cfg["blk_ch"]
    hcb = heads * blk_ch

    kernel = functools.partial(_gatv2_layer_kernel, heads=heads, att_ch=att_ch,
                               blk_ch=blk_ch, apply_relu=apply_relu)
    return pl.pallas_call(
        kernel,
        out_shape=jax.ShapeDtypeStruct((n, hcb), jnp.float32),
        in_specs=[
            pl.BlockSpec(memory_space=pltpu.MemorySpace.VMEM),   # x
            pl.BlockSpec(memory_space=pltpu.MemorySpace.VMEM),   # [W_l | W_r] bf16
            pl.BlockSpec(memory_space=pltpu.MemorySpace.VMEM),   # [b_l | b_r]
            pl.BlockSpec(memory_space=pltpu.MemorySpace.SMEM),   # att [H, C] scalars
            pl.BlockSpec(memory_space=pltpu.MemorySpace.VMEM),   # adjacency int8
            pl.BlockSpec(memory_space=pltpu.MemorySpace.VMEM),   # output bias
        ],
        out_specs=pl.BlockSpec(memory_space=pltpu.MemorySpace.VMEM),
        scratch_shapes=[pltpu.VMEM((n, hcb), jnp.float32)],      # head accumulator
    )(x, prep["w_cat"], prep["b_cat"], prep["att"], adj, prep["bias"])


# ------------------------- one-time parameter prep --------------------------

def prepare_gatv2_params(params, heads, out_ch, blk_ch=None):
    """Concatenate/cast/pad parameters once (outside the per-call path)."""
    blk_ch = out_ch if blk_ch is None else blk_ch
    pad = blk_ch - out_ch

    def pad_heads(a):   # [..., heads*out_ch] -> [..., heads*blk_ch] (zero pad per head)
        if pad == 0:
            return a
        a = a.reshape(*a.shape[:-1], heads, out_ch)
        a = jnp.pad(a, [(0, 0)] * (a.ndim - 2) + [(0, 0), (0, pad)])
        return a.reshape(*a.shape[:-2], heads * blk_ch)

    hcb = heads * blk_ch
    w_cat = jnp.concatenate([pad_heads(params["w_l"]), pad_heads(params["w_r"])],
                            axis=1).astype(jnp.bfloat16)
    b_cat = jnp.concatenate([pad_heads(params["b_l"]), pad_heads(params["b_r"])]
                            ).reshape(1, 2 * hcb).astype(jnp.float32)
    prep = {
        "w_cat": w_cat,                                          # [F, 2*H*Cb] bf16
        "b_cat": b_cat,                                          # [1, 2*H*Cb] f32
        "att": params["att"].astype(jnp.float32),                # [H, C] (unpadded, SMEM)
        "bias": pad_heads(params["bias"]).reshape(1, hcb).astype(jnp.float32),
    }
    cfg = {"heads": heads, "att_ch": out_ch, "blk_ch": blk_ch}
    return prep, cfg


# ------------------------------ model glue ---------------------------------

def make_gat_forward(cfg1, cfg2, n_classes):
    @jax.jit
    def forward(x, adj, prep1, prep2):
        # dropout (eval mode, identity) -> gat1 -> relu -> dropout -> gat2
        h = gatv2_layer(x, adj, prep1, cfg1, apply_relu=True)
        out = gatv2_layer(h, adj, prep2, cfg2, apply_relu=False)
        return out[:, :n_classes]        # drop the layer-2 lane padding
    return forward


# --------------------------- parameter creation -----------------------------

def _glorot(key, shape):
    fan_in, fan_out = shape[0], shape[-1]
    lim = jnp.sqrt(6.0 / (fan_in + fan_out))
    return jax.random.uniform(key, shape, jnp.float32, -lim, lim)


def make_gatv2_params(key, in_ch, out_ch, heads):
    ks = jax.random.split(key, 6)
    return {
        "w_l": _glorot(ks[0], (in_ch, heads * out_ch)),
        "b_l": 0.01 * jax.random.normal(ks[1], (heads * out_ch,), jnp.float32),
        "w_r": _glorot(ks[2], (in_ch, heads * out_ch)),
        "b_r": 0.01 * jax.random.normal(ks[3], (heads * out_ch,), jnp.float32),
        "att": _glorot(ks[4], (heads, out_ch)),
        "bias": 0.01 * jax.random.normal(ks[5], (heads * out_ch,), jnp.float32),
    }


# ---------------------------------- main ------------------------------------

if __name__ == "__main__":
    N = 16          # number of graph nodes
    N_FEATS = 16
    N_CLASSES = 4
    DIM_H = 16
    HEADS = 4       # layer-1 output is H*C = 64 lanes; projection is 128 wide

    key = jax.random.PRNGKey(0)
    k_x, k_p1, k_p2 = jax.random.split(key, 3)

    # node features
    x = jax.random.normal(k_x, (N, N_FEATS), jnp.float32)

    # deterministic edge_index: bidirectional ring + a few extra edges
    ids = jnp.arange(N)
    src = jnp.concatenate([ids, (ids + 1) % N, jnp.array([0, 3, 7, 11])])
    dst = jnp.concatenate([(ids + 1) % N, ids, jnp.array([5, 9, 2, 14])])
    edge_index = jnp.stack([src, dst])                     # [2, 36]

    # densify: adj[i, j] = 1 iff edge j -> i; self-loops (PyG add_self_loops).
    # int8 mask (4x less HBM/VMEM traffic at scale); compared once in-kernel.
    adj = jnp.zeros((N, N), jnp.int8).at[dst, src].set(1)
    adj = adj.at[ids, ids].set(1)

    p1 = make_gatv2_params(k_p1, N_FEATS, DIM_H, HEADS)
    p2 = make_gatv2_params(k_p2, DIM_H * HEADS, N_CLASSES, 1)

    # one-time parameter preparation (concat / bf16 cast / lane padding)
    prep1, cfg1 = prepare_gatv2_params(p1, HEADS, DIM_H)
    prep2, cfg2 = prepare_gatv2_params(p2, 1, N_CLASSES, blk_ch=128)  # pad 4 -> 128 lanes

    fwd = make_gat_forward(cfg1, cfg2, N_CLASSES)
    out = jax.block_until_ready(fwd(x, adj, prep1, prep2))

    assert out.shape == (N, N_CLASSES), out.shape
    assert bool(jnp.all(jnp.isfinite(out)))
    print("KERNEL_OK")
</pallas_src>

<mosaic_0001>
module attributes {stable_mosaic.version = 11 : i64} {
  func.func @_gatv2_layer_kernel(%arg0: memref<16x64xf32, #tpu.memory_space<vmem>>, %arg1: memref<64x256xbf16, #tpu.memory_space<vmem>>, %arg2: memref<1x256xf32, #tpu.memory_space<vmem>>, %arg3: memref<1x4xf32, #tpu.memory_space<smem>>, %arg4: memref<16x16xi8, #tpu.memory_space<vmem>>, %arg5: memref<1x128xf32, #tpu.memory_space<vmem>>, %arg6: memref<16x128xf32, #tpu.memory_space<vmem>>, %arg7: memref<16x128xf32, #tpu.memory_space<vmem>>) attributes {dimension_semantics = [], scalar_prefetch = 0 : i64, scratch_operands = 1 : i64, tpu.core_type = #tpu.core_type<tc>} {
    %c0 = arith.constant 0 : index
    %c0_0 = arith.constant 0 : index
    %0 = vector.load %arg0[%c0, %c0_0] : memref<16x64xf32, #tpu.memory_space<vmem>>, vector<16x64xf32>
    %1 = arith.truncf %0 : vector<16x64xf32> to vector<16x64xbf16>
    %c0_1 = arith.constant 0 : index
    %c0_2 = arith.constant 0 : index
    %2 = vector.load %arg1[%c0_1, %c0_2] : memref<64x256xbf16, #tpu.memory_space<vmem>>, vector<64x256xbf16>
    %cst = arith.constant dense<0.000000e+00> : vector<16x256xf32>
    %3 = tpu.matmul %1, %2, %cst {dimension_numbers = #tpu.dot_dimension_numbers<[1], [0], [0], [1], [0, 0, 1, 1], [], []>} : vector<16x64xbf16>, vector<64x256xbf16>, vector<16x256xf32> -> vector<16x256xf32>
    %c0_3 = arith.constant 0 : index
    %c0_4 = arith.constant 0 : index
    %4 = vector.load %arg2[%c0_3, %c0_4] : memref<1x256xf32, #tpu.memory_space<vmem>>, vector<1x256xf32>
    %5 = vector.broadcast %4 : vector<1x256xf32> to vector<16x256xf32>
    %6 = arith.addf %3, %5 : vector<16x256xf32>
    %7 = vector.extract_strided_slice %6 {offsets = [0, 0], sizes = [16, 128], strides = [1, 1]} : vector<16x256xf32> to vector<16x128xf32>
    %8 = vector.extract_strided_slice %6 {offsets = [0, 128], sizes = [16, 128], strides = [1, 1]} : vector<16x256xf32> to vector<16x128xf32>
    %9 = tpu.transpose %7, [1, 0] : vector<16x128xf32> -> vector<128x16xf32>
    %10 = arith.truncf %7 : vector<16x128xf32> to vector<16x128xbf16>
    %c0_5 = arith.constant 0 : index
    %c0_6 = arith.constant 0 : index
    %11 = vector.load %arg4[%c0_5, %c0_6] : memref<16x16xi8, #tpu.memory_space<vmem>>, vector<16x16xi8>
    %12 = arith.extsi %11 : vector<16x16xi8> to vector<16x16xi32>
    %c0_i32 = arith.constant 0 : i32
    %13 = vector.broadcast %c0_i32 : i32 to vector<16x16xi32>
    %14 = arith.cmpi eq, %12, %13 : vector<16x16xi32>
    %cst_7 = arith.constant -1.000000e+30 : f32
    %cst_8 = arith.constant 0.000000e+00 : f32
    %15 = vector.broadcast %cst_7 : f32 to vector<16x16xf32>
    %16 = vector.broadcast %cst_8 : f32 to vector<16x16xf32>
    %17 = arith.select %14, %15, %16 : vector<16x16xi1>, vector<16x16xf32>
    %18 = vector.extract_strided_slice %8 {offsets = [0, 0], sizes = [16, 1], strides = [1, 1]} : vector<16x128xf32> to vector<16x1xf32>
    %19 = vector.extract_strided_slice %9 {offsets = [0, 0], sizes = [1, 16], strides = [1, 1]} : vector<128x16xf32> to vector<1x16xf32>
    %20 = vector.broadcast %18 : vector<16x1xf32> to vector<16x16xf32>
    %21 = vector.broadcast %19 : vector<1x16xf32> to vector<16x16xf32>
    %22 = arith.addf %20, %21 : vector<16x16xf32>
    %cst_9 = arith.constant 2.000000e-01 : f32
    %23 = vector.broadcast %cst_9 : f32 to vector<16x16xf32>
    %24 = arith.mulf %23, %22 : vector<16x16xf32>
    %25 = arith.maximumf %22, %24 : vector<16x16xf32>
    %c0_10 = arith.constant 0 : index
    %c0_11 = arith.constant 0 : index
    %26 = memref.load %arg3[%c0_10, %c0_11] : memref<1x4xf32, #tpu.memory_space<smem>>
    %27 = vector.broadcast %26 : f32 to vector<16x16xf32>
    %28 = arith.mulf %27, %25 : vector<16x16xf32>
    %29 = arith.addf %17, %28 : vector<16x16xf32>
    %30 = vector.extract_strided_slice %8 {offsets = [0, 1], sizes = [16, 1], strides = [1, 1]} : vector<16x128xf32> to vector<16x1xf32>
    %31 = vector.extract_strided_slice %9 {offsets = [1, 0], sizes = [1, 16], strides = [1, 1]} : vector<128x16xf32> to vector<1x16xf32>
    %32 = vector.broadcast %30 : vector<16x1xf32> to vector<16x16xf32>
    %33 = vector.broadcast %31 : vector<1x16xf32> to vector<16x16xf32>
    %34 = arith.addf %32, %33 : vector<16x16xf32>
    %cst_12 = arith.constant 2.000000e-01 : f32
    %35 = vector.broadcast %cst_12 : f32 to vector<16x16xf32>
    %36 = arith.mulf %35, %34 : vector<16x16xf32>
    %37 = arith.maximumf %34, %36 : vector<16x16xf32>
    %c0_13 = arith.constant 0 : index
    %c1 = arith.constant 1 : index
    %38 = memref.load %arg3[%c0_13, %c1] : memref<1x4xf32, #tpu.memory_space<smem>>
    %39 = vector.broadcast %38 : f32 to vector<16x16xf32>
    %40 = arith.mulf %39, %37 : vector<16x16xf32>
    %41 = arith.addf %29, %40 : vector<16x16xf32>
    %42 = vector.extract_strided_slice %8 {offsets = [0, 2], sizes = [16, 1], strides = [1, 1]} : vector<16x128xf32> to vector<16x1xf32>
    %43 = vector.extract_strided_slice %9 {offsets = [2, 0], sizes = [1, 16], strides = [1, 1]} : vector<128x16xf32> to vector<1x16xf32>
    %44 = vector.broadcast %42 : vector<16x1xf32> to vector<16x16xf32>
    %45 = vector.broadcast %43 : vector<1x16xf32> to vector<16x16xf32>
    %46 = arith.addf %44, %45 : vector<16x16xf32>
    %cst_14 = arith.constant 2.000000e-01 : f32
    %47 = vector.broadcast %cst_14 : f32 to vector<16x16xf32>
    %48 = arith.mulf %47, %46 : vector<16x16xf32>
    %49 = arith.maximumf %46, %48 : vector<16x16xf32>
    %c0_15 = arith.constant 0 : index
    %c2 = arith.constant 2 : index
    %50 = memref.load %arg3[%c0_15, %c2] : memref<1x4xf32, #tpu.memory_space<smem>>
    %51 = vector.broadcast %50 : f32 to vector<16x16xf32>
    %52 = arith.mulf %51, %49 : vector<16x16xf32>
    %53 = arith.addf %41, %52 : vector<16x16xf32>
    %54 = vector.extract_strided_slice %8 {offsets = [0, 3], sizes = [16, 1], strides = [1, 1]} : vector<16x128xf32> to vector<16x1xf32>
    %55 = vector.extract_strided_slice %9 {offsets = [3, 0], sizes = [1, 16], strides = [1, 1]} : vector<128x16xf32> to vector<1x16xf32>
    %56 = vector.broadcast %54 : vector<16x1xf32> to vector<16x16xf32>
    %57 = vector.broadcast %55 : vector<1x16xf32> to vector<16x16xf32>
    %58 = arith.addf %56, %57 : vector<16x16xf32>
    %cst_16 = arith.constant 2.000000e-01 : f32
    %59 = vector.broadcast %cst_16 : f32 to vector<16x16xf32>
    %60 = arith.mulf %59, %58 : vector<16x16xf32>
    %61 = arith.maximumf %58, %60 : vector<16x16xf32>
    %c0_17 = arith.constant 0 : index
    %c3 = arith.constant 3 : index
    %62 = memref.load %arg3[%c0_17, %c3] : memref<1x4xf32, #tpu.memory_space<smem>>
    %63 = vector.broadcast %62 : f32 to vector<16x16xf32>
    %64 = arith.mulf %63, %61 : vector<16x16xf32>
    %65 = arith.addf %53, %64 : vector<16x16xf32>
    %cst_18 = arith.constant dense<0xFF800000> : vector<16xf32>
    %66 = vector.multi_reduction <maximumf>, %65, %cst_18 [1] : vector<16x16xf32> to vector<16xf32>
    %67 = vector.shape_cast %66 : vector<16xf32> to vector<16x1xf32>
    %68 = vector.broadcast %67 : vector<16x1xf32> to vector<16x16xf32>
    %69 = arith.subf %65, %68 : vector<16x16xf32>
    %70 = math.exp %69 : vector<16x16xf32>
    %cst_19 = arith.constant dense<0.000000e+00> : vector<16xf32>
    %71 = vector.multi_reduction <add>, %70, %cst_19 [1] : vector<16x16xf32> to vector<16xf32>
    %72 = vector.shape_cast %71 : vector<16xf32> to vector<16x1xf32>
    %73 = tpu.reciprocal %72 {approx = true} : vector<16x1xf32> -> vector<16x1xf32>
    %74 = arith.truncf %70 : vector<16x16xf32> to vector<16x16xbf16>
    %cst_20 = arith.constant dense<0.000000e+00> : vector<16x128xf32>
    %75 = tpu.matmul %74, %10, %cst_20 {dimension_numbers = #tpu.dot_dimension_numbers<[1], [0], [0], [1], [0, 0, 1, 1], [], []>} : vector<16x16xbf16>, vector<16x128xbf16>, vector<16x128xf32> -> vector<16x128xf32>
    %76 = vector.broadcast %73 : vector<16x1xf32> to vector<16x128xf32>
    %77 = arith.mulf %75, %76 : vector<16x128xf32>
    %c0_21 = arith.constant 0 : index
    %c0_22 = arith.constant 0 : index
    %78 = vector.load %arg5[%c0_21, %c0_22] : memref<1x128xf32, #tpu.memory_space<vmem>>, vector<1x128xf32>
    %79 = vector.broadcast %78 : vector<1x128xf32> to vector<16x128xf32>
    %80 = arith.addf %77, %79 : vector<16x128xf32>
    %c0_23 = arith.constant 0 : index
    %c0_24 = arith.constant 0 : index
    %81 = vector.load %arg6[%c0_23, %c0_24] : memref<16x128xf32, #tpu.memory_space<vmem>>, vector<16x128xf32>
    tpu.vector_store %arg6[%c0_23, %c0_24], %80 {strides = array<i32>} : memref<16x128xf32, #tpu.memory_space<vmem>>, vector<16x128xf32>,
    return
  }
}

module attributes {stable_mosaic.version = 11 : i64} {
  func.func @_gatv2_layer_kernel(%arg0: memref<16x16xf32, #tpu.memory_space<vmem>>, %arg1: memref<16x128xbf16, #tpu.memory_space<vmem>>, %arg2: memref<1x128xf32, #tpu.memory_space<vmem>>, %arg3: memref<4x16xf32, #tpu.memory_space<smem>>, %arg4: memref<16x16xi8, #tpu.memory_space<vmem>>, %arg5: memref<1x64xf32, #tpu.memory_space<vmem>>, %arg6: memref<16x64xf32, #tpu.memory_space<vmem>>, %arg7: memref<16x64xf32, #tpu.memory_space<vmem>>) attributes {dimension_semantics = [], scalar_prefetch = 0 : i64, scratch_operands = 1 : i64, tpu.core_type = #tpu.core_type<tc>} {
    %c0 = arith.constant 0 : index
    %c0_0 = arith.constant 0 : index
    %0 = vector.load %arg0[%c0, %c0_0] : memref<16x16xf32, #tpu.memory_space<vmem>>, vector<16x16xf32>
    %1 = arith.truncf %0 : vector<16x16xf32> to vector<16x16xbf16>
    %c0_1 = arith.constant 0 : index
    %c0_2 = arith.constant 0 : index
    %2 = vector.load %arg1[%c0_1, %c0_2] : memref<16x128xbf16, #tpu.memory_space<vmem>>, vector<16x128xbf16>
    %cst = arith.constant dense<0.000000e+00> : vector<16x128xf32>
    %3 = tpu.matmul %1, %2, %cst {dimension_numbers = #tpu.dot_dimension_numbers<[1], [0], [0], [1], [0, 0, 1, 1], [], []>} : vector<16x16xbf16>, vector<16x128xbf16>, vector<16x128xf32> -> vector<16x128xf32>
    %c0_3 = arith.constant 0 : index
    %c0_4 = arith.constant 0 : index
    %4 = vector.load %arg2[%c0_3, %c0_4] : memref<1x128xf32, #tpu.memory_space<vmem>>, vector<1x128xf32>
    %5 = vector.broadcast %4 : vector<1x128xf32> to vector<16x128xf32>
    %6 = arith.addf %3, %5 : vector<16x128xf32>
    %7 = vector.extract_strided_slice %6 {offsets = [0, 0], sizes = [16, 64], strides = [1, 1]} : vector<16x128xf32> to vector<16x64xf32>
    %8 = vector.extract_strided_slice %6 {offsets = [0, 64], sizes = [16, 64], strides = [1, 1]} : vector<16x128xf32> to vector<16x64xf32>
    %9 = tpu.transpose %7, [1, 0] : vector<16x64xf32> -> vector<64x16xf32>
    %10 = arith.truncf %7 : vector<16x64xf32> to vector<16x64xbf16>
    %c0_5 = arith.constant 0 : index
    %c0_6 = arith.constant 0 : index
    %11 = vector.load %arg4[%c0_5, %c0_6] : memref<16x16xi8, #tpu.memory_space<vmem>>, vector<16x16xi8>
    %12 = arith.extsi %11 : vector<16x16xi8> to vector<16x16xi32>
    %c0_i32 = arith.constant 0 : i32
    %13 = vector.broadcast %c0_i32 : i32 to vector<16x16xi32>
    %14 = arith.cmpi eq, %12, %13 : vector<16x16xi32>
    %cst_7 = arith.constant -1.000000e+30 : f32
    %cst_8 = arith.constant 0.000000e+00 : f32
    %15 = vector.broadcast %cst_7 : f32 to vector<16x16xf32>
    %16 = vector.broadcast %cst_8 : f32 to vector<16x16xf32>
    %17 = arith.select %14, %15, %16 : vector<16x16xi1>, vector<16x16xf32>
    %18 = vector.extract_strided_slice %8 {offsets = [0, 0], sizes = [16, 1], strides = [1, 1]} : vector<16x64xf32> to vector<16x1xf32>
    %19 = vector.extract_strided_slice %9 {offsets = [0, 0], sizes = [1, 16], strides = [1, 1]} : vector<64x16xf32> to vector<1x16xf32>
    %20 = vector.broadcast %18 : vector<16x1xf32> to vector<16x16xf32>
    %21 = vector.broadcast %19 : vector<1x16xf32> to vector<16x16xf32>
    %22 = arith.addf %20, %21 : vector<16x16xf32>
    %cst_9 = arith.constant 2.000000e-01 : f32
    %23 = vector.broadcast %cst_9 : f32 to vector<16x16xf32>
    %24 = arith.mulf %23, %22 : vector<16x16xf32>
    %25 = arith.maximumf %22, %24 : vector<16x16xf32>
    %c0_10 = arith.constant 0 : index
    %c0_11 = arith.constant 0 : index
    %26 = memref.load %arg3[%c0_10, %c0_11] : memref<4x16xf32, #tpu.memory_space<smem>>
    %27 = vector.broadcast %26 : f32 to vector<16x16xf32>
    %28 = arith.mulf %27, %25 : vector<16x16xf32>
    %29 = arith.addf %17, %28 : vector<16x16xf32>
    %30 = vector.extract_strided_slice %8 {offsets = [0, 1], sizes = [16, 1], strides = [1, 1]} : vector<16x64xf32> to vector<16x1xf32>
    %31 = vector.extract_strided_slice %9 {offsets = [1, 0], sizes = [1, 16], strides = [1, 1]} : vector<64x16xf32> to vector<1x16xf32>
    %32 = vector.broadcast %30 : vector<16x1xf32> to vector<16x16xf32>
    %33 = vector.broadcast %31 : vector<1x16xf32> to vector<16x16xf32>
    %34 = arith.addf %32, %33 : vector<16x16xf32>
    %cst_12 = arith.constant 2.000000e-01 : f32
    %35 = vector.broadcast %cst_12 : f32 to vector<16x16xf32>
    %36 = arith.mulf %35, %34 : vector<16x16xf32>
    %37 = arith.maximumf %34, %36 : vector<16x16xf32>
    %c0_13 = arith.constant 0 : index
    %c1 = arith.constant 1 : index
    %38 = memref.load %arg3[%c0_13, %c1] : memref<4x16xf32, #tpu.memory_space<smem>>
    %39 = vector.broadcast %38 : f32 to vector<16x16xf32>
    %40 = arith.mulf %39, %37 : vector<16x16xf32>
    %41 = arith.addf %29, %40 : vector<16x16xf32>
    %42 = vector.extract_strided_slice %8 {offsets = [0, 2], sizes = [16, 1], strides = [1, 1]} : vector<16x64xf32> to vector<16x1xf32>
    %43 = vector.extract_strided_slice %9 {offsets = [2, 0], sizes = [1, 16], strides = [1, 1]} : vector<64x16xf32> to vector<1x16xf32>
    %44 = vector.broadcast %42 : vector<16x1xf32> to vector<16x16xf32>
    %45 = vector.broadcast %43 : vector<1x16xf32> to vector<16x16xf32>
    %46 = arith.addf %44, %45 : vector<16x16xf32>
    %cst_14 = arith.constant 2.000000e-01 : f32
    %47 = vector.broadcast %cst_14 : f32 to vector<16x16xf32>
    %48 = arith.mulf %47, %46 : vector<16x16xf32>
    %49 = arith.maximumf %46, %48 : vector<16x16xf32>
    %c0_15 = arith.constant 0 : index
    %c2 = arith.constant 2 : index
    %50 = memref.load %arg3[%c0_15, %c2] : memref<4x16xf32, #tpu.memory_space<smem>>
    %51 = vector.broadcast %50 : f32 to vector<16x16xf32>
    %52 = arith.mulf %51, %49 : vector<16x16xf32>
    %53 = arith.addf %41, %52 : vector<16x16xf32>
    %54 = vector.extract_strided_slice %8 {offsets = [0, 3], sizes = [16, 1], strides = [1, 1]} : vector<16x64xf32> to vector<16x1xf32>
    %55 = vector.extract_strided_slice %9 {offsets = [3, 0], sizes = [1, 16], strides = [1, 1]} : vector<64x16xf32> to vector<1x16xf32>
    %56 = vector.broadcast %54 : vector<16x1xf32> to vector<16x16xf32>
    %57 = vector.broadcast %55 : vector<1x16xf32> to vector<16x16xf32>
    %58 = arith.addf %56, %57 : vector<16x16xf32>
    %cst_16 = arith.constant 2.000000e-01 : f32
    %59 = vector.broadcast %cst_16 : f32 to vector<16x16xf32>
    %60 = arith.mulf %59, %58 : vector<16x16xf32>
    %61 = arith.maximumf %58, %60 : vector<16x16xf32>
    %c0_17 = arith.constant 0 : index
    %c3 = arith.constant 3 : index
    %62 = memref.load %arg3[%c0_17, %c3] : memref<4x16xf32, #tpu.memory_space<smem>>
    %63 = vector.broadcast %62 : f32 to vector<16x16xf32>
    %64 = arith.mulf %63, %61 : vector<16x16xf32>
    %65 = arith.addf %53, %64 : vector<16x16xf32>
    %66 = vector.extract_strided_slice %8 {offsets = [0, 4], sizes = [16, 1], strides = [1, 1]} : vector<16x64xf32> to vector<16x1xf32>
    %67 = vector.extract_strided_slice %9 {offsets = [4, 0], sizes = [1, 16], strides = [1, 1]} : vector<64x16xf32> to vector<1x16xf32>
    %68 = vector.broadcast %66 : vector<16x1xf32> to vector<16x16xf32>
    %69 = vector.broadcast %67 : vector<1x16xf32> to vector<16x16xf32>
    %70 = arith.addf %68, %69 : vector<16x16xf32>
    %cst_18 = arith.constant 2.000000e-01 : f32
    %71 = vector.broadcast %cst_18 : f32 to vector<16x16xf32>
    %72 = arith.mulf %71, %70 : vector<16x16xf32>
    %73 = arith.maximumf %70, %72 : vector<16x16xf32>
    %c0_19 = arith.constant 0 : index
    %c4 = arith.constant 4 : index
    %74 = memref.load %arg3[%c0_19, %c4] : memref<4x16xf32, #tpu.memory_space<smem>>
    %75 = vector.broadcast %74 : f32 to vector<16x16xf32>
    %76 = arith.mulf %75, %73 : vector<16x16xf32>
    %77 = arith.addf %65, %76 : vector<16x16xf32>
    %78 = vector.extract_strided_slice %8 {offsets = [0, 5], sizes = [16, 1], strides = [1, 1]} : vector<16x64xf32> to vector<16x1xf32>
    %79 = vector.extract_strided_slice %9 {offsets = [5, 0], sizes = [1, 16], strides = [1, 1]} : vector<64x16xf32> to vector<1x16xf32>
    %80 = vector.broadcast %78 : vector<16x1xf32> to vector<16x16xf32>
    %81 = vector.broadcast %79 : vector<1x16xf32> to vector<16x16xf32>
    %82 = arith.addf %80, %81 : vector<16x16xf32>
    %cst_20 = arith.constant 2.000000e-01 : f32
    %83 = vector.broadcast %cst_20 : f32 to vector<16x16xf32>
    %84 = arith.mulf %83, %82 : vector<16x16xf32>
    %85 = arith.maximumf %82, %84 : vector<16x16xf32>
    %c0_21 = arith.constant 0 : index
    %c5 = arith.constant 5 : index
    %86 = memref.load %arg3[%c0_21, %c5] : memref<4x16xf32, #tpu.memory_space<smem>>
    %87 = vector.broadcast %86 : f32 to vector<16x16xf32>
    %88 = arith.mulf %87, %85 : vector<16x16xf32>
    %89 = arith.addf %77, %88 : vector<16x16xf32>
    %90 = vector.extract_strided_slice %8 {offsets = [0, 6], sizes = [16, 1], strides = [1, 1]} : vector<16x64xf32> to vector<16x1xf32>
    %91 = vector.extract_strided_slice %9 {offsets = [6, 0], sizes = [1, 16], strides = [1, 1]} : vector<64x16xf32> to vector<1x16xf32>
    %92 = vector.broadcast %90 : vector<16x1xf32> to vector<16x16xf32>
    %93 = vector.broadcast %91 : vector<1x16xf32> to vector<16x16xf32>
    %94 = arith.addf %92, %93 : vector<16x16xf32>
    %cst_22 = arith.constant 2.000000e-01 : f32
    %95 = vector.broadcast %cst_22 : f32 to vector<16x16xf32>
    %96 = arith.mulf %95, %94 : vector<16x16xf32>
    %97 = arith.maximumf %94, %96 : vector<16x16xf32>
    %c0_23 = arith.constant 0 : index
    %c6 = arith.constant 6 : index
    %98 = memref.load %arg3[%c0_23, %c6] : memref<4x16xf32, #tpu.memory_space<smem>>
    %99 = vector.broadcast %98 : f32 to vector<16x16xf32>
    %100 = arith.mulf %99, %97 : vector<16x16xf32>
    %101 = arith.addf %89, %100 : vector<16x16xf32>
    %102 = vector.extract_strided_slice %8 {offsets = [0, 7], sizes = [16, 1], strides = [1, 1]} : vector<16x64xf32> to vector<16x1xf32>
    %103 = vector.extract_strided_slice %9 {offsets = [7, 0], sizes = [1, 16], strides = [1, 1]} : vector<64x16xf32> to vector<1x16xf32>
    %104 = vector.broadcast %102 : vector<16x1xf32> to vector<16x16xf32>
    %105 = vector.broadcast %103 : vector<1x16xf32> to vector<16x16xf32>
    %106 = arith.addf %104, %105 : vector<16x16xf32>
    %cst_24 = arith.constant 2.000000e-01 : f32
    %107 = vector.broadcast %cst_24 : f32 to vector<16x16xf32>
    %108 = arith.mulf %107, %106 : vector<16x16xf32>
    %109 = arith.maximumf %106, %108 : vector<16x16xf32>
    %c0_25 = arith.constant 0 : index
    %c7 = arith.constant 7 : index
    %110 = memref.load %arg3[%c0_25, %c7] : memref<4x16xf32, #tpu.memory_space<smem>>
    %111 = vector.broadcast %110 : f32 to vector<16x16xf32>
    %112 = arith.mulf %111, %109 : vector<16x16xf32>
    %113 = arith.addf %101, %112 : vector<16x16xf32>
    %114 = vector.extract_strided_slice %8 {offsets = [0, 8], sizes = [16, 1], strides = [1, 1]} : vector<16x64xf32> to vector<16x1xf32>
    %115 = vector.extract_strided_slice %9 {offsets = [8, 0], sizes = [1, 16], strides = [1, 1]} : vector<64x16xf32> to vector<1x16xf32>
    %116 = vector.broadcast %114 : vector<16x1xf32> to vector<16x16xf32>
    %117 = vector.broadcast %115 : vector<1x16xf32> to vector<16x16xf32>
    %118 = arith.addf %116, %117 : vector<16x16xf32>
    %cst_26 = arith.constant 2.000000e-01 : f32
    %119 = vector.broadcast %cst_26 : f32 to vector<16x16xf32>
    %120 = arith.mulf %119, %118 : vector<16x16xf32>
    %121 = arith.maximumf %118, %120 : vector<16x16xf32>
    %c0_27 = arith.constant 0 : index
    %c8 = arith.constant 8 : index
    %122 = memref.load %arg3[%c0_27, %c8] : memref<4x16xf32, #tpu.memory_space<smem>>
    %123 = vector.broadcast %122 : f32 to vector<16x16xf32>
    %124 = arith.mulf %123, %121 : vector<16x16xf32>
    %125 = arith.addf %113, %124 : vector<16x16xf32>
    %126 = vector.extract_strided_slice %8 {offsets = [0, 9], sizes = [16, 1], strides = [1, 1]} : vector<16x64xf32> to vector<16x1xf32>
    %127 = vector.extract_strided_slice %9 {offsets = [9, 0], sizes = [1, 16], strides = [1, 1]} : vector<64x16xf32> to vector<1x16xf32>
    %128 = vector.broadcast %126 : vector<16x1xf32> to vector<16x16xf32>
    %129 = vector.broadcast %127 : vector<1x16xf32> to vector<16x16xf32>
    %130 = arith.addf %128, %129 : vector<16x16xf32>
    %cst_28 = arith.constant 2.000000e-01 : f32
    %131 = vector.broadcast %cst_28 : f32 to vector<16x16xf32>
    %132 = arith.mulf %131, %130 : vector<16x16xf32>
    %133 = arith.maximumf %130, %132 : vector<16x16xf32>
    %c0_29 = arith.constant 0 : index
    %c9 = arith.constant 9 : index
    %134 = memref.load %arg3[%c0_29, %c9] : memref<4x16xf32, #tpu.memory_space<smem>>
    %135 = vector.broadcast %134 : f32 to vector<16x16xf32>
    %136 = arith.mulf %135, %133 : vector<16x16xf32>
    %137 = arith.addf %125, %136 : vector<16x16xf32>
    %138 = vector.extract_strided_slice %8 {offsets = [0, 10], sizes = [16, 1], strides = [1, 1]} : vector<16x64xf32> to vector<16x1xf32>
    %139 = vector.extract_strided_slice %9 {offsets = [10, 0], sizes = [1, 16], strides = [1, 1]} : vector<64x16xf32> to vector<1x16xf32>
    %140 = vector.broadcast %138 : vector<16x1xf32> to vector<16x16xf32>
    %141 = vector.broadcast %139 : vector<1x16xf32> to vector<16x16xf32>
    %142 = arith.addf %140, %141 : vector<16x16xf32>
    %cst_30 = arith.constant 2.000000e-01 : f32
    %143 = vector.broadcast %cst_30 : f32 to vector<16x16xf32>
    %144 = arith.mulf %143, %142 : vector<16x16xf32>
    %145 = arith.maximumf %142, %144 : vector<16x16xf32>
    %c0_31 = arith.constant 0 : index
    %c10 = arith.constant 10 : index
    %146 = memref.load %arg3[%c0_31, %c10] : memref<4x16xf32, #tpu.memory_space<smem>>
    %147 = vector.broadcast %146 : f32 to vector<16x16xf32>
    %148 = arith.mulf %147, %145 : vector<16x16xf32>
    %149 = arith.addf %137, %148 : vector<16x16xf32>
    %150 = vector.extract_strided_slice %8 {offsets = [0, 11], sizes = [16, 1], strides = [1, 1]} : vector<16x64xf32> to vector<16x1xf32>
    %151 = vector.extract_strided_slice %9 {offsets = [11, 0], sizes = [1, 16], strides = [1, 1]} : vector<64x16xf32> to vector<1x16xf32>
    %152 = vector.broadcast %150 : vector<16x1xf32> to vector<16x16xf32>
    %153 = vector.broadcast %151 : vector<1x16xf32> to vector<16x16xf32>
    %154 = arith.addf %152, %153 : vector<16x16xf32>
    %cst_32 = arith.constant 2.000000e-01 : f32
    %155 = vector.broadcast %cst_32 : f32 to vector<16x16xf32>
    %156 = arith.mulf %155, %154 : vector<16x16xf32>
    %157 = arith.maximumf %154, %156 : vector<16x16xf32>
    %c0_33 = arith.constant 0 : index
    %c11 = arith.constant 11 : index
    %158 = memref.load %arg3[%c0_33, %c11] : memref<4x16xf32, #tpu.memory_space<smem>>
    %159 = vector.broadcast %158 : f32 to vector<16x16xf32>
    %160 = arith.mulf %159, %157 : vector<16x16xf32>
    %161 = arith.addf %149, %160 : vector<16x16xf32>
    %162 = vector.extract_strided_slice %8 {offsets = [0, 12], sizes = [16, 1], strides = [1, 1]} : vector<16x64xf32> to vector<16x1xf32>
    %163 = vector.extract_strided_slice %9 {offsets = [12, 0], sizes = [1, 16], strides = [1, 1]} : vector<64x16xf32> to vector<1x16xf32>
    %164 = vector.broadcast %162 : vector<16x1xf32> to vector<16x16xf32>
    %165 = vector.broadcast %163 : vector<1x16xf32> to vector<16x16xf32>
    %166 = arith.addf %164, %165 : vector<16x16xf32>
    %cst_34 = arith.constant 2.000000e-01 : f32
    %167 = vector.broadcast %cst_34 : f32 to vector<16x16xf32>
    %168 = arith.mulf %167, %166 : vector<16x16xf32>
    %169 = arith.maximumf %166, %168 : vector<16x16xf32>
    %c0_35 = arith.constant 0 : index
    %c12 = arith.constant 12 : index
    %170 = memref.load %arg3[%c0_35, %c12] : memref<4x16xf32, #tpu.memory_space<smem>>
    %171 = vector.broadcast %170 : f32 to vector<16x16xf32>
    %172 = arith.mulf %171, %169 : vector<16x16xf32>
    %173 = arith.addf %161, %172 : vector<16x16xf32>
    %174 = vector.extract_strided_slice %8 {offsets = [0, 13], sizes = [16, 1], strides = [1, 1]} : vector<16x64xf32> to vector<16x1xf32>
    %175 = vector.extract_strided_slice %9 {offsets = [13, 0], sizes = [1, 16], strides = [1, 1]} : vector<64x16xf32> to vector<1x16xf32>
    %176 = vector.broadcast %174 : vector<16x1xf32> to vector<16x16xf32>
    %177 = vector.broadcast %175 : vector<1x16xf32> to vector<16x16xf32>
    %178 = arith.addf %176, %177 : vector<16x16xf32>
    %cst_36 = arith.constant 2.000000e-01 : f32
    %179 = vector.broadcast %cst_36 : f32 to vector<16x16xf32>
    %180 = arith.mulf %179, %178 : vector<16x16xf32>
    %181 = arith.maximumf %178, %180 : vector<16x16xf32>
    %c0_37 = arith.constant 0 : index
    %c13 = arith.constant 13 : index
    %182 = memref.load %arg3[%c0_37, %c13] : memref<4x16xf32, #tpu.memory_space<smem>>
    %183 = vector.broadcast %182 : f32 to vector<16x16xf32>
    %184 = arith.mulf %183, %181 : vector<16x16xf32>
    %185 = arith.addf %173, %184 : vector<16x16xf32>
    %186 = vector.extract_strided_slice %8 {offsets = [0, 14], sizes = [16, 1], strides = [1, 1]} : vector<16x64xf32> to vector<16x1xf32>
    %187 = vector.extract_strided_slice %9 {offsets = [14, 0], sizes = [1, 16], strides = [1, 1]} : vector<64x16xf32> to vector<1x16xf32>
    %188 = vector.broadcast %186 : vector<16x1xf32> to vector<16x16xf32>
    %189 = vector.broadcast %187 : vector<1x16xf32> to vector<16x16xf32>
    %190 = arith.addf %188, %189 : vector<16x16xf32>
    %cst_38 = arith.constant 2.000000e-01 : f32
    %191 = vector.broadcast %cst_38 : f32 to vector<16x16xf32>
    %192 = arith.mulf %191, %190 : vector<16x16xf32>
    %193 = arith.maximumf %190, %192 : vector<16x16xf32>
    %c0_39 = arith.constant 0 : index
    %c14 = arith.constant 14 : index
    %194 = memref.load %arg3[%c0_39, %c14] : memref<4x16xf32, #tpu.memory_space<smem>>
    %195 = vector.broadcast %194 : f32 to vector<16x16xf32>
    %196 = arith.mulf %195, %193 : vector<16x16xf32>
    %197 = arith.addf %185, %196 : vector<16x16xf32>
    %198 = vector.extract_strided_slice %8 {offsets = [0, 15], sizes = [16, 1], strides = [1, 1]} : vector<16x64xf32> to vector<16x1xf32>
    %199 = vector.extract_strided_slice %9 {offsets = [15, 0], sizes = [1, 16], strides = [1, 1]} : vector<64x16xf32> to vector<1x16xf32>
    %200 = vector.broadcast %198 : vector<16x1xf32> to vector<16x16xf32>
    %201 = vector.broadcast %199 : vector<1x16xf32> to vector<16x16xf32>
    %202 = arith.addf %200, %201 : vector<16x16xf32>
    %cst_40 = arith.constant 2.000000e-01 : f32
    %203 = vector.broadcast %cst_40 : f32 to vector<16x16xf32>
    %204 = arith.mulf %203, %202 : vector<16x16xf32>
    %205 = arith.maximumf %202, %204 : vector<16x16xf32>
    %c0_41 = arith.constant 0 : index
    %c15 = arith.constant 15 : index
    %206 = memref.load %arg3[%c0_41, %c15] : memref<4x16xf32, #tpu.memory_space<smem>>
    %207 = vector.broadcast %206 : f32 to vector<16x16xf32>
    %208 = arith.mulf %207, %205 : vector<16x16xf32>
    %209 = arith.addf %197, %208 : vector<16x16xf32>
    %cst_42 = arith.constant dense<0xFF800000> : vector<16xf32>
    %210 = vector.multi_reduction <maximumf>, %209, %cst_42 [1] : vector<16x16xf32> to vector<16xf32>
    %211 = vector.shape_cast %210 : vector<16xf32> to vector<16x1xf32>
    %212 = vector.broadcast %211 : vector<16x1xf32> to vector<16x16xf32>
    %213 = arith.subf %209, %212 : vector<16x16xf32>
    %214 = math.exp %213 : vector<16x16xf32>
    %cst_43 = arith.constant dense<0.000000e+00> : vector<16xf32>
    %215 = vector.multi_reduction <add>, %214, %cst_43 [1] : vector<16x16xf32> to vector<16xf32>
    %216 = vector.shape_cast %215 : vector<16xf32> to vector<16x1xf32>
    %217 = tpu.reciprocal %216 {approx = true} : vector<16x1xf32> -> vector<16x1xf32>
    %218 = arith.truncf %214 : vector<16x16xf32> to vector<16x16xbf16>
    %219 = vector.extract_strided_slice %10 {offsets = [0, 0], sizes = [16, 16], strides = [1, 1]} : vector<16x64xbf16> to vector<16x16xbf16>
    %cst_44 = arith.constant dense<0.000000e+00> : vector<16x16xf32>
    %220 = tpu.matmul %218, %219, %cst_44 {dimension_numbers = #tpu.dot_dimension_numbers<[1], [0], [0], [1], [0, 0, 1, 1], [], []>} : vector<16x16xbf16>, vector<16x16xbf16>, vector<16x16xf32> -> vector<16x16xf32>
    %221 = vector.broadcast %217 : vector<16x1xf32> to vector<16x16xf32>
    %222 = arith.mulf %220, %221 : vector<16x16xf32>
    %c0_45 = arith.constant 0 : index
    %c0_46 = arith.constant 0 : index
    %223 = vector.load %arg7[%c0_45, %c0_46] : memref<16x64xf32, #tpu.memory_space<vmem>>, vector<16x16xf32>
    tpu.vector_store %arg7[%c0_45, %c0_46], %222 {strides = array<i32>} : memref<16x64xf32, #tpu.memory_space<vmem>>, vector<16x16xf32>,
    %224 = vector.extract_strided_slice %8 {offsets = [0, 16], sizes = [16, 1], strides = [1, 1]} : vector<16x64xf32> to vector<16x1xf32>
    %225 = vector.extract_strided_slice %9 {offsets = [16, 0], sizes = [1, 16], strides = [1, 1]} : vector<64x16xf32> to vector<1x16xf32>
    %226 = vector.broadcast %224 : vector<16x1xf32> to vector<16x16xf32>
    %227 = vector.broadcast %225 : vector<1x16xf32> to vector<16x16xf32>
    %228 = arith.addf %226, %227 : vector<16x16xf32>
    %cst_47 = arith.constant 2.000000e-01 : f32
    %229 = vector.broadcast %cst_47 : f32 to vector<16x16xf32>
    %230 = arith.mulf %229, %228 : vector<16x16xf32>
    %231 = arith.maximumf %228, %230 : vector<16x16xf32>
    %c1_48 = arith.constant 1 : index
    %c0_49 = arith.constant 0 : index
    %232 = memref.load %arg3[%c1_48, %c0_49] : memref<4x16xf32, #tpu.memory_space<smem>>
    %233 = vector.broadcast %232 : f32 to vector<16x16xf32>
    %234 = arith.mulf %233, %231 : vector<16x16xf32>
    %235 = arith.addf %17, %234 : vector<16x16xf32>
    %236 = vector.extract_strided_slice %8 {offsets = [0, 17], sizes = [16, 1], strides = [1, 1]} : vector<16x64xf32> to vector<16x1xf32>
    %237 = vector.extract_strided_slice %9 {offsets = [17, 0], sizes = [1, 16], strides = [1, 1]} : vector<64x16xf32> to vector<1x16xf32>
    %238 = vector.broadcast %236 : vector<16x1xf32> to vector<16x16xf32>
    %239 = vector.broadcast %237 : vector<1x16xf32> to vector<16x16xf32>
    %240 = arith.addf %238, %239 : vector<16x16xf32>
    %cst_50 = arith.constant 2.000000e-01 : f32
    %241 = vector.broadcast %cst_50 : f32 to vector<16x16xf32>
    %242 = arith.mulf %241, %240 : vector<16x16xf32>
    %243 = arith.maximumf %240, %242 : vector<16x16xf32>
    %c1_51 = arith.constant 1 : index
    %c1_52 = arith.constant 1 : index
    %244 = memref.load %arg3[%c1_51, %c1_52] : memref<4x16xf32, #tpu.memory_space<smem>>
    %245 = vector.broadcast %244 : f32 to vector<16x16xf32>
    %246 = arith.mulf %245, %243 : vector<16x16xf32>
    %247 = arith.addf %235, %246 : vector<16x16xf32>
    %248 = vector.extract_strided_slice %8 {offsets = [0, 18], sizes = [16, 1], strides = [1, 1]} : vector<16x64xf32> to vector<16x1xf32>
    %249 = vector.extract_strided_slice %9 {offsets = [18, 0], sizes = [1, 16], strides = [1, 1]} : vector<64x16xf32> to vector<1x16xf32>
    %250 = vector.broadcast %248 : vector<16x1xf32> to vector<16x16xf32>
    %251 = vector.broadcast %249 : vector<1x16xf32> to vector<16x16xf32>
    %252 = arith.addf %250, %251 : vector<16x16xf32>
    %cst_53 = arith.constant 2.000000e-01 : f32
    %253 = vector.broadcast %cst_53 : f32 to vector<16x16xf32>
    %254 = arith.mulf %253, %252 : vector<16x16xf32>
    %255 = arith.maximumf %252, %254 : vector<16x16xf32>
    %c1_54 = arith.constant 1 : index
    %c2_55 = arith.constant 2 : index
    %256 = memref.load %arg3[%c1_54, %c2_55] : memref<4x16xf32, #tpu.memory_space<smem>>
    %257 = vector.broadcast %256 : f32 to vector<16x16xf32>
    %258 = arith.mulf %257, %255 : vector<16x16xf32>
    %259 = arith.addf %247, %258 : vector<16x16xf32>
    %260 = vector.extract_strided_slice %8 {offsets = [0, 19], sizes = [16, 1], strides = [1, 1]} : vector<16x64xf32> to vector<16x1xf32>
    %261 = vector.extract_strided_slice %9 {offsets = [19, 0], sizes = [1, 16], strides = [1, 1]} : vector<64x16xf32> to vector<1x16xf32>
    %262 = vector.broadcast %260 : vector<16x1xf32> to vector<16x16xf32>
    %263 = vector.broadcast %261 : vector<1x16xf32> to vector<16x16xf32>
    %264 = arith.addf %262, %263 : vector<16x16xf32>
    %cst_56 = arith.constant 2.000000e-01 : f32
    %265 = vector.broadcast %cst_56 : f32 to vector<16x16xf32>
    %266 = arith.mulf %265, %264 : vector<16x16xf32>
    %267 = arith.maximumf %264, %266 : vector<16x16xf32>
    %c1_57 = arith.constant 1 : index
    %c3_58 = arith.constant 3 : index
    %268 = memref.load %arg3[%c1_57, %c3_58] : memref<4x16xf32, #tpu.memory_space<smem>>
    %269 = vector.broadcast %268 : f32 to vector<16x16xf32>
    %270 = arith.mulf %269, %267 : vector<16x16xf32>
    %271 = arith.addf %259, %270 : vector<16x16xf32>
    %272 = vector.extract_strided_slice %8 {offsets = [0, 20], sizes = [16, 1], strides = [1, 1]} : vector<16x64xf32> to vector<16x1xf32>
    %273 = vector.extract_strided_slice %9 {offsets = [20, 0], sizes = [1, 16], strides = [1, 1]} : vector<64x16xf32> to vector<1x16xf32>
    %274 = vector.broadcast %272 : vector<16x1xf32> to vector<16x16xf32>
    %275 = vector.broadcast %273 : vector<1x16xf32> to vector<16x16xf32>
    %276 = arith.addf %274, %275 : vector<16x16xf32>
    %cst_59 = arith.constant 2.000000e-01 : f32
    %277 = vector.broadcast %cst_59 : f32 to vector<16x16xf32>
    %278 = arith.mulf %277, %276 : vector<16x16xf32>
    %279 = arith.maximumf %276, %278 : vector<16x16xf32>
    %c1_60 = arith.constant 1 : index
    %c4_61 = arith.constant 4 : index
    %280 = memref.load %arg3[%c1_60, %c4_61] : memref<4x16xf32, #tpu.memory_space<smem>>
    %281 = vector.broadcast %280 : f32 to vector<16x16xf32>
    %282 = arith.mulf %281, %279 : vector<16x16xf32>
    %283 = arith.addf %271, %282 : vector<16x16xf32>
    %284 = vector.extract_strided_slice %8 {offsets = [0, 21], sizes = [16, 1], strides = [1, 1]} : vector<16x64xf32> to vector<16x1xf32>
    %285 = vector.extract_strided_slice %9 {offsets = [21, 0], sizes = [1, 16], strides = [1, 1]} : vector<64x16xf32> to vector<1x16xf32>
    %286 = vector.broadcast %284 : vector<16x1xf32> to vector<16x16xf32>
    %287 = vector.broadcast %285 : vector<1x16xf32> to vector<16x16xf32>
    %288 = arith.addf %286, %287 : vector<16x16xf32>
    %cst_62 = arith.constant 2.000000e-01 : f32
    %289 = vector.broadcast %cst_62 : f32 to vector<16x16xf32>
    %290 = arith.mulf %289, %288 : vector<16x16xf32>
    %291 = arith.maximumf %288, %290 : vector<16x16xf32>
    %c1_63 = arith.constant 1 : index
    %c5_64 = arith.constant 5 : index
    %292 = memref.load %arg3[%c1_63, %c5_64] : memref<4x16xf32, #tpu.memory_space<smem>>
    %293 = vector.broadcast %292 : f32 to vector<16x16xf32>
    %294 = arith.mulf %293, %291 : vector<16x16xf32>
    %295 = arith.addf %283, %294 : vector<16x16xf32>
    %296 = vector.extract_strided_slice %8 {offsets = [0, 22], sizes = [16, 1], strides = [1, 1]} : vector<16x64xf32> to vector<16x1xf32>
    %297 = vector.extract_strided_slice %9 {offsets = [22, 0], sizes = [1, 16], strides = [1, 1]} : vector<64x16xf32> to vector<1x16xf32>
    %298 = vector.broadcast %296 : vector<16x1xf32> to vector<16x16xf32>
    %299 = vector.broadcast %297 : vector<1x16xf32> to vector<16x16xf32>
    %300 = arith.addf %298, %299 : vector<16x16xf32>
    %cst_65 = arith.constant 2.000000e-01 : f32
    %301 = vector.broadcast %cst_65 : f32 to vector<16x16xf32>
    %302 = arith.mulf %301, %300 : vector<16x16xf32>
    %303 = arith.maximumf %300, %302 : vector<16x16xf32>
    %c1_66 = arith.constant 1 : index
    %c6_67 = arith.constant 6 : index
    %304 = memref.load %arg3[%c1_66, %c6_67] : memref<4x16xf32, #tpu.memory_space<smem>>
    %305 = vector.broadcast %304 : f32 to vector<16x16xf32>
    %306 = arith.mulf %305, %303 : vector<16x16xf32>
    %307 = arith.addf %295, %306 : vector<16x16xf32>
    %308 = vector.extract_strided_slice %8 {offsets = [0, 23], sizes = [16, 1], strides = [1, 1]} : vector<16x64xf32> to vector<16x1xf32>
    %309 = vector.extract_strided_slice %9 {offsets = [23, 0], sizes = [1, 16], strides = [1, 1]} : vector<64x16xf32> to vector<1x16xf32>
    %310 = vector.broadcast %308 : vector<16x1xf32> to vector<16x16xf32>
    %311 = vector.broadcast %309 : vector<1x16xf32> to vector<16x16xf32>
    %312 = arith.addf %310, %311 : vector<16x16xf32>
    %cst_68 = arith.constant 2.000000e-01 : f32
    %313 = vector.broadcast %cst_68 : f32 to vector<16x16xf32>
    %314 = arith.mulf %313, %312 : vector<16x16xf32>
    %315 = arith.maximumf %312, %314 : vector<16x16xf32>
    %c1_69 = arith.constant 1 : index
    %c7_70 = arith.constant 7 : index
    %316 = memref.load %arg3[%c1_69, %c7_70] : memref<4x16xf32, #tpu.memory_space<smem>>
    %317 = vector.broadcast %316 : f32 to vector<16x16xf32>
    %318 = arith.mulf %317, %315 : vector<16x16xf32>
    %319 = arith.addf %307, %318 : vector<16x16xf32>
    %320 = vector.extract_strided_slice %8 {offsets = [0, 24], sizes = [16, 1], strides = [1, 1]} : vector<16x64xf32> to vector<16x1xf32>
    %321 = vector.extract_strided_slice %9 {offsets = [24, 0], sizes = [1, 16], strides = [1, 1]} : vector<64x16xf32> to vector<1x16xf32>
    %322 = vector.broadcast %320 : vector<16x1xf32> to vector<16x16xf32>
    %323 = vector.broadcast %321 : vector<1x16xf32> to vector<16x16xf32>
    %324 = arith.addf %322, %323 : vector<16x16xf32>
    %cst_71 = arith.constant 2.000000e-01 : f32
    %325 = vector.broadcast %cst_71 : f32 to vector<16x16xf32>
    %326 = arith.mulf %325, %324 : vector<16x16xf32>
    %327 = arith.maximumf %324, %326 : vector<16x16xf32>
    %c1_72 = arith.constant 1 : index
    %c8_73 = arith.constant 8 : index
    %328 = memref.load %arg3[%c1_72, %c8_73] : memref<4x16xf32, #tpu.memory_space<smem>>
    %329 = vector.broadcast %328 : f32 to vector<16x16xf32>
    %330 = arith.mulf %329, %327 : vector<16x16xf32>
    %331 = arith.addf %319, %330 : vector<16x16xf32>
    %332 = vector.extract_strided_slice %8 {offsets = [0, 25], sizes = [16, 1], strides = [1, 1]} : vector<16x64xf32> to vector<16x1xf32>
    %333 = vector.extract_strided_slice %9 {offsets = [25, 0], sizes = [1, 16], strides = [1, 1]} : vector<64x16xf32> to vector<1x16xf32>
    %334 = vector.broadcast %332 : vector<16x1xf32> to vector<16x16xf32>
    %335 = vector.broadcast %333 : vector<1x16xf32> to vector<16x16xf32>
    %336 = arith.addf %334, %335 : vector<16x16xf32>
    %cst_74 = arith.constant 2.000000e-01 : f32
    %337 = vector.broadcast %cst_74 : f32 to vector<16x16xf32>
    %338 = arith.mulf %337, %336 : vector<16x16xf32>
    %339 = arith.maximumf %336, %338 : vector<16x16xf32>
    %c1_75 = arith.constant 1 : index
    %c9_76 = arith.constant 9 : index
    %340 = memref.load %arg3[%c1_75, %c9_76] : memref<4x16xf32, #tpu.memory_space<smem>>
    %341 = vector.broadcast %340 : f32 to vector<16x16xf32>
    %342 = arith.mulf %341, %339 : vector<16x16xf32>
    %343 = arith.addf %331, %342 : vector<16x16xf32>
    %344 = vector.extract_strided_slice %8 {offsets = [0, 26], sizes = [16, 1], strides = [1, 1]} : vector<16x64xf32> to vector<16x1xf32>
    %345 = vector.extract_strided_slice %9 {offsets = [26, 0], sizes = [1, 16], strides = [1, 1]} : vector<64x16xf32> to vector<1x16xf32>
    %346 = vector.broadcast %344 : vector<16x1xf32> to vector<16x16xf32>
    %347 = vector.broadcast %345 : vector<1x16xf32> to vector<16x16xf32>
    %348 = arith.addf %346, %347 : vector<16x16xf32>
    %cst_77 = arith.constant 2.000000e-01 : f32
    %349 = vector.broadcast %cst_77 : f32 to vector<16x16xf32>
    %350 = arith.mulf %349, %348 : vector<16x16xf32>
    %351 = arith.maximumf %348, %350 : vector<16x16xf32>
    %c1_78 = arith.constant 1 : index
    %c10_79 = arith.constant 10 : index
    %352 = memref.load %arg3[%c1_78, %c10_79] : memref<4x16xf32, #tpu.memory_space<smem>>
    %353 = vector.broadcast %352 : f32 to vector<16x16xf32>
    %354 = arith.mulf %353, %351 : vector<16x16xf32>
    %355 = arith.addf %343, %354 : vector<16x16xf32>
    %356 = vector.extract_strided_slice %8 {offsets = [0, 27], sizes = [16, 1], strides = [1, 1]} : vector<16x64xf32> to vector<16x1xf32>
    %357 = vector.extract_strided_slice %9 {offsets = [27, 0], sizes = [1, 16], strides = [1, 1]} : vector<64x16xf32> to vector<1x16xf32>
    %358 = vector.broadcast %356 : vector<16x1xf32> to vector<16x16xf32>
    %359 = vector.broadcast %357 : vector<1x16xf32> to vector<16x16xf32>
    %360 = arith.addf %358, %359 : vector<16x16xf32>
    %cst_80 = arith.constant 2.000000e-01 : f32
    %361 = vector.broadcast %cst_80 : f32 to vector<16x16xf32>
    %362 = arith.mulf %361, %360 : vector<16x16xf32>
    %363 = arith.maximumf %360, %362 : vector<16x16xf32>
    %c1_81 = arith.constant 1 : index
    %c11_82 = arith.constant 11 : index
    %364 = memref.load %arg3[%c1_81, %c11_82] : memref<4x16xf32, #tpu.memory_space<smem>>
    %365 = vector.broadcast %364 : f32 to vector<16x16xf32>
    %366 = arith.mulf %365, %363 : vector<16x16xf32>
    %367 = arith.addf %355, %366 : vector<16x16xf32>
    %368 = vector.extract_strided_slice %8 {offsets = [0, 28], sizes = [16, 1], strides = [1, 1]} : vector<16x64xf32> to vector<16x1xf32>
    %369 = vector.extract_strided_slice %9 {offsets = [28, 0], sizes = [1, 16], strides = [1, 1]} : vector<64x16xf32> to vector<1x16xf32>
    %370 = vector.broadcast %368 : vector<16x1xf32> to vector<16x16xf32>
    %371 = vector.broadcast %369 : vector<1x16xf32> to vector<16x16xf32>
    %372 = arith.addf %370, %371 : vector<16x16xf32>
    %cst_83 = arith.constant 2.000000e-01 : f32
    %373 = vector.broadcast %cst_83 : f32 to vector<16x16xf32>
    %374 = arith.mulf %373, %372 : vector<16x16xf32>
    %375 = arith.maximumf %372, %374 : vector<16x16xf32>
    %c1_84 = arith.constant 1 : index
    %c12_85 = arith.constant 12 : index
    %376 = memref.load %arg3[%c1_84, %c12_85] : memref<4x16xf32, #tpu.memory_space<smem>>
    %377 = vector.broadcast %376 : f32 to vector<16x16xf32>
    %378 = arith.mulf %377, %375 : vector<16x16xf32>
    %379 = arith.addf %367, %378 : vector<16x16xf32>
    %380 = vector.extract_strided_slice %8 {offsets = [0, 29], sizes = [16, 1], strides = [1, 1]} : vector<16x64xf32> to vector<16x1xf32>
    %381 = vector.extract_strided_slice %9 {offsets = [29, 0], sizes = [1, 16], strides = [1, 1]} : vector<64x16xf32> to vector<1x16xf32>
    %382 = vector.broadcast %380 : vector<16x1xf32> to vector<16x16xf32>
    %383 = vector.broadcast %381 : vector<1x16xf32> to vector<16x16xf32>
    %384 = arith.addf %382, %383 : vector<16x16xf32>
    %cst_86 = arith.constant 2.000000e-01 : f32
    %385 = vector.broadcast %cst_86 : f32 to vector<16x16xf32>
    %386 = arith.mulf %385, %384 : vector<16x16xf32>
    %387 = arith.maximumf %384, %386 : vector<16x16xf32>
    %c1_87 = arith.constant 1 : index
    %c13_88 = arith.constant 13 : index
    %388 = memref.load %arg3[%c1_87, %c13_88] : memref<4x16xf32, #tpu.memory_space<smem>>
    %389 = vector.broadcast %388 : f32 to vector<16x16xf32>
    %390 = arith.mulf %389, %387 : vector<16x16xf32>
    %391 = arith.addf %379, %390 : vector<16x16xf32>
    %392 = vector.extract_strided_slice %8 {offsets = [0, 30], sizes = [16, 1], strides = [1, 1]} : vector<16x64xf32> to vector<16x1xf32>
    %393 = vector.extract_strided_slice %9 {offsets = [30, 0], sizes = [1, 16], strides = [1, 1]} : vector<64x16xf32> to vector<1x16xf32>
    %394 = vector.broadcast %392 : vector<16x1xf32> to vector<16x16xf32>
    %395 = vector.broadcast %393 : vector<1x16xf32> to vector<16x16xf32>
    %396 = arith.addf %394, %395 : vector<16x16xf32>
    %cst_89 = arith.constant 2.000000e-01 : f32
    %397 = vector.broadcast %cst_89 : f32 to vector<16x16xf32>
    %398 = arith.mulf %397, %396 : vector<16x16xf32>
    %399 = arith.maximumf %396, %398 : vector<16x16xf32>
    %c1_90 = arith.constant 1 : index
    %c14_91 = arith.constant 14 : index
    %400 = memref.load %arg3[%c1_90, %c14_91] : memref<4x16xf32, #tpu.memory_space<smem>>
    %401 = vector.broadcast %400 : f32 to vector<16x16xf32>
    %402 = arith.mulf %401, %399 : vector<16x16xf32>
    %403 = arith.addf %391, %402 : vector<16x16xf32>
    %404 = vector.extract_strided_slice %8 {offsets = [0, 31], sizes = [16, 1], strides = [1, 1]} : vector<16x64xf32> to vector<16x1xf32>
    %405 = vector.extract_strided_slice %9 {offsets = [31, 0], sizes = [1, 16], strides = [1, 1]} : vector<64x16xf32> to vector<1x16xf32>
    %406 = vector.broadcast %404 : vector<16x1xf32> to vector<16x16xf32>
    %407 = vector.broadcast %405 : vector<1x16xf32> to vector<16x16xf32>
    %408 = arith.addf %406, %407 : vector<16x16xf32>
    %cst_92 = arith.constant 2.000000e-01 : f32
    %409 = vector.broadcast %cst_92 : f32 to vector<16x16xf32>
    %410 = arith.mulf %409, %408 : vector<16x16xf32>
    %411 = arith.maximumf %408, %410 : vector<16x16xf32>
    %c1_93 = arith.constant 1 : index
    %c15_94 = arith.constant 15 : index
    %412 = memref.load %arg3[%c1_93, %c15_94] : memref<4x16xf32, #tpu.memory_space<smem>>
    %413 = vector.broadcast %412 : f32 to vector<16x16xf32>
    %414 = arith.mulf %413, %411 : vector<16x16xf32>
    %415 = arith.addf %403, %414 : vector<16x16xf32>
    %cst_95 = arith.constant dense<0xFF800000> : vector<16xf32>
    %416 = vector.multi_reduction <maximumf>, %415, %cst_95 [1] : vector<16x16xf32> to vector<16xf32>
    %417 = vector.shape_cast %416 : vector<16xf32> to vector<16x1xf32>
    %418 = vector.broadcast %417 : vector<16x1xf32> to vector<16x16xf32>
    %419 = arith.subf %415, %418 : vector<16x16xf32>
    %420 = math.exp %419 : vector<16x16xf32>
    %cst_96 = arith.constant dense<0.000000e+00> : vector<16xf32>
    %421 = vector.multi_reduction <add>, %420, %cst_96 [1] : vector<16x16xf32> to vector<16xf32>
    %422 = vector.shape_cast %421 : vector<16xf32> to vector<16x1xf32>
    %423 = tpu.reciprocal %422 {approx = true} : vector<16x1xf32> -> vector<16x1xf32>
    %424 = arith.truncf %420 : vector<16x16xf32> to vector<16x16xbf16>
    %425 = vector.extract_strided_slice %10 {offsets = [0, 16], sizes = [16, 16], strides = [1, 1]} : vector<16x64xbf16> to vector<16x16xbf16>
    %cst_97 = arith.constant dense<0.000000e+00> : vector<16x16xf32>
    %426 = tpu.matmul %424, %425, %cst_97 {dimension_numbers = #tpu.dot_dimension_numbers<[1], [0], [0], [1], [0, 0, 1, 1], [], []>} : vector<16x16xbf16>, vector<16x16xbf16>, vector<16x16xf32> -> vector<16x16xf32>
    %427 = vector.broadcast %423 : vector<16x1xf32> to vector<16x16xf32>
    %428 = arith.mulf %426, %427 : vector<16x16xf32>
    %c0_98 = arith.constant 0 : index
    %c16 = arith.constant 16 : index
    %429 = vector.load %arg7[%c0_98, %c16] : memref<16x64xf32, #tpu.memory_space<vmem>>, vector<16x16xf32>
    tpu.vector_store %arg7[%c0_98, %c16], %428 {strides = array<i32>} : memref<16x64xf32, #tpu.memory_space<vmem>>, vector<16x16xf32>,
    %430 = vector.extract_strided_slice %8 {offsets = [0, 32], sizes = [16, 1], strides = [1, 1]} : vector<16x64xf32> to vector<16x1xf32>
    %431 = vector.extract_strided_slice %9 {offsets = [32, 0], sizes = [1, 16], strides = [1, 1]} : vector<64x16xf32> to vector<1x16xf32>
    %432 = vector.broadcast %430 : vector<16x1xf32> to vector<16x16xf32>
    %433 = vector.broadcast %431 : vector<1x16xf32> to vector<16x16xf32>
    %434 = arith.addf %432, %433 : vector<16x16xf32>
    %cst_99 = arith.constant 2.000000e-01 : f32
    %435 = vector.broadcast %cst_99 : f32 to vector<16x16xf32>
    %436 = arith.mulf %435, %434 : vector<16x16xf32>
    %437 = arith.maximumf %434, %436 : vector<16x16xf32>
    %c2_100 = arith.constant 2 : index
    %c0_101 = arith.constant 0 : index
    %438 = memref.load %arg3[%c2_100, %c0_101] : memref<4x16xf32, #tpu.memory_space<smem>>
    %439 = vector.broadcast %438 : f32 to vector<16x16xf32>
    %440 = arith.mulf %439, %437 : vector<16x16xf32>
    %441 = arith.addf %17, %440 : vector<16x16xf32>
    %442 = vector.extract_strided_slice %8 {offsets = [0, 33], sizes = [16, 1], strides = [1, 1]} : vector<16x64xf32> to vector<16x1xf32>
    %443 = vector.extract_strided_slice %9 {offsets = [33, 0], sizes = [1, 16], strides = [1, 1]} : vector<64x16xf32> to vector<1x16xf32>
    %444 = vector.broadcast %442 : vector<16x1xf32> to vector<16x16xf32>
    %445 = vector.broadcast %443 : vector<1x16xf32> to vector<16x16xf32>
    %446 = arith.addf %444, %445 : vector<16x16xf32>
    %cst_102 = arith.constant 2.000000e-01 : f32
    %447 = vector.broadcast %cst_102 : f32 to vector<16x16xf32>
    %448 = arith.mulf %447, %446 : vector<16x16xf32>
    %449 = arith.maximumf %446, %448 : vector<16x16xf32>
    %c2_103 = arith.constant 2 : index
    %c1_104 = arith.constant 1 : index
    %450 = memref.load %arg3[%c2_103, %c1_104] : memref<4x16xf32, #tpu.memory_space<smem>>
    %451 = vector.broadcast %450 : f32 to vector<16x16xf32>
    %452 = arith.mulf %451, %449 : vector<16x16xf32>
    %453 = arith.addf %441, %452 : vector<16x16xf32>
    %454 = vector.extract_strided_slice %8 {offsets = [0, 34], sizes = [16, 1], strides = [1, 1]} : vector<16x64xf32> to vector<16x1xf32>
    %455 = vector.extract_strided_slice %9 {offsets = [34, 0], sizes = [1, 16], strides = [1, 1]} : vector<64x16xf32> to vector<1x16xf32>
    %456 = vector.broadcast %454 : vector<16x1xf32> to vector<16x16xf32>
    %457 = vector.broadcast %455 : vector<1x16xf32> to vector<16x16xf32>
    %458 = arith.addf %456, %457 : vector<16x16xf32>
    %cst_105 = arith.constant 2.000000e-01 : f32
    %459 = vector.broadcast %cst_105 : f32 to vector<16x16xf32>
    %460 = arith.mulf %459, %458 : vector<16x16xf32>
    %461 = arith.maximumf %458, %460 : vector<16x16xf32>
    %c2_106 = arith.constant 2 : index
    %c2_107 = arith.constant 2 : index
    %462 = memref.load %arg3[%c2_106, %c2_107] : memref<4x16xf32, #tpu.memory_space<smem>>
    %463 = vector.broadcast %462 : f32 to vector<16x16xf32>
    %464 = arith.mulf %463, %461 : vector<16x16xf32>
    %465 = arith.addf %453, %464 : vector<16x16xf32>
    %466 = vector.extract_strided_slice %8 {offsets = [0, 35], sizes = [16, 1], strides = [1, 1]} : vector<16x64xf32> to vector<16x1xf32>
    %467 = vector.extract_strided_slice %9 {offsets = [35, 0], sizes = [1, 16], strides = [1, 1]} : vector<64x16xf32> to vector<1x16xf32>
    %468 = vector.broadcast %466 : vector<16x1xf32> to vector<16x16xf32>
    %469 = vector.broadcast %467 : vector<1x16xf32> to vector<16x16xf32>
    %470 = arith.addf %468, %469 : vector<16x16xf32>
    %cst_108 = arith.constant 2.000000e-01 : f32
    %471 = vector.broadcast %cst_108 : f32 to vector<16x16xf32>
    %472 = arith.mulf %471, %470 : vector<16x16xf32>
    %473 = arith.maximumf %470, %472 : vector<16x16xf32>
    %c2_109 = arith.constant 2 : index
    %c3_110 = arith.constant 3 : index
    %474 = memref.load %arg3[%c2_109, %c3_110] : memref<4x16xf32, #tpu.memory_space<smem>>
    %475 = vector.broadcast %474 : f32 to vector<16x16xf32>
    %476 = arith.mulf %475, %473 : vector<16x16xf32>
    %477 = arith.addf %465, %476 : vector<16x16xf32>
    %478 = vector.extract_strided_slice %8 {offsets = [0, 36], sizes = [16, 1], strides = [1, 1]} : vector<16x64xf32> to vector<16x1xf32>
    %479 = vector.extract_strided_slice %9 {offsets = [36, 0], sizes = [1, 16], strides = [1, 1]} : vector<64x16xf32> to vector<1x16xf32>
    %480 = vector.broadcast %478 : vector<16x1xf32> to vector<16x16xf32>
    %481 = vector.broadcast %479 : vector<1x16xf32> to vector<16x16xf32>
    %482 = arith.addf %480, %481 : vector<16x16xf32>
    %cst_111 = arith.constant 2.000000e-01 : f32
    %483 = vector.broadcast %cst_111 : f32 to vector<16x16xf32>
    %484 = arith.mulf %483, %482 : vector<16x16xf32>
    %485 = arith.maximumf %482, %484 : vector<16x16xf32>
    %c2_112 = arith.constant 2 : index
    %c4_113 = arith.constant 4 : index
    %486 = memref.load %arg3[%c2_112, %c4_113] : memref<4x16xf32, #tpu.memory_space<smem>>
    %487 = vector.broadcast %486 : f32 to vector<16x16xf32>
    %488 = arith.mulf %487, %485 : vector<16x16xf32>
    %489 = arith.addf %477, %488 : vector<16x16xf32>
    %490 = vector.extract_strided_slice %8 {offsets = [0, 37], sizes = [16, 1], strides = [1, 1]} : vector<16x64xf32> to vector<16x1xf32>
    %491 = vector.extract_strided_slice %9 {offsets = [37, 0], sizes = [1, 16], strides = [1, 1]} : vector<64x16xf32> to vector<1x16xf32>
    %492 = vector.broadcast %490 : vector<16x1xf32> to vector<16x16xf32>
    %493 = vector.broadcast %491 : vector<1x16xf32> to vector<16x16xf32>
    %494 = arith.addf %492, %493 : vector<16x16xf32>
    %cst_114 = arith.constant 2.000000e-01 : f32
    %495 = vector.broadcast %cst_114 : f32 to vector<16x16xf32>
    %496 = arith.mulf %495, %494 : vector<16x16xf32>
    %497 = arith.maximumf %494, %496 : vector<16x16xf32>
    %c2_115 = arith.constant 2 : index
    %c5_116 = arith.constant 5 : index
    %498 = memref.load %arg3[%c2_115, %c5_116] : memref<4x16xf32, #tpu.memory_space<smem>>
    %499 = vector.broadcast %498 : f32 to vector<16x16xf32>
    %500 = arith.mulf %499, %497 : vector<16x16xf32>
    %501 = arith.addf %489, %500 : vector<16x16xf32>
    %502 = vector.extract_strided_slice %8 {offsets = [0, 38], sizes = [16, 1], strides = [1, 1]} : vector<16x64xf32> to vector<16x1xf32>
    %503 = vector.extract_strided_slice %9 {offsets = [38, 0], sizes = [1, 16], strides = [1, 1]} : vector<64x16xf32> to vector<1x16xf32>
    %504 = vector.broadcast %502 : vector<16x1xf32> to vector<16x16xf32>
    %505 = vector.broadcast %503 : vector<1x16xf32> to vector<16x16xf32>
    %506 = arith.addf %504, %505 : vector<16x16xf32>
    %cst_117 = arith.constant 2.000000e-01 : f32
    %507 = vector.broadcast %cst_117 : f32 to vector<16x16xf32>
    %508 = arith.mulf %507, %506 : vector<16x16xf32>
    %509 = arith.maximumf %506, %508 : vector<16x16xf32>
    %c2_118 = arith.constant 2 : index
    %c6_119 = arith.constant 6 : index
    %510 = memref.load %arg3[%c2_118, %c6_119] : memref<4x16xf32, #tpu.memory_space<smem>>
    %511 = vector.broadcast %510 : f32 to vector<16x16xf32>
    %512 = arith.mulf %511, %509 : vector<16x16xf32>
    %513 = arith.addf %501, %512 : vector<16x16xf32>
    %514 = vector.extract_strided_slice %8 {offsets = [0, 39], sizes = [16, 1], strides = [1, 1]} : vector<16x64xf32> to vector<16x1xf32>
    %515 = vector.extract_strided_slice %9 {offsets = [39, 0], sizes = [1, 16], strides = [1, 1]} : vector<64x16xf32> to vector<1x16xf32>
    %516 = vector.broadcast %514 : vector<16x1xf32> to vector<16x16xf32>
    %517 = vector.broadcast %515 : vector<1x16xf32> to vector<16x16xf32>
    %518 = arith.addf %516, %517 : vector<16x16xf32>
    %cst_120 = arith.constant 2.000000e-01 : f32
    %519 = vector.broadcast %cst_120 : f32 to vector<16x16xf32>
    %520 = arith.mulf %519, %518 : vector<16x16xf32>
    %521 = arith.maximumf %518, %520 : vector<16x16xf32>
    %c2_121 = arith.constant 2 : index
    %c7_122 = arith.constant 7 : index
    %522 = memref.load %arg3[%c2_121, %c7_122] : memref<4x16xf32, #tpu.memory_space<smem>>
    %523 = vector.broadcast %522 : f32 to vector<16x16xf32>
    %524 = arith.mulf %523, %521 : vector<16x16xf32>
    %525 = arith.addf %513, %524 : vector<16x16xf32>
    %526 = vector.extract_strided_slice %8 {offsets = [0, 40], sizes = [16, 1], strides = [1, 1]} : vector<16x64xf32> to vector<16x1xf32>
    %527 = vector.extract_strided_slice %9 {offsets = [40, 0], sizes = [1, 16], strides = [1, 1]} : vector<64x16xf32> to vector<1x16xf32>
    %528 = vector.broadcast %526 : vector<16x1xf32> to vector<16x16xf32>
    %529 = vector.broadcast %527 : vector<1x16xf32> to vector<16x16xf32>
    %530 = arith.addf %528, %529 : vector<16x16xf32>
    %cst_123 = arith.constant 2.000000e-01 : f32
    %531 = vector.broadcast %cst_123 : f32 to vector<16x16xf32>
    %532 = arith.mulf %531, %530 : vector<16x16xf32>
    %533 = arith.maximumf %530, %532 : vector<16x16xf32>
    %c2_124 = arith.constant 2 : index
    %c8_125 = arith.constant 8 : index
    %534 = memref.load %arg3[%c2_124, %c8_125] : memref<4x16xf32, #tpu.memory_space<smem>>
    %535 = vector.broadcast %534 : f32 to vector<16x16xf32>
    %536 = arith.mulf %535, %533 : vector<16x16xf32>
    %537 = arith.addf %525, %536 : vector<16x16xf32>
    %538 = vector.extract_strided_slice %8 {offsets = [0, 41], sizes = [16, 1], strides = [1, 1]} : vector<16x64xf32> to vector<16x1xf32>
    %539 = vector.extract_strided_slice %9 {offsets = [41, 0], sizes = [1, 16], strides = [1, 1]} : vector<64x16xf32> to vector<1x16xf32>
    %540 = vector.broadcast %538 : vector<16x1xf32> to vector<16x16xf32>
    %541 = vector.broadcast %539 : vector<1x16xf32> to vector<16x16xf32>
    %542 = arith.addf %540, %541 : vector<16x16xf32>
    %cst_126 = arith.constant 2.000000e-01 : f32
    %543 = vector.broadcast %cst_126 : f32 to vector<16x16xf32>
    %544 = arith.mulf %543, %542 : vector<16x16xf32>
    %545 = arith.maximumf %542, %544 : vector<16x16xf32>
    %c2_127 = arith.constant 2 : index
    %c9_128 = arith.constant 9 : index
    %546 = memref.load %arg3[%c2_127, %c9_128] : memref<4x16xf32, #tpu.memory_space<smem>>
    %547 = vector.broadcast %546 : f32 to vector<16x16xf32>
    %548 = arith.mulf %547, %545 : vector<16x16xf32>
    %549 = arith.addf %537, %548 : vector<16x16xf32>
    %550 = vector.extract_strided_slice %8 {offsets = [0, 42], sizes = [16, 1], strides = [1, 1]} : vector<16x64xf32> to vector<16x1xf32>
    %551 = vector.extract_strided_slice %9 {offsets = [42, 0], sizes = [1, 16], strides = [1, 1]} : vector<64x16xf32> to vector<1x16xf32>
    %552 = vector.broadcast %550 : vector<16x1xf32> to vector<16x16xf32>
    %553 = vector.broadcast %551 : vector<1x16xf32> to vector<16x16xf32>
    %554 = arith.addf %552, %553 : vector<16x16xf32>
    %cst_129 = arith.constant 2.000000e-01 : f32
    %555 = vector.broadcast %cst_129 : f32 to vector<16x16xf32>
    %556 = arith.mulf %555, %554 : vector<16x16xf32>
    %557 = arith.maximumf %554, %556 : vector<16x16xf32>
    %c2_130 = arith.constant 2 : index
    %c10_131 = arith.constant 10 : index
    %558 = memref.load %arg3[%c2_130, %c10_131] : memref<4x16xf32, #tpu.memory_space<smem>>
    %559 = vector.broadcast %558 : f32 to vector<16x16xf32>
    %560 = arith.mulf %559, %557 : vector<16x16xf32>
    %561 = arith.addf %549, %560 : vector<16x16xf32>
    %562 = vector.extract_strided_slice %8 {offsets = [0, 43], sizes = [16, 1], strides = [1, 1]} : vector<16x64xf32> to vector<16x1xf32>
    %563 = vector.extract_strided_slice %9 {offsets = [43, 0], sizes = [1, 16], strides = [1, 1]} : vector<64x16xf32> to vector<1x16xf32>
    %564 = vector.broadcast %562 : vector<16x1xf32> to vector<16x16xf32>
    %565 = vector.broadcast %563 : vector<1x16xf32> to vector<16x16xf32>
    %566 = arith.addf %564, %565 : vector<16x16xf32>
    %cst_132 = arith.constant 2.000000e-01 : f32
    %567 = vector.broadcast %cst_132 : f32 to vector<16x16xf32>
    %568 = arith.mulf %567, %566 : vector<16x16xf32>
    %569 = arith.maximumf %566, %568 : vector<16x16xf32>
    %c2_133 = arith.constant 2 : index
    %c11_134 = arith.constant 11 : index
    %570 = memref.load %arg3[%c2_133, %c11_134] : memref<4x16xf32, #tpu.memory_space<smem>>
    %571 = vector.broadcast %570 : f32 to vector<16x16xf32>
    %572 = arith.mulf %571, %569 : vector<16x16xf32>
    %573 = arith.addf %561, %572 : vector<16x16xf32>
    %574 = vector.extract_strided_slice %8 {offsets = [0, 44], sizes = [16, 1], strides = [1, 1]} : vector<16x64xf32> to vector<16x1xf32>
    %575 = vector.extract_strided_slice %9 {offsets = [44, 0], sizes = [1, 16], strides = [1, 1]} : vector<64x16xf32> to vector<1x16xf32>
    %576 = vector.broadcast %574 : vector<16x1xf32> to vector<16x16xf32>
    %577 = vector.broadcast %575 : vector<1x16xf32> to vector<16x16xf32>
    %578 = arith.addf %576, %577 : vector<16x16xf32>
    %cst_135 = arith.constant 2.000000e-01 : f32
    %579 = vector.broadcast %cst_135 : f32 to vector<16x16xf32>
    %580 = arith.mulf %579, %578 : vector<16x16xf32>
    %581 = arith.maximumf %578, %580 : vector<16x16xf32>
    %c2_136 = arith.constant 2 : index
    %c12_137 = arith.constant 12 : index
    %582 = memref.load %arg3[%c2_136, %c12_137] : memref<4x16xf32, #tpu.memory_space<smem>>
    %583 = vector.broadcast %582 : f32 to vector<16x16xf32>
    %584 = arith.mulf %583, %581 : vector<16x16xf32>
    %585 = arith.addf %573, %584 : vector<16x16xf32>
    %586 = vector.extract_strided_slice %8 {offsets = [0, 45], sizes = [16, 1], strides = [1, 1]} : vector<16x64xf32> to vector<16x1xf32>
    %587 = vector.extract_strided_slice %9 {offsets = [45, 0], sizes = [1, 16], strides = [1, 1]} : vector<64x16xf32> to vector<1x16xf32>
    %588 = vector.broadcast %586 : vector<16x1xf32> to vector<16x16xf32>
    %589 = vector.broadcast %587 : vector<1x16xf32> to vector<16x16xf32>
    %590 = arith.addf %588, %589 : vector<16x16xf32>
    %cst_138 = arith.constant 2.000000e-01 : f32
    %591 = vector.broadcast %cst_138 : f32 to vector<16x16xf32>
    %592 = arith.mulf %591, %590 : vector<16x16xf32>
    %593 = arith.maximumf %590, %592 : vector<16x16xf32>
    %c2_139 = arith.constant 2 : index
    %c13_140 = arith.constant 13 : index
    %594 = memref.load %arg3[%c2_139, %c13_140] : memref<4x16xf32, #tpu.memory_space<smem>>
    %595 = vector.broadcast %594 : f32 to vector<16x16xf32>
    %596 = arith.mulf %595, %593 : vector<16x16xf32>
    %597 = arith.addf %585, %596 : vector<16x16xf32>
    %598 = vector.extract_strided_slice %8 {offsets = [0, 46], sizes = [16, 1], strides = [1, 1]} : vector<16x64xf32> to vector<16x1xf32>
    %599 = vector.extract_strided_slice %9 {offsets = [46, 0], sizes = [1, 16], strides = [1, 1]} : vector<64x16xf32> to vector<1x16xf32>
    %600 = vector.broadcast %598 : vector<16x1xf32> to vector<16x16xf32>
    %601 = vector.broadcast %599 : vector<1x16xf32> to vector<16x16xf32>
    %602 = arith.addf %600, %601 : vector<16x16xf32>
    %cst_141 = arith.constant 2.000000e-01 : f32
    %603 = vector.broadcast %cst_141 : f32 to vector<16x16xf32>
    %604 = arith.mulf %603, %602 : vector<16x16xf32>
    %605 = arith.maximumf %602, %604 : vector<16x16xf32>
    %c2_142 = arith.constant 2 : index
    %c14_143 = arith.constant 14 : index
    %606 = memref.load %arg3[%c2_142, %c14_143] : memref<4x16xf32, #tpu.memory_space<smem>>
    %607 = vector.broadcast %606 : f32 to vector<16x16xf32>
    %608 = arith.mulf %607, %605 : vector<16x16xf32>
    %609 = arith.addf %597, %608 : vector<16x16xf32>
    %610 = vector.extract_strided_slice %8 {offsets = [0, 47], sizes = [16, 1], strides = [1, 1]} : vector<16x64xf32> to vector<16x1xf32>
    %611 = vector.extract_strided_slice %9 {offsets = [47, 0], sizes = [1, 16], strides = [1, 1]} : vector<64x16xf32> to vector<1x16xf32>
    %612 = vector.broadcast %610 : vector<16x1xf32> to vector<16x16xf32>
    %613 = vector.broadcast %611 : vector<1x16xf32> to vector<16x16xf32>
    %614 = arith.addf %612, %613 : vector<16x16xf32>
    %cst_144 = arith.constant 2.000000e-01 : f32
    %615 = vector.broadcast %cst_144 : f32 to vector<16x16xf32>
    %616 = arith.mulf %615, %614 : vector<16x16xf32>
    %617 = arith.maximumf %614, %616 : vector<16x16xf32>
    %c2_145 = arith.constant 2 : index
    %c15_146 = arith.constant 15 : index
    %618 = memref.load %arg3[%c2_145, %c15_146] : memref<4x16xf32, #tpu.memory_space<smem>>
    %619 = vector.broadcast %618 : f32 to vector<16x16xf32>
    %620 = arith.mulf %619, %617 : vector<16x16xf32>
    %621 = arith.addf %609, %620 : vector<16x16xf32>
    %cst_147 = arith.constant dense<0xFF800000> : vector<16xf32>
    %622 = vector.multi_reduction <maximumf>, %621, %cst_147 [1] : vector<16x16xf32> to vector<16xf32>
    %623 = vector.shape_cast %622 : vector<16xf32> to vector<16x1xf32>
    %624 = vector.broadcast %623 : vector<16x1xf32> to vector<16x16xf32>
    %625 = arith.subf %621, %624 : vector<16x16xf32>
    %626 = math.exp %625 : vector<16x16xf32>
    %cst_148 = arith.constant dense<0.000000e+00> : vector<16xf32>
    %627 = vector.multi_reduction <add>, %626, %cst_148 [1] : vector<16x16xf32> to vector<16xf32>
    %628 = vector.shape_cast %627 : vector<16xf32> to vector<16x1xf32>
    %629 = tpu.reciprocal %628 {approx = true} : vector<16x1xf32> -> vector<16x1xf32>
    %630 = arith.truncf %626 : vector<16x16xf32> to vector<16x16xbf16>
    %631 = vector.extract_strided_slice %10 {offsets = [0, 32], sizes = [16, 16], strides = [1, 1]} : vector<16x64xbf16> to vector<16x16xbf16>
    %cst_149 = arith.constant dense<0.000000e+00> : vector<16x16xf32>
    %632 = tpu.matmul %630, %631, %cst_149 {dimension_numbers = #tpu.dot_dimension_numbers<[1], [0], [0], [1], [0, 0, 1, 1], [], []>} : vector<16x16xbf16>, vector<16x16xbf16>, vector<16x16xf32> -> vector<16x16xf32>
    %633 = vector.broadcast %629 : vector<16x1xf32> to vector<16x16xf32>
    %634 = arith.mulf %632, %633 : vector<16x16xf32>
    %c0_150 = arith.constant 0 : index
    %c32 = arith.constant 32 : index
    %635 = vector.load %arg7[%c0_150, %c32] : memref<16x64xf32, #tpu.memory_space<vmem>>, vector<16x16xf32>
    tpu.vector_store %arg7[%c0_150, %c32], %634 {strides = array<i32>} : memref<16x64xf32, #tpu.memory_space<vmem>>, vector<16x16xf32>,
    %636 = vector.extract_strided_slice %8 {offsets = [0, 48], sizes = [16, 1], strides = [1, 1]} : vector<16x64xf32> to vector<16x1xf32>
    %637 = vector.extract_strided_slice %9 {offsets = [48, 0], sizes = [1, 16], strides = [1, 1]} : vector<64x16xf32> to vector<1x16xf32>
    %638 = vector.broadcast %636 : vector<16x1xf32> to vector<16x16xf32>
    %639 = vector.broadcast %637 : vector<1x16xf32> to vector<16x16xf32>
    %640 = arith.addf %638, %639 : vector<16x16xf32>
    %cst_151 = arith.constant 2.000000e-01 : f32
    %641 = vector.broadcast %cst_151 : f32 to vector<16x16xf32>
    %642 = arith.mulf %641, %640 : vector<16x16xf32>
    %643 = arith.maximumf %640, %642 : vector<16x16xf32>
    %c3_152 = arith.constant 3 : index
    %c0_153 = arith.constant 0 : index
    %644 = memref.load %arg3[%c3_152, %c0_153] : memref<4x16xf32, #tpu.memory_space<smem>>
    %645 = vector.broadcast %644 : f32 to vector<16x16xf32>
    %646 = arith.mulf %645, %643 : vector<16x16xf32>
    %647 = arith.addf %17, %646 : vector<16x16xf32>
    %648 = vector.extract_strided_slice %8 {offsets = [0, 49], sizes = [16, 1], strides = [1, 1]} : vector<16x64xf32> to vector<16x1xf32>
    %649 = vector.extract_strided_slice %9 {offsets = [49, 0], sizes = [1, 16], strides = [1, 1]} : vector<64x16xf32> to vector<1x16xf32>
    %650 = vector.broadcast %648 : vector<16x1xf32> to vector<16x16xf32>
    %651 = vector.broadcast %649 : vector<1x16xf32> to vector<16x16xf32>
    %652 = arith.addf %650, %651 : vector<16x16xf32>
    %cst_154 = arith.constant 2.000000e-01 : f32
    %653 = vector.broadcast %cst_154 : f32 to vector<16x16xf32>
    %654 = arith.mulf %653, %652 : vector<16x16xf32>
    %655 = arith.maximumf %652, %654 : vector<16x16xf32>
    %c3_155 = arith.constant 3 : index
    %c1_156 = arith.constant 1 : index
    %656 = memref.load %arg3[%c3_155, %c1_156] : memref<4x16xf32, #tpu.memory_space<smem>>
    %657 = vector.broadcast %656 : f32 to vector<16x16xf32>
    %658 = arith.mulf %657, %655 : vector<16x16xf32>
    %659 = arith.addf %647, %658 : vector<16x16xf32>
    %660 = vector.extract_strided_slice %8 {offsets = [0, 50], sizes = [16, 1], strides = [1, 1]} : vector<16x64xf32> to vector<16x1xf32>
    %661 = vector.extract_strided_slice %9 {offsets = [50, 0], sizes = [1, 16], strides = [1, 1]} : vector<64x16xf32> to vector<1x16xf32>
    %662 = vector.broadcast %660 : vector<16x1xf32> to vector<16x16xf32>
    %663 = vector.broadcast %661 : vector<1x16xf32> to vector<16x16xf32>
    %664 = arith.addf %662, %663 : vector<16x16xf32>
    %cst_157 = arith.constant 2.000000e-01 : f32
    %665 = vector.broadcast %cst_157 : f32 to vector<16x16xf32>
    %666 = arith.mulf %665, %664 : vector<16x16xf32>
    %667 = arith.maximumf %664, %666 : vector<16x16xf32>
    %c3_158 = arith.constant 3 : index
    %c2_159 = arith.constant 2 : index
    %668 = memref.load %arg3[%c3_158, %c2_159] : memref<4x16xf32, #tpu.memory_space<smem>>
    %669 = vector.broadcast %668 : f32 to vector<16x16xf32>
    %670 = arith.mulf %669, %667 : vector<16x16xf32>
    %671 = arith.addf %659, %670 : vector<16x16xf32>
    %672 = vector.extract_strided_slice %8 {offsets = [0, 51], sizes = [16, 1], strides = [1, 1]} : vector<16x64xf32> to vector<16x1xf32>
    %673 = vector.extract_strided_slice %9 {offsets = [51, 0], sizes = [1, 16], strides = [1, 1]} : vector<64x16xf32> to vector<1x16xf32>
    %674 = vector.broadcast %672 : vector<16x1xf32> to vector<16x16xf32>
    %675 = vector.broadcast %673 : vector<1x16xf32> to vector<16x16xf32>
    %676 = arith.addf %674, %675 : vector<16x16xf32>
    %cst_160 = arith.constant 2.000000e-01 : f32
    %677 = vector.broadcast %cst_160 : f32 to vector<16x16xf32>
    %678 = arith.mulf %677, %676 : vector<16x16xf32>
    %679 = arith.maximumf %676, %678 : vector<16x16xf32>
    %c3_161 = arith.constant 3 : index
    %c3_162 = arith.constant 3 : index
    %680 = memref.load %arg3[%c3_161, %c3_162] : memref<4x16xf32, #tpu.memory_space<smem>>
    %681 = vector.broadcast %680 : f32 to vector<16x16xf32>
    %682 = arith.mulf %681, %679 : vector<16x16xf32>
    %683 = arith.addf %671, %682 : vector<16x16xf32>
    %684 = vector.extract_strided_slice %8 {offsets = [0, 52], sizes = [16, 1], strides = [1, 1]} : vector<16x64xf32> to vector<16x1xf32>
    %685 = vector.extract_strided_slice %9 {offsets = [52, 0], sizes = [1, 16], strides = [1, 1]} : vector<64x16xf32> to vector<1x16xf32>
    %686 = vector.broadcast %684 : vector<16x1xf32> to vector<16x16xf32>
    %687 = vector.broadcast %685 : vector<1x16xf32> to vector<16x16xf32>
    %688 = arith.addf %686, %687 : vector<16x16xf32>
    %cst_163 = arith.constant 2.000000e-01 : f32
    %689 = vector.broadcast %cst_163 : f32 to vector<16x16xf32>
    %690 = arith.mulf %689, %688 : vector<16x16xf32>
    %691 = arith.maximumf %688, %690 : vector<16x16xf32>
    %c3_164 = arith.constant 3 : index
    %c4_165 = arith.constant 4 : index
    %692 = memref.load %arg3[%c3_164, %c4_165] : memref<4x16xf32, #tpu.memory_space<smem>>
    %693 = vector.broadcast %692 : f32 to vector<16x16xf32>
    %694 = arith.mulf %693, %691 : vector<16x16xf32>
    %695 = arith.addf %683, %694 : vector<16x16xf32>
    %696 = vector.extract_strided_slice %8 {offsets = [0, 53], sizes = [16, 1], strides = [1, 1]} : vector<16x64xf32> to vector<16x1xf32>
    %697 = vector.extract_strided_slice %9 {offsets = [53, 0], sizes = [1, 16], strides = [1, 1]} : vector<64x16xf32> to vector<1x16xf32>
    %698 = vector.broadcast %696 : vector<16x1xf32> to vector<16x16xf32>
    %699 = vector.broadcast %697 : vector<1x16xf32> to vector<16x16xf32>
    %700 = arith.addf %698, %699 : vector<16x16xf32>
    %cst_166 = arith.constant 2.000000e-01 : f32
    %701 = vector.broadcast %cst_166 : f32 to vector<16x16xf32>
    %702 = arith.mulf %701, %700 : vector<16x16xf32>
    %703 = arith.maximumf %700, %702 : vector<16x16xf32>
    %c3_167 = arith.constant 3 : index
    %c5_168 = arith.constant 5 : index
    %704 = memref.load %arg3[%c3_167, %c5_168] : memref<4x16xf32, #tpu.memory_space<smem>>
    %705 = vector.broadcast %704 : f32 to vector<16x16xf32>
    %706 = arith.mulf %705, %703 : vector<16x16xf32>
    %707 = arith.addf %695, %706 : vector<16x16xf32>
    %708 = vector.extract_strided_slice %8 {offsets = [0, 54], sizes = [16, 1], strides = [1, 1]} : vector<16x64xf32> to vector<16x1xf32>
    %709 = vector.extract_strided_slice %9 {offsets = [54, 0], sizes = [1, 16], strides = [1, 1]} : vector<64x16xf32> to vector<1x16xf32>
    %710 = vector.broadcast %708 : vector<16x1xf32> to vector<16x16xf32>
    %711 = vector.broadcast %709 : vector<1x16xf32> to vector<16x16xf32>
    %712 = arith.addf %710, %711 : vector<16x16xf32>
    %cst_169 = arith.constant 2.000000e-01 : f32
    %713 = vector.broadcast %cst_169 : f32 to vector<16x16xf32>
    %714 = arith.mulf %713, %712 : vector<16x16xf32>
    %715 = arith.maximumf %712, %714 : vector<16x16xf32>
    %c3_170 = arith.constant 3 : index
    %c6_171 = arith.constant 6 : index
    %716 = memref.load %arg3[%c3_170, %c6_171] : memref<4x16xf32, #tpu.memory_space<smem>>
    %717 = vector.broadcast %716 : f32 to vector<16x16xf32>
    %718 = arith.mulf %717, %715 : vector<16x16xf32>
    %719 = arith.addf %707, %718 : vector<16x16xf32>
    %720 = vector.extract_strided_slice %8 {offsets = [0, 55], sizes = [16, 1], strides = [1, 1]} : vector<16x64xf32> to vector<16x1xf32>
    %721 = vector.extract_strided_slice %9 {offsets = [55, 0], sizes = [1, 16], strides = [1, 1]} : vector<64x16xf32> to vector<1x16xf32>
    %722 = vector.broadcast %720 : vector<16x1xf32> to vector<16x16xf32>
    %723 = vector.broadcast %721 : vector<1x16xf32> to vector<16x16xf32>
    %724 = arith.addf %722, %723 : vector<16x16xf32>
    %cst_172 = arith.constant 2.000000e-01 : f32
    %725 = vector.broadcast %cst_172 : f32 to vector<16x16xf32>
    %726 = arith.mulf %725, %724 : vector<16x16xf32>
    %727 = arith.maximumf %724, %726 : vector<16x16xf32>
    %c3_173 = arith.constant 3 : index
    %c7_174 = arith.constant 7 : index
    %728 = memref.load %arg3[%c3_173, %c7_174] : memref<4x16xf32, #tpu.memory_space<smem>>
    %729 = vector.broadcast %728 : f32 to vector<16x16xf32>
    %730 = arith.mulf %729, %727 : vector<16x16xf32>
    %731 = arith.addf %719, %730 : vector<16x16xf32>
    %732 = vector.extract_strided_slice %8 {offsets = [0, 56], sizes = [16, 1], strides = [1, 1]} : vector<16x64xf32> to vector<16x1xf32>
    %733 = vector.extract_strided_slice %9 {offsets = [56, 0], sizes = [1, 16], strides = [1, 1]} : vector<64x16xf32> to vector<1x16xf32>
    %734 = vector.broadcast %732 : vector<16x1xf32> to vector<16x16xf32>
    %735 = vector.broadcast %733 : vector<1x16xf32> to vector<16x16xf32>
    %736 = arith.addf %734, %735 : vector<16x16xf32>
    %cst_175 = arith.constant 2.000000e-01 : f32
    %737 = vector.broadcast %cst_175 : f32 to vector<16x16xf32>
    %738 = arith.mulf %737, %736 : vector<16x16xf32>
    %739 = arith.maximumf %736, %738 : vector<16x16xf32>
    %c3_176 = arith.constant 3 : index
    %c8_177 = arith.constant 8 : index
    %740 = memref.load %arg3[%c3_176, %c8_177] : memref<4x16xf32, #tpu.memory_space<smem>>
    %741 = vector.broadcast %740 : f32 to vector<16x16xf32>
    %742 = arith.mulf %741, %739 : vector<16x16xf32>
    %743 = arith.addf %731, %742 : vector<16x16xf32>
    %744 = vector.extract_strided_slice %8 {offsets = [0, 57], sizes = [16, 1], strides = [1, 1]} : vector<16x64xf32> to vector<16x1xf32>
    %745 = vector.extract_strided_slice %9 {offsets = [57, 0], sizes = [1, 16], strides = [1, 1]} : vector<64x16xf32> to vector<1x16xf32>
    %746 = vector.broadcast %744 : vector<16x1xf32> to vector<16x16xf32>
    %747 = vector.broadcast %745 : vector<1x16xf32> to vector<16x16xf32>
    %748 = arith.addf %746, %747 : vector<16x16xf32>
    %cst_178 = arith.constant 2.000000e-01 : f32
    %749 = vector.broadcast %cst_178 : f32 to vector<16x16xf32>
    %750 = arith.mulf %749, %748 : vector<16x16xf32>
    %751 = arith.maximumf %748, %750 : vector<16x16xf32>
    %c3_179 = arith.constant 3 : index
    %c9_180 = arith.constant 9 : index
    %752 = memref.load %arg3[%c3_179, %c9_180] : memref<4x16xf32, #tpu.memory_space<smem>>
    %753 = vector.broadcast %752 : f32 to vector<16x16xf32>
    %754 = arith.mulf %753, %751 : vector<16x16xf32>
    %755 = arith.addf %743, %754 : vector<16x16xf32>
    %756 = vector.extract_strided_slice %8 {offsets = [0, 58], sizes = [16, 1], strides = [1, 1]} : vector<16x64xf32> to vector<16x1xf32>
    %757 = vector.extract_strided_slice %9 {offsets = [58, 0], sizes = [1, 16], strides = [1, 1]} : vector<64x16xf32> to vector<1x16xf32>
    %758 = vector.broadcast %756 : vector<16x1xf32> to vector<16x16xf32>
    %759 = vector.broadcast %757 : vector<1x16xf32> to vector<16x16xf32>
    %760 = arith.addf %758, %759 : vector<16x16xf32>
    %cst_181 = arith.constant 2.000000e-01 : f32
    %761 = vector.broadcast %cst_181 : f32 to vector<16x16xf32>
    %762 = arith.mulf %761, %760 : vector<16x16xf32>
    %763 = arith.maximumf %760, %762 : vector<16x16xf32>
    %c3_182 = arith.constant 3 : index
    %c10_183 = arith.constant 10 : index
    %764 = memref.load %arg3[%c3_182, %c10_183] : memref<4x16xf32, #tpu.memory_space<smem>>
    %765 = vector.broadcast %764 : f32 to vector<16x16xf32>
    %766 = arith.mulf %765, %763 : vector<16x16xf32>
    %767 = arith.addf %755, %766 : vector<16x16xf32>
    %768 = vector.extract_strided_slice %8 {offsets = [0, 59], sizes = [16, 1], strides = [1, 1]} : vector<16x64xf32> to vector<16x1xf32>
    %769 = vector.extract_strided_slice %9 {offsets = [59, 0], sizes = [1, 16], strides = [1, 1]} : vector<64x16xf32> to vector<1x16xf32>
    %770 = vector.broadcast %768 : vector<16x1xf32> to vector<16x16xf32>
    %771 = vector.broadcast %769 : vector<1x16xf32> to vector<16x16xf32>
    %772 = arith.addf %770, %771 : vector<16x16xf32>
    %cst_184 = arith.constant 2.000000e-01 : f32
    %773 = vector.broadcast %cst_184 : f32 to vector<16x16xf32>
    %774 = arith.mulf %773, %772 : vector<16x16xf32>
    %775 = arith.maximumf %772, %774 : vector<16x16xf32>
    %c3_185 = arith.constant 3 : index
    %c11_186 = arith.constant 11 : index
    %776 = memref.load %arg3[%c3_185, %c11_186] : memref<4x16xf32, #tpu.memory_space<smem>>
    %777 = vector.broadcast %776 : f32 to vector<16x16xf32>
    %778 = arith.mulf %777, %775 : vector<16x16xf32>
    %779 = arith.addf %767, %778 : vector<16x16xf32>
    %780 = vector.extract_strided_slice %8 {offsets = [0, 60], sizes = [16, 1], strides = [1, 1]} : vector<16x64xf32> to vector<16x1xf32>
    %781 = vector.extract_strided_slice %9 {offsets = [60, 0], sizes = [1, 16], strides = [1, 1]} : vector<64x16xf32> to vector<1x16xf32>
    %782 = vector.broadcast %780 : vector<16x1xf32> to vector<16x16xf32>
    %783 = vector.broadcast %781 : vector<1x16xf32> to vector<16x16xf32>
    %784 = arith.addf %782, %783 : vector<16x16xf32>
    %cst_187 = arith.constant 2.000000e-01 : f32
    %785 = vector.broadcast %cst_187 : f32 to vector<16x16xf32>
    %786 = arith.mulf %785, %784 : vector<16x16xf32>
    %787 = arith.maximumf %784, %786 : vector<16x16xf32>
    %c3_188 = arith.constant 3 : index
    %c12_189 = arith.constant 12 : index
    %788 = memref.load %arg3[%c3_188, %c12_189] : memref<4x16xf32, #tpu.memory_space<smem>>
    %789 = vector.broadcast %788 : f32 to vector<16x16xf32>
    %790 = arith.mulf %789, %787 : vector<16x16xf32>
    %791 = arith.addf %779, %790 : vector<16x16xf32>
    %792 = vector.extract_strided_slice %8 {offsets = [0, 61], sizes = [16, 1], strides = [1, 1]} : vector<16x64xf32> to vector<16x1xf32>
    %793 = vector.extract_strided_slice %9 {offsets = [61, 0], sizes = [1, 16], strides = [1, 1]} : vector<64x16xf32> to vector<1x16xf32>
    %794 = vector.broadcast %792 : vector<16x1xf32> to vector<16x16xf32>
    %795 = vector.broadcast %793 : vector<1x16xf32> to vector<16x16xf32>
    %796 = arith.addf %794, %795 : vector<16x16xf32>
    %cst_190 = arith.constant 2.000000e-01 : f32
    %797 = vector.broadcast %cst_190 : f32 to vector<16x16xf32>
    %798 = arith.mulf %797, %796 : vector<16x16xf32>
    %799 = arith.maximumf %796, %798 : vector<16x16xf32>
    %c3_191 = arith.constant 3 : index
    %c13_192 = arith.constant 13 : index
    %800 = memref.load %arg3[%c3_191, %c13_192] : memref<4x16xf32, #tpu.memory_space<smem>>
    %801 = vector.broadcast %800 : f32 to vector<16x16xf32>
    %802 = arith.mulf %801, %799 : vector<16x16xf32>
    %803 = arith.addf %791, %802 : vector<16x16xf32>
    %804 = vector.extract_strided_slice %8 {offsets = [0, 62], sizes = [16, 1], strides = [1, 1]} : vector<16x64xf32> to vector<16x1xf32>
    %805 = vector.extract_strided_slice %9 {offsets = [62, 0], sizes = [1, 16], strides = [1, 1]} : vector<64x16xf32> to vector<1x16xf32>
    %806 = vector.broadcast %804 : vector<16x1xf32> to vector<16x16xf32>
    %807 = vector.broadcast %805 : vector<1x16xf32> to vector<16x16xf32>
    %808 = arith.addf %806, %807 : vector<16x16xf32>
    %cst_193 = arith.constant 2.000000e-01 : f32
    %809 = vector.broadcast %cst_193 : f32 to vector<16x16xf32>
    %810 = arith.mulf %809, %808 : vector<16x16xf32>
    %811 = arith.maximumf %808, %810 : vector<16x16xf32>
    %c3_194 = arith.constant 3 : index
    %c14_195 = arith.constant 14 : index
    %812 = memref.load %arg3[%c3_194, %c14_195] : memref<4x16xf32, #tpu.memory_space<smem>>
    %813 = vector.broadcast %812 : f32 to vector<16x16xf32>
    %814 = arith.mulf %813, %811 : vector<16x16xf32>
    %815 = arith.addf %803, %814 : vector<16x16xf32>
    %816 = vector.extract_strided_slice %8 {offsets = [0, 63], sizes = [16, 1], strides = [1, 1]} : vector<16x64xf32> to vector<16x1xf32>
    %817 = vector.extract_strided_slice %9 {offsets = [63, 0], sizes = [1, 16], strides = [1, 1]} : vector<64x16xf32> to vector<1x16xf32>
    %818 = vector.broadcast %816 : vector<16x1xf32> to vector<16x16xf32>
    %819 = vector.broadcast %817 : vector<1x16xf32> to vector<16x16xf32>
    %820 = arith.addf %818, %819 : vector<16x16xf32>
    %cst_196 = arith.constant 2.000000e-01 : f32
    %821 = vector.broadcast %cst_196 : f32 to vector<16x16xf32>
    %822 = arith.mulf %821, %820 : vector<16x16xf32>
    %823 = arith.maximumf %820, %822 : vector<16x16xf32>
    %c3_197 = arith.constant 3 : index
    %c15_198 = arith.constant 15 : index
    %824 = memref.load %arg3[%c3_197, %c15_198] : memref<4x16xf32, #tpu.memory_space<smem>>
    %825 = vector.broadcast %824 : f32 to vector<16x16xf32>
    %826 = arith.mulf %825, %823 : vector<16x16xf32>
    %827 = arith.addf %815, %826 : vector<16x16xf32>
    %cst_199 = arith.constant dense<0xFF800000> : vector<16xf32>
    %828 = vector.multi_reduction <maximumf>, %827, %cst_199 [1] : vector<16x16xf32> to vector<16xf32>
    %829 = vector.shape_cast %828 : vector<16xf32> to vector<16x1xf32>
    %830 = vector.broadcast %829 : vector<16x1xf32> to vector<16x16xf32>
    %831 = arith.subf %827, %830 : vector<16x16xf32>
    %832 = math.exp %831 : vector<16x16xf32>
    %cst_200 = arith.constant dense<0.000000e+00> : vector<16xf32>
    %833 = vector.multi_reduction <add>, %832, %cst_200 [1] : vector<16x16xf32> to vector<16xf32>
    %834 = vector.shape_cast %833 : vector<16xf32> to vector<16x1xf32>
    %835 = tpu.reciprocal %834 {approx = true} : vector<16x1xf32> -> vector<16x1xf32>
    %836 = arith.truncf %832 : vector<16x16xf32> to vector<16x16xbf16>
    %837 = vector.extract_strided_slice %10 {offsets = [0, 48], sizes = [16, 16], strides = [1, 1]} : vector<16x64xbf16> to vector<16x16xbf16>
    %cst_201 = arith.constant dense<0.000000e+00> : vector<16x16xf32>
    %838 = tpu.matmul %836, %837, %cst_201 {dimension_numbers = #tpu.dot_dimension_numbers<[1], [0], [0], [1], [0, 0, 1, 1], [], []>} : vector<16x16xbf16>, vector<16x16xbf16>, vector<16x16xf32> -> vector<16x16xf32>
    %839 = vector.broadcast %835 : vector<16x1xf32> to vector<16x16xf32>
    %840 = arith.mulf %838, %839 : vector<16x16xf32>
    %c0_202 = arith.constant 0 : index
    %c48 = arith.constant 48 : index
    %841 = vector.load %arg7[%c0_202, %c48] : memref<16x64xf32, #tpu.memory_space<vmem>>, vector<16x16xf32>
    tpu.vector_store %arg7[%c0_202, %c48], %840 {strides = array<i32>} : memref<16x64xf32, #tpu.memory_space<vmem>>, vector<16x16xf32>,
    %c0_203 = arith.constant 0 : index
    %c0_204 = arith.constant 0 : index
    %842 = vector.load %arg7[%c0_203, %c0_204] : memref<16x64xf32, #tpu.memory_space<vmem>>, vector<16x64xf32>
    %c0_205 = arith.constant 0 : index
    %c0_206 = arith.constant 0 : index
    %843 = vector.load %arg5[%c0_205, %c0_206] : memref<1x64xf32, #tpu.memory_space<vmem>>, vector<1x64xf32>
    %844 = vector.broadcast %843 : vector<1x64xf32> to vector<16x64xf32>
    %845 = arith.addf %842, %844 : vector<16x64xf32>
    %cst_207 = arith.constant 0.000000e+00 : f32
    %846 = vector.broadcast %cst_207 : f32 to vector<16x64xf32>
    %847 = arith.maximumf %845, %846 : vector<16x64xf32>
    %c0_208 = arith.constant 0 : index
    %c0_209 = arith.constant 0 : index
    %848 = vector.load %arg6[%c0_208, %c0_209] : memref<16x64xf32, #tpu.memory_space<vmem>>, vector<16x64xf32>
    tpu.vector_store %arg6[%c0_208, %c0_209], %847 {strides = array<i32>} : memref<16x64xf32, #tpu.memory_space<vmem>>, vector<16x64xf32>,
    return
  }
}

</mosaic_0001>

<llo_original>
// kernel: forward.3
$region0: #{forward.3}
  #allocation0 [shape = 'u32[]', space=smem, size = 0x4, offset = 0x4, fixed_abs, tag = 'smem constant byte address 0x4 - core index']
  #allocation1 [shape = 'u32[72,128]{1,0:T(1,128)}', space=vmem, size = 0x9000, scoped, tag = 'internal scratch']
  #allocation2 [shape = 'f32[16,128]{1,0:T(8,128)}', space=vmem, size = 0x2000, scoped, tag = 'scratch operand']
  %s0 = inlined_call_operand.vmem [shape: f32[16,64], index: 0, kind: input, shape index: {}]
  %s1 = inlined_call_operand.hbm [shape: bf16[64,256], index: 1, kind: input, shape index: {}]
  %s2 = inlined_call_operand.vmem [shape: f32[1,256], index: 2, kind: input, shape index: {}]
  %s3 = inlined_call_operand.vmem [shape: f32[1,4], index: 3, kind: input, shape index: {}]
  %s4 = inlined_call_operand.vmem [shape: s8[16,16], index: 4, kind: input, shape index: {}]
  %s5 = inlined_call_operand.vmem [shape: f32[1,128], index: 5, kind: input, shape index: {}]
  %s6 = inlined_call_operand.vmem [shape: f32[16,128], index: 6, kind: output, shape index: {}]
  %s7 = sld [smem:[#allocation0]]
  $region42: #{forward.3} parent=0
    _
  %s9 = ssub.s32 1, %s7
  %s10 = scalar_select 0, %s9, %s7
  $region1: #{forward.3} parent=0
    #allocation3 [shape = 'u8[32768]{0}', space=vmem, size = 0x8000, scoped, tag = 'input window, operand 1, single buffered']
    #allocation4 [shape = 's32[1]{0}', space=sflag, size = 0x4, scoped, tag = 'scoped memory for forward.3']
    #allocation5 [shape = 's32[1]{0}', space=sflag, size = 0x4, scoped, tag = 'scoped memory for forward.3']
    #allocation6 [shape = 'u8[512]{0}', space=smem, size = 0x200, scoped, tag = 'input window, operand 3, single buffered']
    %11 = vsyncpa [#allocation4], 0
    %12 = vsyncpa [#allocation5], 0
    // Predicated region
    $region2: #{forward.3} parent=1 // pred_check
      _
    $region3: #{forward.3} parent=1 // pred_check_branch
      %14 = sbr.rel (0) target = $region5
    $region4: #{forward.3} parent=1 // pred_region
      _
    $region5: #{forward.3} parent=1 // pred_fallthru
      _
    // Predicated region
    $region6: #{forward.3} parent=1 // pred_check
      _
    $region7: #{forward.3} parent=1 // pred_check_branch
      %16 = sbr.rel (0) target = $region9
    $region8: #{forward.3} parent=1 // pred_region
      %18 = vsyncadd [#allocation4], 0
      %s19 = sshll.u32 %s1, 4
      %s20 = int_to_ptr.hbm [resolvable:$true] %s19
      %s21 = sshll.u32 [#allocation3], 4
      %s22 = int_to_ptr.vmem [resolvable:$true] %s21
      %27 = dma.hbm_to_vmem [thread:$0]  %s20, 1024, %s22, [#allocation4], 128, 128, 8
    $region9: #{forward.3} parent=1 // pred_fallthru
      _
    // Predicated region
    $region10: #{forward.3} parent=1 // pred_check
      _
    $region11: #{forward.3} parent=1 // pred_check_branch
      %29 = sbr.rel (0) target = $region13
    $region12: #{forward.3} parent=1 // pred_region
      _
    $region13: #{forward.3} parent=1 // pred_fallthru
      _
    // Predicated region
    $region14: #{forward.3} parent=1 // pred_check
      _
    $region15: #{forward.3} parent=1 // pred_check_branch
      %31 = sbr.rel (0) target = $region17
    $region16: #{forward.3} parent=1 // pred_region
      %33 = vsyncadd [#allocation5], 0
      %s35 = sshll.u32 %s3, 4
      %s36 = int_to_ptr.vmem [resolvable:$true] %s35
      %38 = dma.vmem_to_smem %s36, 16, [#allocation6], [#allocation5]
    $region17: #{forward.3} parent=1 // pred_fallthru
      _
    // Predicated region
    $region18: #{forward.3} parent=1 // pred_check
      _
    $region19: #{forward.3} parent=1 // pred_check_branch
      %40 = sbr.rel (0) target = $region21
    $region20: #{forward.3} parent=1 // pred_region
      _
    $region21: #{forward.3} parent=1 // pred_fallthru
      _
    // Predicated region
    $region22: #{forward.3} parent=1 // pred_check
      _
    $region23: #{forward.3} parent=1 // pred_check_branch
      %42 = sbr.rel (0) target = $region25
    $region24: #{forward.3} parent=1 // pred_region
      _
    $region25: #{forward.3} parent=1 // pred_fallthru
      _
    // Predicated region
    $region26: #{forward.3} parent=1 // pred_check
      _
    $region27: #{forward.3} parent=1 // pred_check_branch
      %44 = sbr.rel (0) target = $region29
    $region28: #{forward.3} parent=1 // pred_region
      %46 = dma.done [#allocation4], 1024
    $region29: #{forward.3} parent=1 // pred_fallthru
      _
    // Predicated region
    $region30: #{forward.3} parent=1 // pred_check
      _
    $region31: #{forward.3} parent=1 // pred_check_branch
      %48 = sbr.rel (0) target = $region33
    $region32: #{forward.3} parent=1 // pred_region
      %50 = dma.done [#allocation5], 16
    $region33: #{forward.3} parent=1 // pred_fallthru
      _
    %51 = sfence
    %v53 = vld [vmem:[%s0] sm:$0xff]
    %v54 = vld [vmem:[%s0 + $0x8] sm:$0xff]
    %v55 = vpack.c.bf16 %v54, %v53
    %v56 = vld [vmem:[#allocation3] sm:$0xff]
    %v57 = vld [vmem:[#allocation3 + $0x8] sm:$0xff]
    %v58 = vld [vmem:[#allocation3 + $0x10] sm:$0xff]
    %v59 = vld [vmem:[#allocation3 + $0x18] sm:$0xff]
    %v60 = vld [vmem:[#allocation3 + $0x20] sm:$0xff]
    %v61 = vld [vmem:[#allocation3 + $0x28] sm:$0xff]
    %v62 = vld [vmem:[#allocation3 + $0x30] sm:$0xff]
    %v63 = vld [vmem:[#allocation3 + $0x38] sm:$0xff]
    %v64 = vld [vmem:[%s2] sm:$0x3]
    %v66 = vperm.slane %v64, 0
    %v67 = vperm.slane %v64, 1
    %v78 = vunpack.c.l.b16 %v56
    %v79 = vunpack.c.h.b16 %v56
    %v80 = vunpack.c.l.b16 %v57
    %v81 = vunpack.c.h.b16 %v57
    %v82 = vunpack.c.l.b16 %v58
    %v83 = vunpack.c.h.b16 %v58
    %v84 = vunpack.c.l.b16 %v59
    %v85 = vunpack.c.h.b16 %v59
    %v86 = vunpack.c.l.b16 %v60
    %v87 = vunpack.c.h.b16 %v60
    %v88 = vunpack.c.l.b16 %v61
    %v89 = vunpack.c.h.b16 %v61
    %v90 = vunpack.c.l.b16 %v62
    %v91 = vunpack.c.h.b16 %v62
    %v92 = vunpack.c.l.b16 %v63
    %v93 = vunpack.c.h.b16 %v63
    %v94 = vpack.c.b16 %v80, %v78
    %v95 = vpack.c.b16 %v81, %v79
    %v96 = vpack.c.b16 %v84, %v82
    %v97 = vpack.c.b16 %v85, %v83
    %v98 = vpack.c.b16 %v88, %v86
    %v99 = vpack.c.b16 %v89, %v87
    %v100 = vpack.c.b16 %v92, %v90
    %v101 = vpack.c.b16 %v93, %v91
    %vm110 = vcmask 523264
    %v112 = vsel %vm110, %v55, 0
    %114 = vmatpush.bf16.msra.mxu0 0
    %115 = vmatpush.bf16.msra.mxu0 0
    %116 = vmatpush.bf16.msra.mxu0 0
    %117 = vmatpush.bf16.msra.mxu0 0
    %118 = vmatpush.bf16.msra.mxu0 %v100
    %119 = vmatpush.bf16.msra.mxu0 %v98
    %120 = vmatpush.bf16.msra.mxu0 %v96
    %121 = vmatpush.bf16.msra.mxu0 %v94
    %122 = vmatmul.bf16.gmra.mxu0 %v112
    %v123 = vpop.f32.mrf.mxu0
    %v124 = vadd.f32 %v66, %v123
    %v125 = vpop.f32.mrf.mxu0
    %v126 = vadd.f32 %v66, %v125
    %127 = vdwg.mxu0
    %128 = vmatpush.bf16.msra.mxu0 0
    %129 = vmatpush.bf16.msra.mxu0 0
    %130 = vmatpush.bf16.msra.mxu0 0
    %131 = vmatpush.bf16.msra.mxu0 0
    %132 = vmatpush.bf16.msra.mxu0 %v101
    %133 = vmatpush.bf16.msra.mxu0 %v99
    %134 = vmatpush.bf16.msra.mxu0 %v97
    %135 = vmatpush.bf16.msra.mxu0 %v95
    %136 = vmatmul.bf16.gmra.mxu0 %v112
    %v137 = vpop.f32.mrf.mxu0
    %v138 = vadd.f32 %v67, %v137
    %v139 = vpop.f32.mrf.mxu0
    %v140 = vadd.f32 %v67, %v139
    %141 = vdwg.mxu0
    %142 = vxpose.xlu0.b32.start [1/16] %v124, 128
    %143 = vxpose.xlu0.b32.cont [2/16] %v126, 128
    %144 = vxpose.xlu0.b32.cont [3/16] 0.0, 128
    %145 = vxpose.xlu0.b32.cont [4/16] 0.0, 128
    %146 = vxpose.xlu0.b32.cont [5/16] 0.0, 128
    %147 = vxpose.xlu0.b32.cont [6/16] 0.0, 128
    %148 = vxpose.xlu0.b32.cont [7/16] 0.0, 128
    %149 = vxpose.xlu0.b32.cont [8/16] 0.0, 128
    %150 = vxpose.xlu0.b32.cont [9/16] 0.0, 128
    %151 = vxpose.xlu0.b32.cont [10/16] 0.0, 128
    %152 = vxpose.xlu0.b32.cont [11/16] 0.0, 128
    %153 = vxpose.xlu0.b32.cont [12/16] 0.0, 128
    %154 = vxpose.xlu0.b32.cont [13/16] 0.0, 128
    %155 = vxpose.xlu0.b32.cont [14/16] 0.0, 128
    %156 = vxpose.xlu0.b32.cont [15/16] 0.0, 128
    %157 = vxpose.xlu0.b32.end [16/16] 0.0, 128
    %v158 = vpop.trf.xlu0
    %v159 = vpop.trf.xlu0
    %v160 = vpop.trf.xlu0
    %v161 = vpop.trf.xlu0
    %v162 = vpop.trf.xlu0
    %v163 = vpop.trf.xlu0
    %v164 = vpop.trf.xlu0
    %v165 = vpop.trf.xlu0
    %v166 = vpop.trf.xlu0
    %v167 = vpop.trf.xlu0
    %v168 = vpop.trf.xlu0
    %v169 = vpop.trf.xlu0
    %v170 = vpop.trf.xlu0
    %v171 = vpop.trf.xlu0
    %v172 = vpop.trf.xlu0
    %v173 = vpop.trf.xlu0
    %v174 = vpack.c.bf16 %v126, %v124
    %v175 = vld [vmem:[%s4] sm:$0x3]
    %v176 = vld [vmem:[%s4 + $0x2] sm:$0x3]
    %v177 = vunpack.c.0.s8 %v175
    %v178 = vunpack.c.0.s8 %v176
    %vm179 = vcmp.eq.s32.totalorder %v177, 0
    %vm180 = vcmp.eq.s32.totalorder %v178, 0
    %v181 = vsel %vm179, -1e+30, 0.0
    %v182 = vsel %vm180, -1e+30, 0.0
    %184 = vset.pattern.permute.xlu0 0
    %185 = vperm.xlu0 %184, %v138
    %v186 = vpop.permute.xlu0 %185
    %189 = vset.pattern.permute.xlu0 0
    %190 = vperm.xlu0 %189, %v140
    %v191 = vpop.permute.xlu0 %190
    %v193 = vperm.slane %v158, 0
    %v194 = vadd.f32 %v186, %v193
    %v195 = vadd.f32 %v191, %v193
    %v196 = vmul.f32 %v194, 0.2
    %v197 = vmul.f32 %v195, 0.2
    %v198 = vmax.f32 %v194, %v196
    %v199 = vmax.f32 %v195, %v197
    %s200 = sld [smem:[#allocation6]]
    %v201 = vstv %s200
    %v202 = vmul.f32 %v201, %v198
    %v203 = vmul.f32 %v201, %v199
    %v204 = vadd.f32 %v181, %v202
    %v205 = vadd.f32 %v182, %v203
    %206 = vset.pattern.permute.xlu0 1
    %207 = vperm.xlu0 %206, %v138
    %v208 = vpop.permute.xlu0 %207
    %210 = vset.pattern.permute.xlu0 1
    %211 = vperm.xlu0 %210, %v140
    %v212 = vpop.permute.xlu0 %211
    %v214 = vperm.slane %v158, 1
    %v215 = vadd.f32 %v208, %v214
    %v216 = vadd.f32 %v212, %v214
    %v217 = vmul.f32 %v215, 0.2
    %v218 = vmul.f32 %v216, 0.2
    %v219 = vmax.f32 %v215, %v217
    %v220 = vmax.f32 %v216, %v218
    %s221 = sld [smem:[#allocation6 + $0x1]]
    %v222 = vstv %s221
    %v223 = vmul.f32 %v222, %v219
    %v224 = vmul.f32 %v222, %v220
    %v225 = vadd.f32 %v204, %v223
    %v226 = vadd.f32 %v205, %v224
    %227 = vset.pattern.permute.xlu0 2
    %228 = vperm.xlu0 %227, %v138
    %v229 = vpop.permute.xlu0 %228
    %231 = vset.pattern.permute.xlu0 2
    %232 = vperm.xlu0 %231, %v140
    %v233 = vpop.permute.xlu0 %232
    %v235 = vperm.slane %v158, 2
    %v236 = vadd.f32 %v229, %v235
    %v237 = vadd.f32 %v233, %v235
    %v238 = vmul.f32 %v236, 0.2
    %v239 = vmul.f32 %v237, 0.2
    %v240 = vmax.f32 %v236, %v238
    %v241 = vmax.f32 %v237, %v239
    %s242 = sld [smem:[#allocation6 + $0x2]]
    %v243 = vstv %s242
    %v244 = vmul.f32 %v243, %v240
    %v245 = vmul.f32 %v243, %v241
    %v246 = vadd.f32 %v225, %v244
    %v247 = vadd.f32 %v226, %v245
    %248 = vset.pattern.permute.xlu0 3
    %249 = vperm.xlu0 %248, %v138
    %v250 = vpop.permute.xlu0 %249
    %252 = vset.pattern.permute.xlu0 3
    %253 = vperm.xlu0 %252, %v140
    %v254 = vpop.permute.xlu0 %253
    %v256 = vperm.slane %v158, 3
    %v257 = vadd.f32 %v250, %v256
    %v258 = vadd.f32 %v254, %v256
    %v259 = vmul.f32 %v257, 0.2
    %v260 = vmul.f32 %v258, 0.2
    %v261 = vmax.f32 %v257, %v259
    %v262 = vmax.f32 %v258, %v260
    %s263 = sld [smem:[#allocation6 + $0x3]]
    %v264 = vstv %s263
    %v265 = vmul.f32 %v264, %v261
    %v266 = vmul.f32 %v264, %v262
    %v267 = vadd.f32 %v246, %v265
    %v268 = vadd.f32 %v247, %v266
    %vm269 = vcmask 130048
    %v270 = vsel %vm269, %v267, -inf
    %271 = vmax.xlane.f32.xlu0 %v270
    %v272 = vpop.xlane.xlu0 %271
    %v273 = vsel %vm269, %v268, -inf
    %274 = vmax.xlane.f32.xlu0 %v273
    %v275 = vpop.xlane.xlu0 %274
    %v276 = vsub.f32 %v267, %v272
    %v277 = vsub.f32 %v268, %v275
    %v278 = vmul.f32 %v276, 1.442695
    %v279 = vpow.pop %v278
    %v280 = vmul.f32 %v277, 1.442695
    %v281 = vpow.pop %v280
    %v282 = vsel %vm269, %v279, 0.0
    %283 = vadd.xlane.f32.xlu0 %v282
    %v284 = vpop.xlane.xlu0 %283
    %v285 = vsel %vm269, %v281, 0.0
    %286 = vadd.xlane.f32.xlu0 %v285
    %v287 = vpop.xlane.xlu0 %286
    %v288 = vrcp.pop %v284
    %v289 = vrcp.pop %v287
    %v290 = vpack.c.bf16 %v281, %v279
    %v292 = vsel %vm269, %v290, 0
    %294 = vmatpush.bf16.msra.mxu0 0
    %295 = vmatpush.bf16.msra.mxu0 0
    %296 = vmatpush.bf16.msra.mxu0 0
    %297 = vmatpush.bf16.msra.mxu0 0
    %298 = vmatpush.bf16.msra.mxu0 0
    %299 = vmatpush.bf16.msra.mxu0 0
    %300 = vmatpush.bf16.msra.mxu0 0
    %301 = vmatpush.bf16.msra.mxu0 %v174
    %302 = vmatmul.bf16.gmra.mxu0 %v292
    %v303 = vpop.f32.mrf.mxu0
    %v304 = vadd.f32 0.0, %v303
    %v305 = vpop.f32.mrf.mxu0
    %v306 = vadd.f32 0.0, %v305
    %307 = vdwg.mxu0
    %v308 = vmul.f32 %v304, %v288
    %v309 = vmul.f32 %v306, %v289
    %v310 = vld [vmem:[%s5] sm:$0x1]
    %v312 = vperm.slane %v310, 0
    %v314 = vadd.f32 %v308, %v312
    %v315 = vadd.f32 %v309, %v312
    %316 = vst [vmem:[%s6] sm:$0xff] %v314
    %317 = vst [vmem:[%s6 + $0x8] sm:$0xff] %v315
    // Predicated region
    $region34: #{forward.3} parent=1 // pred_check
      _
    $region35: #{forward.3} parent=1 // pred_check_branch
      %319 = sbr.rel (0) target = $region37
    $region36: #{forward.3} parent=1 // pred_region
      _
    $region37: #{forward.3} parent=1 // pred_fallthru
      _
    // Predicated region
    $region38: #{forward.3} parent=1 // pred_check
      _
    $region39: #{forward.3} parent=1 // pred_check_branch
      %321 = sbr.rel (0) target = $region41
    $region40: #{forward.3} parent=1 // pred_region
      _
    $region41: #{forward.3} parent=1 // pred_fallthru
      _
    %322 = vsyncpa [#allocation4], 1
    %323 = vsyncpa [#allocation5], 1

// kernel: forward.2
$region0: #{forward.2}
  #allocation0 [shape = 'u32[]', space=smem, size = 0x4, offset = 0x4, fixed_abs, tag = 'smem constant byte address 0x4 - core index']
  #allocation1 [shape = 'u32[72,128]{1,0:T(1,128)}', space=vmem, size = 0x9000, scoped, tag = 'internal scratch']
  #allocation2 [shape = 'f32[16,64]{1,0:T(8,128)}', space=vmem, size = 0x2000, scoped, tag = 'scratch operand']
  %s0 = inlined_call_operand.hbm [shape: f32[16,16], index: 0, kind: input, shape index: {}]
  %s1 = inlined_call_operand.hbm [shape: bf16[16,128], index: 1, kind: input, shape index: {}]
  %s2 = inlined_call_operand.hbm [shape: f32[1,128], index: 2, kind: input, shape index: {}]
  %s3 = inlined_call_operand.hbm [shape: f32[4,16], index: 3, kind: input, shape index: {}]
  %s4 = inlined_call_operand.vmem [shape: s8[16,16], index: 4, kind: input, shape index: {}]
  %s5 = inlined_call_operand.hbm [shape: f32[1,64], index: 5, kind: input, shape index: {}]
  %s6 = inlined_call_operand.vmem [shape: f32[16,64], index: 6, kind: output, shape index: {}]
  %s7 = sld [smem:[#allocation0]]
  $region54: #{forward.2} parent=0
    _
  %s9 = ssub.s32 1, %s7
  %s10 = scalar_select 0, %s9, %s7
  $region1: #{forward.2} parent=0
    #allocation3 [shape = 'u8[8192]{0}', space=vmem, size = 0x2000, scoped, tag = 'input window, operand 0, single buffered']
    #allocation4 [shape = 's32[1]{0}', space=sflag, size = 0x4, scoped, tag = 'scoped memory for forward.2']
    #allocation5 [shape = 's32[1]{0}', space=sflag, size = 0x4, scoped, tag = 'scoped memory for forward.2']
    #allocation6 [shape = 'u8[4096]{0}', space=vmem, size = 0x1000, scoped, tag = 'input window, operand 1, single buffered']
    #allocation7 [shape = 's32[1]{0}', space=sflag, size = 0x4, scoped, tag = 'scoped memory for forward.2']
    #allocation8 [shape = 'u8[512]{0}', space=vmem, size = 0x400, scoped, tag = 'input window, operand 2, single buffered']
    #allocation9 [shape = 'u8[2048]{0}', space=smem, size = 0x800, scoped, tag = 'input window, operand 3, single buffered']
    #allocation10 [shape = 'u8[512]{0}', space=vmem, size = 0x400, scoped, tag = 'input window, operand 5, single buffered']
    #allocation11 [shape = 's32[1]{0}', space=sflag, size = 0x4, scoped, tag = 'scoped memory for forward.2']
    %11 = vsyncpa [#allocation4], 0
    %12 = vsyncpa [#allocation7], 0
    %13 = vsyncpa [#allocation5], 0
    %14 = vsyncpa [#allocation11], 0
    // Predicated region
    $region2: #{forward.2} parent=1 // pred_check
      _
    $region3: #{forward.2} parent=1 // pred_check_branch
      %16 = sbr.rel (0) target = $region5
    $region4: #{forward.2} parent=1 // pred_region
      %18 = vsyncadd [#allocation4], 0
      %s19 = sshll.u32 %s0, 4
      %s20 = int_to_ptr.hbm [resolvable:$true] %s19
      %s21 = sshll.u32 [#allocation3], 4
      %s22 = int_to_ptr.vmem [resolvable:$true] %s21
      %27 = dma.hbm_to_vmem [thread:$0]  %s20, 256, %s22, [#allocation4], 128, 128, 8
    $region5: #{forward.2} parent=1 // pred_fallthru
      _
    // Predicated region
    $region6: #{forward.2} parent=1 // pred_check
      _
    $region7: #{forward.2} parent=1 // pred_check_branch
      %29 = sbr.rel (0) target = $region9
    $region8: #{forward.2} parent=1 // pred_region
      %31 = vsyncadd [#allocation7], 0
      %s32 = sshll.u32 %s1, 4
      %s33 = int_to_ptr.hbm [resolvable:$true] %s32
      %s34 = sshll.u32 [#allocation6], 4
      %s35 = int_to_ptr.vmem [resolvable:$true] %s34
      %40 = dma.hbm_to_vmem [thread:$0]  %s33, 128, %s35, [#allocation7], 64, 64, 4
    $region9: #{forward.2} parent=1 // pred_fallthru
      _
    // Predicated region
    $region10: #{forward.2} parent=1 // pred_check
      _
    $region11: #{forward.2} parent=1 // pred_check_branch
      %42 = sbr.rel (0) target = $region13
    $region12: #{forward.2} parent=1 // pred_region
      %44 = vsyncadd [#allocation7], 0
      %s46 = sshll.u32 %s2, 4
      %s47 = int_to_ptr.hbm [resolvable:$true] %s46
      %s48 = sshll.u32 [#allocation8], 4
      %s49 = int_to_ptr.vmem [resolvable:$true] %s48
      %51 = dma.hbm_to_vmem [thread:$0]  %s47, 16, %s49, [#allocation7]
    $region13: #{forward.2} parent=1 // pred_fallthru
      _
    // Predicated region
    $region14: #{forward.2} parent=1 // pred_check
      _
    $region15: #{forward.2} parent=1 // pred_check_branch
      %53 = sbr.rel (0) target = $region17
    $region16: #{forward.2} parent=1 // pred_region
      %55 = vsyncadd [#allocation5], 0
      %s57 = sshll.u32 %s3, 4
      %s58 = int_to_ptr.hbm [resolvable:$true] %s57
      %60 = dma.hbm_to_smem %s58, 64, [#allocation9], [#allocation5]
    $region17: #{forward.2} parent=1 // pred_fallthru
      _
    // Predicated region
    $region18: #{forward.2} parent=1 // pred_check
      _
    $region19: #{forward.2} parent=1 // pred_check_branch
      %62 = sbr.rel (0) target = $region21
    $region20: #{forward.2} parent=1 // pred_region
      _
    $region21: #{forward.2} parent=1 // pred_fallthru
      _
    // Predicated region
    $region22: #{forward.2} parent=1 // pred_check
      _
    $region23: #{forward.2} parent=1 // pred_check_branch
      %64 = sbr.rel (0) target = $region25
    $region24: #{forward.2} parent=1 // pred_region
      %66 = vsyncadd [#allocation11], 0
      %s68 = sshll.u32 %s5, 4
      %s69 = int_to_ptr.hbm [resolvable:$true] %s68
      %s70 = sshll.u32 [#allocation10], 4
      %s71 = int_to_ptr.vmem [resolvable:$true] %s70
      %73 = dma.hbm_to_vmem [thread:$0]  %s69, 16, %s71, [#allocation11]
    $region25: #{forward.2} parent=1 // pred_fallthru
      _
    // Predicated region
    $region26: #{forward.2} parent=1 // pred_check
      _
    $region27: #{forward.2} parent=1 // pred_check_branch
      %75 = sbr.rel (0) target = $region29
    $region28: #{forward.2} parent=1 // pred_region
      %77 = dma.done [#allocation4], 256
    $region29: #{forward.2} parent=1 // pred_fallthru
      _
    // Predicated region
    $region30: #{forward.2} parent=1 // pred_check
      _
    $region31: #{forward.2} parent=1 // pred_check_branch
      %79 = sbr.rel (0) target = $region33
    $region32: #{forward.2} parent=1 // pred_region
      %81 = dma.done [#allocation7], 128
    $region33: #{forward.2} parent=1 // pred_fallthru
      _
    // Predicated region
    $region34: #{forward.2} parent=1 // pred_check
      _
    $region35: #{forward.2} parent=1 // pred_check_branch
      %83 = sbr.rel (0) target = $region37
    $region36: #{forward.2} parent=1 // pred_region
      %85 = dma.done [#allocation7], 16
    $region37: #{forward.2} parent=1 // pred_fallthru
      _
    // Predicated region
    $region38: #{forward.2} parent=1 // pred_check
      _
    $region39: #{forward.2} parent=1 // pred_check_branch
      %87 = sbr.rel (0) target = $region41
    $region40: #{forward.2} parent=1 // pred_region
      %89 = dma.done [#allocation5], 64
    $region41: #{forward.2} parent=1 // pred_fallthru
      _
    // Predicated region
    $region42: #{forward.2} parent=1 // pred_check
      _
    $region43: #{forward.2} parent=1 // pred_check_branch
      %91 = sbr.rel (0) target = $region45
    $region44: #{forward.2} parent=1 // pred_region
      %93 = dma.done [#allocation11], 16
    $region45: #{forward.2} parent=1 // pred_fallthru
      _
    %94 = sfence
    %v96 = vld [vmem:[#allocation3] sm:$0xff]
    %v97 = vld [vmem:[#allocation3 + $0x8] sm:$0xff]
    %v98 = vpack.c.bf16 %v97, %v96
    %v99 = vld [vmem:[#allocation6] sm:$0xf]
    %v100 = vld [vmem:[#allocation6 + $0x4] sm:$0xf]
    %v101 = vld [vmem:[#allocation8] sm:$0x1]
    %v103 = vperm.slane %v101, 0
    %v107 = vunpack.c.l.b16 %v99
    %v108 = vunpack.c.l.b16 %v100
    %v109 = vpack.c.b16 %v108, %v107
    %vm111 = vcmask 130048
    %v113 = vsel %vm111, %v98, 0
    %115 = vmatpush.bf16.msra.mxu0 0
    %116 = vmatpush.bf16.msra.mxu0 0
    %117 = vmatpush.bf16.msra.mxu0 0
    %118 = vmatpush.bf16.msra.mxu0 0
    %119 = vmatpush.bf16.msra.mxu0 0
    %120 = vmatpush.bf16.msra.mxu0 0
    %121 = vmatpush.bf16.msra.mxu0 0
    %122 = vmatpush.bf16.msra.mxu0 %v109
    %123 = vmatmul.bf16.gmra.mxu0 %v113
    %v124 = vpop.f32.mrf.mxu0
    %v125 = vadd.f32 %v103, %v124
    %v126 = vpop.f32.mrf.mxu0
    %v127 = vadd.f32 %v103, %v126
    %128 = vdwg.mxu0
    %129 = vxpose.xlu0.b32.start [1/16] %v125, 128
    %130 = vxpose.xlu0.b32.cont [2/16] %v127, 128
    %131 = vxpose.xlu0.b32.cont [3/16] 0.0, 128
    %132 = vxpose.xlu0.b32.cont [4/16] 0.0, 128
    %133 = vxpose.xlu0.b32.cont [5/16] 0.0, 128
    %134 = vxpose.xlu0.b32.cont [6/16] 0.0, 128
    %135 = vxpose.xlu0.b32.cont [7/16] 0.0, 128
    %136 = vxpose.xlu0.b32.cont [8/16] 0.0, 128
    %137 = vxpose.xlu0.b32.cont [9/16] 0.0, 128
    %138 = vxpose.xlu0.b32.cont [10/16] 0.0, 128
    %139 = vxpose.xlu0.b32.cont [11/16] 0.0, 128
    %140 = vxpose.xlu0.b32.cont [12/16] 0.0, 128
    %141 = vxpose.xlu0.b32.cont [13/16] 0.0, 128
    %142 = vxpose.xlu0.b32.cont [14/16] 0.0, 128
    %143 = vxpose.xlu0.b32.cont [15/16] 0.0, 128
    %144 = vxpose.xlu0.b32.end [16/16] 0.0, 128
    %v145 = vpop.trf.xlu0
    %v146 = vpop.trf.xlu0
    %v147 = vpop.trf.xlu0
    %v148 = vpop.trf.xlu0
    %v149 = vpop.trf.xlu0
    %v150 = vpop.trf.xlu0
    %v151 = vpop.trf.xlu0
    %v152 = vpop.trf.xlu0
    %v153 = vpop.trf.xlu0
    %v154 = vpop.trf.xlu0
    %v155 = vpop.trf.xlu0
    %v156 = vpop.trf.xlu0
    %v157 = vpop.trf.xlu0
    %v158 = vpop.trf.xlu0
    %v159 = vpop.trf.xlu0
    %v160 = vpop.trf.xlu0
    %v161 = vpack.c.bf16 %v125, %v125
    %v162 = vpack.c.bf16 %v127, %v127
    %v163 = vld [vmem:[%s4] sm:$0x3]
    %v164 = vld [vmem:[%s4 + $0x2] sm:$0x3]
    %v165 = vunpack.c.0.s8 %v163
    %v166 = vunpack.c.0.s8 %v164
    %vm167 = vcmp.eq.s32.totalorder %v165, 0
    %vm168 = vcmp.eq.s32.totalorder %v166, 0
    %v169 = vsel %vm167, -1e+30, 0.0
    %v170 = vsel %vm168, -1e+30, 0.0
    %172 = vset.pattern.permute.xlu0 64
    %173 = vperm.xlu0 %172, %v125
    %v174 = vpop.permute.xlu0 %173
    %177 = vset.pattern.permute.xlu0 64
    %178 = vperm.xlu0 %177, %v127
    %v179 = vpop.permute.xlu0 %178
    %v181 = vperm.slane %v145, 0
    %v182 = vadd.f32 %v174, %v181
    %v183 = vadd.f32 %v179, %v181
    %v184 = vmul.f32 %v182, 0.2
    %v185 = vmul.f32 %v183, 0.2
    %v186 = vmax.f32 %v182, %v184
    %v187 = vmax.f32 %v183, %v185
    %s188 = sld [smem:[#allocation9]]
    %v189 = vstv %s188
    %v190 = vmul.f32 %v189, %v186
    %v191 = vmul.f32 %v189, %v187
    %v192 = vadd.f32 %v169, %v190
    %v193 = vadd.f32 %v170, %v191
    %194 = vset.pattern.permute.xlu0 65
    %195 = vperm.xlu0 %194, %v125
    %v196 = vpop.permute.xlu0 %195
    %198 = vset.pattern.permute.xlu0 65
    %199 = vperm.xlu0 %198, %v127
    %v200 = vpop.permute.xlu0 %199
    %v202 = vperm.slane %v145, 1
    %v203 = vadd.f32 %v196, %v202
    %v204 = vadd.f32 %v200, %v202
    %v205 = vmul.f32 %v203, 0.2
    %v206 = vmul.f32 %v204, 0.2
    %v207 = vmax.f32 %v203, %v205
    %v208 = vmax.f32 %v204, %v206
    %s209 = sld [smem:[#allocation9 + $0x1]]
    %v210 = vstv %s209
    %v211 = vmul.f32 %v210, %v207
    %v212 = vmul.f32 %v210, %v208
    %v213 = vadd.f32 %v192, %v211
    %v214 = vadd.f32 %v193, %v212
    %215 = vset.pattern.permute.xlu0 66
    %216 = vperm.xlu0 %215, %v125
    %v217 = vpop.permute.xlu0 %216
    %219 = vset.pattern.permute.xlu0 66
    %220 = vperm.xlu0 %219, %v127
    %v221 = vpop.permute.xlu0 %220
    %v223 = vperm.slane %v145, 2
    %v224 = vadd.f32 %v217, %v223
    %v225 = vadd.f32 %v221, %v223
    %v226 = vmul.f32 %v224, 0.2
    %v227 = vmul.f32 %v225, 0.2
    %v228 = vmax.f32 %v224, %v226
    %v229 = vmax.f32 %v225, %v227
    %s230 = sld [smem:[#allocation9 + $0x2]]
    %v231 = vstv %s230
    %v232 = vmul.f32 %v231, %v228
    %v233 = vmul.f32 %v231, %v229
    %v234 = vadd.f32 %v213, %v232
    %v235 = vadd.f32 %v214, %v233
    %236 = vset.pattern.permute.xlu0 67
    %237 = vperm.xlu0 %236, %v125
    %v238 = vpop.permute.xlu0 %237
    %240 = vset.pattern.permute.xlu0 67
    %241 = vperm.xlu0 %240, %v127
    %v242 = vpop.permute.xlu0 %241
    %v244 = vperm.slane %v145, 3
    %v245 = vadd.f32 %v238, %v244
    %v246 = vadd.f32 %v242, %v244
    %v247 = vmul.f32 %v245, 0.2
    %v248 = vmul.f32 %v246, 0.2
    %v249 = vmax.f32 %v245, %v247
    %v250 = vmax.f32 %v246, %v248
    %s251 = sld [smem:[#allocation9 + $0x3]]
    %v252 = vstv %s251
    %v253 = vmul.f32 %v252, %v249
    %v254 = vmul.f32 %v252, %v250
    %v255 = vadd.f32 %v234, %v253
    %v256 = vadd.f32 %v235, %v254
    %257 = vset.pattern.permute.xlu0 68
    %258 = vperm.xlu0 %257, %v125
    %v259 = vpop.permute.xlu0 %258
    %261 = vset.pattern.permute.xlu0 68
    %262 = vperm.xlu0 %261, %v127
    %v263 = vpop.permute.xlu0 %262
    %v265 = vperm.slane %v145, 4
    %v266 = vadd.f32 %v259, %v265
    %v267 = vadd.f32 %v263, %v265
    %v268 = vmul.f32 %v266, 0.2
    %v269 = vmul.f32 %v267, 0.2
    %v270 = vmax.f32 %v266, %v268
    %v271 = vmax.f32 %v267, %v269
    %s272 = sld [smem:[#allocation9 + $0x4]]
    %v273 = vstv %s272
    %v274 = vmul.f32 %v273, %v270
    %v275 = vmul.f32 %v273, %v271
    %v276 = vadd.f32 %v255, %v274
    %v277 = vadd.f32 %v256, %v275
    %278 = vset.pattern.permute.xlu0 69
    %279 = vperm.xlu0 %278, %v125
    %v280 = vpop.permute.xlu0 %279
    %282 = vset.pattern.permute.xlu0 69
    %283 = vperm.xlu0 %282, %v127
    %v284 = vpop.permute.xlu0 %283
    %v286 = vperm.slane %v145, 5
    %v287 = vadd.f32 %v280, %v286
    %v288 = vadd.f32 %v284, %v286
    %v289 = vmul.f32 %v287, 0.2
    %v290 = vmul.f32 %v288, 0.2
    %v291 = vmax.f32 %v287, %v289
    %v292 = vmax.f32 %v288, %v290
    %s293 = sld [smem:[#allocation9 + $0x5]]
    %v294 = vstv %s293
    %v295 = vmul.f32 %v294, %v291
    %v296 = vmul.f32 %v294, %v292
    %v297 = vadd.f32 %v276, %v295
    %v298 = vadd.f32 %v277, %v296
    %299 = vset.pattern.permute.xlu0 70
    %300 = vperm.xlu0 %299, %v125
    %v301 = vpop.permute.xlu0 %300
    %303 = vset.pattern.permute.xlu0 70
    %304 = vperm.xlu0 %303, %v127
    %v305 = vpop.permute.xlu0 %304
    %v307 = vperm.slane %v145, 6
    %v308 = vadd.f32 %v301, %v307
    %v309 = vadd.f32 %v305, %v307
    %v310 = vmul.f32 %v308, 0.2
    %v311 = vmul.f32 %v309, 0.2
    %v312 = vmax.f32 %v308, %v310
    %v313 = vmax.f32 %v309, %v311
    %s314 = sld [smem:[#allocation9 + $0x6]]
    %v315 = vstv %s314
    %v316 = vmul.f32 %v315, %v312
    %v317 = vmul.f32 %v315, %v313
    %v318 = vadd.f32 %v297, %v316
    %v319 = vadd.f32 %v298, %v317
    %320 = vset.pattern.permute.xlu0 71
    %321 = vperm.xlu0 %320, %v125
    %v322 = vpop.permute.xlu0 %321
    %324 = vset.pattern.permute.xlu0 71
    %325 = vperm.xlu0 %324, %v127
    %v326 = vpop.permute.xlu0 %325
    %v328 = vperm.slane %v145, 7
    %v329 = vadd.f32 %v322, %v328
    %v330 = vadd.f32 %v326, %v328
    %v331 = vmul.f32 %v329, 0.2
    %v332 = vmul.f32 %v330, 0.2
    %v333 = vmax.f32 %v329, %v331
    %v334 = vmax.f32 %v330, %v332
    %s335 = sld [smem:[#allocation9 + $0x7]]
    %v336 = vstv %s335
    %v337 = vmul.f32 %v336, %v333
    %v338 = vmul.f32 %v336, %v334
    %v339 = vadd.f32 %v318, %v337
    %v340 = vadd.f32 %v319, %v338
    %341 = vset.pattern.permute.xlu0 72
    %342 = vperm.xlu0 %341, %v125
    %v343 = vpop.permute.xlu0 %342
    %345 = vset.pattern.permute.xlu0 72
    %346 = vperm.xlu0 %345, %v127
    %v347 = vpop.permute.xlu0 %346
    %v349 = vperm.slane %v146, 0
    %v350 = vadd.f32 %v343, %v349
    %v351 = vadd.f32 %v347, %v349
    %v352 = vmul.f32 %v350, 0.2
    %v353 = vmul.f32 %v351, 0.2
    %v354 = vmax.f32 %v350, %v352
    %v355 = vmax.f32 %v351, %v353
    %s356 = sld [smem:[#allocation9 + $0x8]]
    %v357 = vstv %s356
    %v358 = vmul.f32 %v357, %v354
    %v359 = vmul.f32 %v357, %v355
    %v360 = vadd.f32 %v339, %v358
    %v361 = vadd.f32 %v340, %v359
    %362 = vset.pattern.permute.xlu0 73
    %363 = vperm.xlu0 %362, %v125
    %v364 = vpop.permute.xlu0 %363
    %366 = vset.pattern.permute.xlu0 73
    %367 = vperm.xlu0 %366, %v127
    %v368 = vpop.permute.xlu0 %367
    %v370 = vperm.slane %v146, 1
    %v371 = vadd.f32 %v364, %v370
    %v372 = vadd.f32 %v368, %v370
    %v373 = vmul.f32 %v371, 0.2
    %v374 = vmul.f32 %v372, 0.2
    %v375 = vmax.f32 %v371, %v373
    %v376 = vmax.f32 %v372, %v374
    %s377 = sld [smem:[#allocation9 + $0x9]]
    %v378 = vstv %s377
    %v379 = vmul.f32 %v378, %v375
    %v380 = vmul.f32 %v378, %v376
    %v381 = vadd.f32 %v360, %v379
    %v382 = vadd.f32 %v361, %v380
    %383 = vset.pattern.permute.xlu0 74
    %384 = vperm.xlu0 %383, %v125
    %v385 = vpop.permute.xlu0 %384
    %387 = vset.pattern.permute.xlu0 74
    %388 = vperm.xlu0 %387, %v127
    %v389 = vpop.permute.xlu0 %388
    %v391 = vperm.slane %v146, 2
    %v392 = vadd.f32 %v385, %v391
    %v393 = vadd.f32 %v389, %v391
    %v394 = vmul.f32 %v392, 0.2
    %v395 = vmul.f32 %v393, 0.2
    %v396 = vmax.f32 %v392, %v394
    %v397 = vmax.f32 %v393, %v395
    %s398 = sld [smem:[#allocation9 + $0xa]]
    %v399 = vstv %s398
    %v400 = vmul.f32 %v399, %v396
    %v401 = vmul.f32 %v399, %v397
    %v402 = vadd.f32 %v381, %v400
    %v403 = vadd.f32 %v382, %v401
    %404 = vset.pattern.permute.xlu0 75
    %405 = vperm.xlu0 %404, %v125
    %v406 = vpop.permute.xlu0 %405
    %408 = vset.pattern.permute.xlu0 75
    %409 = vperm.xlu0 %408, %v127
    %v410 = vpop.permute.xlu0 %409
    %v412 = vperm.slane %v146, 3
    %v413 = vadd.f32 %v406, %v412
    %v414 = vadd.f32 %v410, %v412
    %v415 = vmul.f32 %v413, 0.2
    %v416 = vmul.f32 %v414, 0.2
    %v417 = vmax.f32 %v413, %v415
    %v418 = vmax.f32 %v414, %v416
    %s419 = sld [smem:[#allocation9 + $0xb]]
    %v420 = vstv %s419
    %v421 = vmul.f32 %v420, %v417
    %v422 = vmul.f32 %v420, %v418
    %v423 = vadd.f32 %v402, %v421
    %v424 = vadd.f32 %v403, %v422
    %425 = vset.pattern.permute.xlu0 76
    %426 = vperm.xlu0 %425, %v125
    %v427 = vpop.permute.xlu0 %426
    %429 = vset.pattern.permute.xlu0 76
    %430 = vperm.xlu0 %429, %v127
    %v431 = vpop.permute.xlu0 %430
    %v433 = vperm.slane %v146, 4
    %v434 = vadd.f32 %v427, %v433
    %v435 = vadd.f32 %v431, %v433
    %v436 = vmul.f32 %v434, 0.2
    %v437 = vmul.f32 %v435, 0.2
    %v438 = vmax.f32 %v434, %v436
    %v439 = vmax.f32 %v435, %v437
    %s440 = sld [smem:[#allocation9 + $0xc]]
    %v441 = vstv %s440
    %v442 = vmul.f32 %v441, %v438
    %v443 = vmul.f32 %v441, %v439
    %v444 = vadd.f32 %v423, %v442
    %v445 = vadd.f32 %v424, %v443
    %446 = vset.pattern.permute.xlu0 77
    %447 = vperm.xlu0 %446, %v125
    %v448 = vpop.permute.xlu0 %447
    %450 = vset.pattern.permute.xlu0 77
    %451 = vperm.xlu0 %450, %v127
    %v452 = vpop.permute.xlu0 %451
    %v454 = vperm.slane %v146, 5
    %v455 = vadd.f32 %v448, %v454
    %v456 = vadd.f32 %v452, %v454
    %v457 = vmul.f32 %v455, 0.2
    %v458 = vmul.f32 %v456, 0.2
    %v459 = vmax.f32 %v455, %v457
    %v460 = vmax.f32 %v456, %v458
    %s461 = sld [smem:[#allocation9 + $0xd]]
    %v462 = vstv %s461
    %v463 = vmul.f32 %v462, %v459
    %v464 = vmul.f32 %v462, %v460
    %v465 = vadd.f32 %v444, %v463
    %v466 = vadd.f32 %v445, %v464
    %467 = vset.pattern.permute.xlu0 78
    %468 = vperm.xlu0 %467, %v125
    %v469 = vpop.permute.xlu0 %468
    %471 = vset.pattern.permute.xlu0 78
    %472 = vperm.xlu0 %471, %v127
    %v473 = vpop.permute.xlu0 %472
    %v475 = vperm.slane %v146, 6
    %v476 = vadd.f32 %v469, %v475
    %v477 = vadd.f32 %v473, %v475
    %v478 = vmul.f32 %v476, 0.2
    %v479 = vmul.f32 %v477, 0.2
    %v480 = vmax.f32 %v476, %v478
    %v481 = vmax.f32 %v477, %v479
    %s482 = sld [smem:[#allocation9 + $0xe]]
    %v483 = vstv %s482
    %v484 = vmul.f32 %v483, %v480
    %v485 = vmul.f32 %v483, %v481
    %v486 = vadd.f32 %v465, %v484
    %v487 = vadd.f32 %v466, %v485
    %488 = vset.pattern.permute.xlu0 79
    %489 = vperm.xlu0 %488, %v125
    %v490 = vpop.permute.xlu0 %489
    %492 = vset.pattern.permute.xlu0 79
    %493 = vperm.xlu0 %492, %v127
    %v494 = vpop.permute.xlu0 %493
    %v496 = vperm.slane %v146, 7
    %v497 = vadd.f32 %v490, %v496
    %v498 = vadd.f32 %v494, %v496
    %v499 = vmul.f32 %v497, 0.2
    %v500 = vmul.f32 %v498, 0.2
    %v501 = vmax.f32 %v497, %v499
    %v502 = vmax.f32 %v498, %v500
    %s503 = sld [smem:[#allocation9 + $0xf]]
    %v504 = vstv %s503
    %v505 = vmul.f32 %v504, %v501
    %v506 = vmul.f32 %v504, %v502
    %v507 = vadd.f32 %v486, %v505
    %v508 = vadd.f32 %v487, %v506
    %v509 = vsel %vm111, %v507, -inf
    %510 = vmax.xlane.f32.xlu0 %v509
    %v511 = vpop.xlane.xlu0 %510
    %v512 = vsel %vm111, %v508, -inf
    %513 = vmax.xlane.f32.xlu0 %v512
    %v514 = vpop.xlane.xlu0 %513
    %v515 = vsub.f32 %v507, %v511
    %v516 = vsub.f32 %v508, %v514
    %v517 = vmul.f32 %v515, 1.442695
    %v518 = vpow.pop %v517
    %v519 = vmul.f32 %v516, 1.442695
    %v520 = vpow.pop %v519
    %v521 = vsel %vm111, %v518, 0.0
    %522 = vadd.xlane.f32.xlu0 %v521
    %v523 = vpop.xlane.xlu0 %522
    %v524 = vsel %vm111, %v520, 0.0
    %525 = vadd.xlane.f32.xlu0 %v524
    %v526 = vpop.xlane.xlu0 %525
    %v527 = vrcp.pop %v523
    %v528 = vrcp.pop %v526
    %v529 = vpack.c.bf16 %v520, %v518
    %v532 = vunpack.c.l.b16 %v161
    %v533 = vunpack.c.l.b16 %v162
    %v534 = vpack.c.b16 %v533, %v532
    %v537 = vsel %vm111, %v529, 0
    %539 = vmatpush.bf16.msra.mxu0 0
    %540 = vmatpush.bf16.msra.mxu0 0
    %541 = vmatpush.bf16.msra.mxu0 0
    %542 = vmatpush.bf16.msra.mxu0 0
    %543 = vmatpush.bf16.msra.mxu0 0
    %544 = vmatpush.bf16.msra.mxu0 0
    %545 = vmatpush.bf16.msra.mxu0 0
    %546 = vmatpush.bf16.msra.mxu0 %v534
    %547 = vmatmul.bf16.gmra.mxu0 %v537
    %v548 = vpop.f32.mrf.mxu0
    %v549 = vadd.f32 0.0, %v548
    %v550 = vpop.f32.mrf.mxu0
    %v551 = vadd.f32 0.0, %v550
    %552 = vdwg.mxu0
    %v553 = vmul.f32 %v549, %v527
    %v554 = vmul.f32 %v551, %v528
    %555 = vst.msk [vmem:[#allocation2] sm:$0xff] %vm111, %v553
    %556 = vst.msk [vmem:[#allocation2 + $0x8] sm:$0xff] %vm111, %v554
    %557 = vset.pattern.permute.xlu0 80
    %558 = vperm.xlu0 %557, %v125
    %v559 = vpop.permute.xlu0 %558
    %561 = vset.pattern.permute.xlu0 80
    %562 = vperm.xlu0 %561, %v127
    %v563 = vpop.permute.xlu0 %562
    %v565 = vperm.slane %v147, 0
    %v566 = vadd.f32 %v559, %v565
    %v567 = vadd.f32 %v563, %v565
    %v568 = vmul.f32 %v566, 0.2
    %v569 = vmul.f32 %v567, 0.2
    %v570 = vmax.f32 %v566, %v568
    %v571 = vmax.f32 %v567, %v569
    %s572 = sld [smem:[#allocation9 + $0x80]]
    %v573 = vstv %s572
    %v574 = vmul.f32 %v573, %v570
    %v575 = vmul.f32 %v573, %v571
    %v576 = vadd.f32 %v169, %v574
    %v577 = vadd.f32 %v170, %v575
    %578 = vset.pattern.permute.xlu0 81
    %579 = vperm.xlu0 %578, %v125
    %v580 = vpop.permute.xlu0 %579
    %582 = vset.pattern.permute.xlu0 81
    %583 = vperm.xlu0 %582, %v127
    %v584 = vpop.permute.xlu0 %583
    %v586 = vperm.slane %v147, 1
    %v587 = vadd.f32 %v580, %v586
    %v588 = vadd.f32 %v584, %v586
    %v589 = vmul.f32 %v587, 0.2
    %v590 = vmul.f32 %v588, 0.2
    %v591 = vmax.f32 %v587, %v589
    %v592 = vmax.f32 %v588, %v590
    %s593 = sld [smem:[#allocation9 + $0x81]]
    %v594 = vstv %s593
    %v595 = vmul.f32 %v594, %v591
    %v596 = vmul.f32 %v594, %v592
    %v597 = vadd.f32 %v576, %v595
    %v598 = vadd.f32 %v577, %v596
    %599 = vset.pattern.permute.xlu0 82
    %600 = vperm.xlu0 %599, %v125
    %v601 = vpop.permute.xlu0 %600
    %603 = vset.pattern.permute.xlu0 82
    %604 = vperm.xlu0 %603, %v127
    %v605 = vpop.permute.xlu0 %604
    %v607 = vperm.slane %v147, 2
    %v608 = vadd.f32 %v601, %v607
    %v609 = vadd.f32 %v605, %v607
    %v610 = vmul.f32 %v608, 0.2
    %v611 = vmul.f32 %v609, 0.2
    %v612 = vmax.f32 %v608, %v610
    %v613 = vmax.f32 %v609, %v611
    %s614 = sld [smem:[#allocation9 + $0x82]]
    %v615 = vstv %s614
    %v616 = vmul.f32 %v615, %v612
    %v617 = vmul.f32 %v615, %v613
    %v618 = vadd.f32 %v597, %v616
    %v619 = vadd.f32 %v598, %v617
    %620 = vset.pattern.permute.xlu0 83
    %621 = vperm.xlu0 %620, %v125
    %v622 = vpop.permute.xlu0 %621
    %624 = vset.pattern.permute.xlu0 83
    %625 = vperm.xlu0 %624, %v127
    %v626 = vpop.permute.xlu0 %625
    %v628 = vperm.slane %v147, 3
    %v629 = vadd.f32 %v622, %v628
    %v630 = vadd.f32 %v626, %v628
    %v631 = vmul.f32 %v629, 0.2
    %v632 = vmul.f32 %v630, 0.2
    %v633 = vmax.f32 %v629, %v631
    %v634 = vmax.f32 %v630, %v632
    %s635 = sld [smem:[#allocation9 + $0x83]]
    %v636 = vstv %s635
    %v637 = vmul.f32 %v636, %v633
    %v638 = vmul.f32 %v636, %v634
    %v639 = vadd.f32 %v618, %v637
    %v640 = vadd.f32 %v619, %v638
    %641 = vset.pattern.permute.xlu0 84
    %642 = vperm.xlu0 %641, %v125
    %v643 = vpop.permute.xlu0 %642
    %645 = vset.pattern.permute.xlu0 84
    %646 = vperm.xlu0 %645, %v127
    %v647 = vpop.permute.xlu0 %646
    %v649 = vperm.slane %v147, 4
    %v650 = vadd.f32 %v643, %v649
    %v651 = vadd.f32 %v647, %v649
    %v652 = vmul.f32 %v650, 0.2
    %v653 = vmul.f32 %v651, 0.2
    %v654 = vmax.f32 %v650, %v652
    %v655 = vmax.f32 %v651, %v653
    %s656 = sld [smem:[#allocation9 + $0x84]]
    %v657 = vstv %s656
    %v658 = vmul.f32 %v657, %v654
    %v659 = vmul.f32 %v657, %v655
    %v660 = vadd.f32 %v639, %v658
    %v661 = vadd.f32 %v640, %v659
    %662 = vset.pattern.permute.xlu0 85
    %663 = vperm.xlu0 %662, %v125
    %v664 = vpop.permute.xlu0 %663
    %666 = vset.pattern.permute.xlu0 85
    %667 = vperm.xlu0 %666, %v127
    %v668 = vpop.permute.xlu0 %667
    %v670 = vperm.slane %v147, 5
    %v671 = vadd.f32 %v664, %v670
    %v672 = vadd.f32 %v668, %v670
    %v673 = vmul.f32 %v671, 0.2
    %v674 = vmul.f32 %v672, 0.2
    %v675 = vmax.f32 %v671, %v673
    %v676 = vmax.f32 %v672, %v674
    %s677 = sld [smem:[#allocation9 + $0x85]]
    %v678 = vstv %s677
    %v679 = vmul.f32 %v678, %v675
    %v680 = vmul.f32 %v678, %v676
    %v681 = vadd.f32 %v660, %v679
    %v682 = vadd.f32 %v661, %v680
    %683 = vset.pattern.permute.xlu0 86
    %684 = vperm.xlu0 %683, %v125
    %v685 = vpop.permute.xlu0 %684
    %687 = vset.pattern.permute.xlu0 86
    %688 = vperm.xlu0 %687, %v127
    %v689 = vpop.permute.xlu0 %688
    %v691 = vperm.slane %v147, 6
    %v692 = vadd.f32 %v685, %v691
    %v693 = vadd.f32 %v689, %v691
    %v694 = vmul.f32 %v692, 0.2
    %v695 = vmul.f32 %v693, 0.2
    %v696 = vmax.f32 %v692, %v694
    %v697 = vmax.f32 %v693, %v695
    %s698 = sld [smem:[#allocation9 + $0x86]]
    %v699 = vstv %s698
    %v700 = vmul.f32 %v699, %v696
    %v701 = vmul.f32 %v699, %v697
    %v702 = vadd.f32 %v681, %v700
    %v703 = vadd.f32 %v682, %v701
    %704 = vset.pattern.permute.xlu0 87
    %705 = vperm.xlu0 %704, %v125
    %v706 = vpop.permute.xlu0 %705
    %708 = vset.pattern.permute.xlu0 87
    %709 = vperm.xlu0 %708, %v127
    %v710 = vpop.permute.xlu0 %709
    %v712 = vperm.slane %v147, 7
    %v713 = vadd.f32 %v706, %v712
    %v714 = vadd.f32 %v710, %v712
    %v715 = vmul.f32 %v713, 0.2
    %v716 = vmul.f32 %v714, 0.2
    %v717 = vmax.f32 %v713, %v715
    %v718 = vmax.f32 %v714, %v716
    %s719 = sld [smem:[#allocation9 + $0x87]]
    %v720 = vstv %s719
    %v721 = vmul.f32 %v720, %v717
    %v722 = vmul.f32 %v720, %v718
    %v723 = vadd.f32 %v702, %v721
    %v724 = vadd.f32 %v703, %v722
    %725 = vset.pattern.permute.xlu0 88
    %726 = vperm.xlu0 %725, %v125
    %v727 = vpop.permute.xlu0 %726
    %729 = vset.pattern.permute.xlu0 88
    %730 = vperm.xlu0 %729, %v127
    %v731 = vpop.permute.xlu0 %730
    %v733 = vperm.slane %v148, 0
    %v734 = vadd.f32 %v727, %v733
    %v735 = vadd.f32 %v731, %v733
    %v736 = vmul.f32 %v734, 0.2
    %v737 = vmul.f32 %v735, 0.2
    %v738 = vmax.f32 %v734, %v736
    %v739 = vmax.f32 %v735, %v737
    %s740 = sld [smem:[#allocation9 + $0x88]]
    %v741 = vstv %s740
    %v742 = vmul.f32 %v741, %v738
    %v743 = vmul.f32 %v741, %v739
    %v744 = vadd.f32 %v723, %v742
    %v745 = vadd.f32 %v724, %v743
    %746 = vset.pattern.permute.xlu0 89
    %747 = vperm.xlu0 %746, %v125
    %v748 = vpop.permute.xlu0 %747
    %750 = vset.pattern.permute.xlu0 89
    %751 = vperm.xlu0 %750, %v127
    %v752 = vpop.permute.xlu0 %751
    %v754 = vperm.slane %v148, 1
    %v755 = vadd.f32 %v748, %v754
    %v756 = vadd.f32 %v752, %v754
    %v757 = vmul.f32 %v755, 0.2
    %v758 = vmul.f32 %v756, 0.2
    %v759 = vmax.f32 %v755, %v757
    %v760 = vmax.f32 %v756, %v758
    %s761 = sld [smem:[#allocation9 + $0x89]]
    %v762 = vstv %s761
    %v763 = vmul.f32 %v762, %v759
    %v764 = vmul.f32 %v762, %v760
    %v765 = vadd.f32 %v744, %v763
    %v766 = vadd.f32 %v745, %v764
    %767 = vset.pattern.permute.xlu0 90
    %768 = vperm.xlu0 %767, %v125
    %v769 = vpop.permute.xlu0 %768
    %771 = vset.pattern.permute.xlu0 90
    %772 = vperm.xlu0 %771, %v127
    %v773 = vpop.permute.xlu0 %772
    %v775 = vperm.slane %v148, 2
    %v776 = vadd.f32 %v769, %v775
    %v777 = vadd.f32 %v773, %v775
    %v778 = vmul.f32 %v776, 0.2
    %v779 = vmul.f32 %v777, 0.2
    %v780 = vmax.f32 %v776, %v778
    %v781 = vmax.f32 %v777, %v779
    %s782 = sld [smem:[#allocation9 + $0x8a]]
    %v783 = vstv %s782
    %v784 = vmul.f32 %v783, %v780
    %v785 = vmul.f32 %v783, %v781
    %v786 = vadd.f32 %v765, %v784
    %v787 = vadd.f32 %v766, %v785
    %788 = vset.pattern.permute.xlu0 91
    %789 = vperm.xlu0 %788, %v125
    %v790 = vpop.permute.xlu0 %789
    %792 = vset.pattern.permute.xlu0 91
    %793 = vperm.xlu0 %792, %v127
    %v794 = vpop.permute.xlu0 %793
    %v796 = vperm.slane %v148, 3
    %v797 = vadd.f32 %v790, %v796
    %v798 = vadd.f32 %v794, %v796
    %v799 = vmul.f32 %v797, 0.2
    %v800 = vmul.f32 %v798, 0.2
    %v801 = vmax.f32 %v797, %v799
    %v802 = vmax.f32 %v798, %v800
    %s803 = sld [smem:[#allocation9 + $0x8b]]
    %v804 = vstv %s803
    %v805 = vmul.f32 %v804, %v801
    %v806 = vmul.f32 %v804, %v802
    %v807 = vadd.f32 %v786, %v805
    %v808 = vadd.f32 %v787, %v806
    %809 = vset.pattern.permute.xlu0 92
    %810 = vperm.xlu0 %809, %v125
    %v811 = vpop.permute.xlu0 %810
    %813 = vset.pattern.permute.xlu0 92
    %814 = vperm.xlu0 %813, %v127
    %v815 = vpop.permute.xlu0 %814
    %v817 = vperm.slane %v148, 4
    %v818 = vadd.f32 %v811, %v817
    %v819 = vadd.f32 %v815, %v817
    %v820 = vmul.f32 %v818, 0.2
    %v821 = vmul.f32 %v819, 0.2
    %v822 = vmax.f32 %v818, %v820
    %v823 = vmax.f32 %v819, %v821
    %s824 = sld [smem:[#allocation9 + $0x8c]]
    %v825 = vstv %s824
    %v826 = vmul.f32 %v825, %v822
    %v827 = vmul.f32 %v825, %v823
    %v828 = vadd.f32 %v807, %v826
    %v829 = vadd.f32 %v808, %v827
    %830 = vset.pattern.permute.xlu0 93
    %831 = vperm.xlu0 %830, %v125
    %v832 = vpop.permute.xlu0 %831
    %834 = vset.pattern.permute.xlu0 93
    %835 = vperm.xlu0 %834, %v127
    %v836 = vpop.permute.xlu0 %835
    %v838 = vperm.slane %v148, 5
    %v839 = vadd.f32 %v832, %v838
    %v840 = vadd.f32 %v836, %v838
    %v841 = vmul.f32 %v839, 0.2
    %v842 = vmul.f32 %v840, 0.2
    %v843 = vmax.f32 %v839, %v841
    %v844 = vmax.f32 %v840, %v842
    %s845 = sld [smem:[#allocation9 + $0x8d]]
    %v846 = vstv %s845
    %v847 = vmul.f32 %v846, %v843
    %v848 = vmul.f32 %v846, %v844
    %v849 = vadd.f32 %v828, %v847
    %v850 = vadd.f32 %v829, %v848
    %851 = vset.pattern.permute.xlu0 94
    %852 = vperm.xlu0 %851, %v125
    %v853 = vpop.permute.xlu0 %852
    %855 = vset.pattern.permute.xlu0 94
    %856 = vperm.xlu0 %855, %v127
    %v857 = vpop.permute.xlu0 %856
    %v859 = vperm.slane %v148, 6
    %v860 = vadd.f32 %v853, %v859
    %v861 = vadd.f32 %v857, %v859
    %v862 = vmul.f32 %v860, 0.2
    %v863 = vmul.f32 %v861, 0.2
    %v864 = vmax.f32 %v860, %v862
    %v865 = vmax.f32 %v861, %v863
    %s866 = sld [smem:[#allocation9 + $0x8e]]
    %v867 = vstv %s866
    %v868 = vmul.f32 %v867, %v864
    %v869 = vmul.f32 %v867, %v865
    %v870 = vadd.f32 %v849, %v868
    %v871 = vadd.f32 %v850, %v869
    %872 = vset.pattern.permute.xlu0 95
    %873 = vperm.xlu0 %872, %v125
    %v874 = vpop.permute.xlu0 %873
    %876 = vset.pattern.permute.xlu0 95
    %877 = vperm.xlu0 %876, %v127
    %v878 = vpop.permute.xlu0 %877
    %v880 = vperm.slane %v148, 7
    %v881 = vadd.f32 %v874, %v880
    %v882 = vadd.f32 %v878, %v880
    %v883 = vmul.f32 %v881, 0.2
    %v884 = vmul.f32 %v882, 0.2
    %v885 = vmax.f32 %v881, %v883
    %v886 = vmax.f32 %v882, %v884
    %s887 = sld [smem:[#allocation9 + $0x8f]]
    %v888 = vstv %s887
    %v889 = vmul.f32 %v888, %v885
    %v890 = vmul.f32 %v888, %v886
    %v891 = vadd.f32 %v870, %v889
    %v892 = vadd.f32 %v871, %v890
    %v893 = vsel %vm111, %v891, -inf
    %894 = vmax.xlane.f32.xlu0 %v893
    %v895 = vpop.xlane.xlu0 %894
    %v896 = vsel %vm111, %v892, -inf
    %897 = vmax.xlane.f32.xlu0 %v896
    %v898 = vpop.xlane.xlu0 %897
    %v899 = vsub.f32 %v891, %v895
    %v900 = vsub.f32 %v892, %v898
    %v901 = vmul.f32 %v899, 1.442695
    %v902 = vpow.pop %v901
    %v903 = vmul.f32 %v900, 1.442695
    %v904 = vpow.pop %v903
    %v905 = vsel %vm111, %v902, 0.0
    %906 = vadd.xlane.f32.xlu0 %v905
    %v907 = vpop.xlane.xlu0 %906
    %v908 = vsel %vm111, %v904, 0.0
    %909 = vadd.xlane.f32.xlu0 %v908
    %v910 = vpop.xlane.xlu0 %909
    %v911 = vrcp.pop %v907
    %v912 = vrcp.pop %v910
    %v913 = vpack.c.bf16 %v904, %v902
    %914 = vrot.lane.b32.xlu0 %v534, 112
    %v915 = vpop.permute.xlu0 %914
    %v918 = vsel %vm111, %v913, 0
    %920 = vmatpush.bf16.msra.mxu0 0
    %921 = vmatpush.bf16.msra.mxu0 0
    %922 = vmatpush.bf16.msra.mxu0 0
    %923 = vmatpush.bf16.msra.mxu0 0
    %924 = vmatpush.bf16.msra.mxu0 0
    %925 = vmatpush.bf16.msra.mxu0 0
    %926 = vmatpush.bf16.msra.mxu0 0
    %927 = vmatpush.bf16.msra.mxu0 %v915
    %928 = vmatmul.bf16.gmra.mxu0 %v918
    %v929 = vpop.f32.mrf.mxu0
    %v930 = vadd.f32 0.0, %v929
    %v931 = vpop.f32.mrf.mxu0
    %v932 = vadd.f32 0.0, %v931
    %933 = vdwg.mxu0
    %v934 = vmul.f32 %v930, %v911
    %v935 = vmul.f32 %v932, %v912
    %938 = vrot.lane.b32.xlu0 %v934, 16
    %v939 = vpop.permute.xlu0 %938
    %940 = vrot.lane.b32.xlu0 %v935, 16
    %v941 = vpop.permute.xlu0 %940
    %vm944 = vcmask 261248
    %945 = vst.msk [vmem:[#allocation2] sm:$0xff] %vm944, %v939
    %946 = vst.msk [vmem:[#allocation2 + $0x8] sm:$0xff] %vm944, %v941
    %947 = vset.pattern.permute.xlu0 96
    %948 = vperm.xlu0 %947, %v125
    %v949 = vpop.permute.xlu0 %948
    %951 = vset.pattern.permute.xlu0 96
    %952 = vperm.xlu0 %951, %v127
    %v953 = vpop.permute.xlu0 %952
    %v955 = vperm.slane %v149, 0
    %v956 = vadd.f32 %v949, %v955
    %v957 = vadd.f32 %v953, %v955
    %v958 = vmul.f32 %v956, 0.2
    %v959 = vmul.f32 %v957, 0.2
    %v960 = vmax.f32 %v956, %v958
    %v961 = vmax.f32 %v957, %v959
    %s962 = sld [smem:[#allocation9 + $0x100]]
    %v963 = vstv %s962
    %v964 = vmul.f32 %v963, %v960
    %v965 = vmul.f32 %v963, %v961
    %v966 = vadd.f32 %v169, %v964
    %v967 = vadd.f32 %v170, %v965
    %968 = vset.pattern.permute.xlu0 97
    %969 = vperm.xlu0 %968, %v125
    %v970 = vpop.permute.xlu0 %969
    %972 = vset.pattern.permute.xlu0 97
    %973 = vperm.xlu0 %972, %v127
    %v974 = vpop.permute.xlu0 %973
    %v976 = vperm.slane %v149, 1
    %v977 = vadd.f32 %v970, %v976
    %v978 = vadd.f32 %v974, %v976
    %v979 = vmul.f32 %v977, 0.2
    %v980 = vmul.f32 %v978, 0.2
    %v981 = vmax.f32 %v977, %v979
    %v982 = vmax.f32 %v978, %v980
    %s983 = sld [smem:[#allocation9 + $0x101]]
    %v984 = vstv %s983
    %v985 = vmul.f32 %v984, %v981
    %v986 = vmul.f32 %v984, %v982
    %v987 = vadd.f32 %v966, %v985
    %v988 = vadd.f32 %v967, %v986
    %989 = vset.pattern.permute.xlu0 98
    %990 = vperm.xlu0 %989, %v125
    %v991 = vpop.permute.xlu0 %990
    %993 = vset.pattern.permute.xlu0 98
    %994 = vperm.xlu0 %993, %v127
    %v995 = vpop.permute.xlu0 %994
    %v997 = vperm.slane %v149, 2
    %v998 = vadd.f32 %v991, %v997
    %v999 = vadd.f32 %v995, %v997
    %v1000 = vmul.f32 %v998, 0.2
    %v1001 = vmul.f32 %v999, 0.2
    %v1002 = vmax.f32 %v998, %v1000
    %v1003 = vmax.f32 %v999, %v1001
    %s1004 = sld [smem:[#allocation9 + $0x102]]
    %v1005 = vstv %s1004
    %v1006 = vmul.f32 %v1005, %v1002
    %v1007 = vmul.f32 %v1005, %v1003
    %v1008 = vadd.f32 %v987, %v1006
    %v1009 = vadd.f32 %v988, %v1007
    %1010 = vset.pattern.permute.xlu0 99
    %1011 = vperm.xlu0 %1010, %v125
    %v1012 = vpop.permute.xlu0 %1011
    %1014 = vset.pattern.permute.xlu0 99
    %1015 = vperm.xlu0 %1014, %v127
    %v1016 = vpop.permute.xlu0 %1015
    %v1018 = vperm.slane %v149, 3
    %v1019 = vadd.f32 %v1012, %v1018
    %v1020 = vadd.f32 %v1016, %v1018
    %v1021 = vmul.f32 %v1019, 0.2
    %v1022 = vmul.f32 %v1020, 0.2
    %v1023 = vmax.f32 %v1019, %v1021
    %v1024 = vmax.f32 %v1020, %v1022
    %s1025 = sld [smem:[#allocation9 + $0x103]]
    %v1026 = vstv %s1025
    %v1027 = vmul.f32 %v1026, %v1023
    %v1028 = vmul.f32 %v1026, %v1024
    %v1029 = vadd.f32 %v1008, %v1027
    %v1030 = vadd.f32 %v1009, %v1028
    %1031 = vset.pattern.permute.xlu0 100
    %1032 = vperm.xlu0 %1031, %v125
    %v1033 = vpop.permute.xlu0 %1032
    %1035 = vset.pattern.permute.xlu0 100
    %1036 = vperm.xlu0 %1035, %v127
    %v1037 = vpop.permute.xlu0 %1036
    %v1039 = vperm.slane %v149, 4
    %v1040 = vadd.f32 %v1033, %v1039
    %v1041 = vadd.f32 %v1037, %v1039
    %v1042 = vmul.f32 %v1040, 0.2
    %v1043 = vmul.f32 %v1041, 0.2
    %v1044 = vmax.f32 %v1040, %v1042
    %v1045 = vmax.f32 %v1041, %v1043
    %s1046 = sld [smem:[#allocation9 + $0x104]]
    %v1047 = vstv %s1046
    %v1048 = vmul.f32 %v1047, %v1044
    %v1049 = vmul.f32 %v1047, %v1045
    %v1050 = vadd.f32 %v1029, %v1048
    %v1051 = vadd.f32 %v1030, %v1049
    %1052 = vset.pattern.permute.xlu0 101
    %1053 = vperm.xlu0 %1052, %v125
    %v1054 = vpop.permute.xlu0 %1053
    %1056 = vset.pattern.permute.xlu0 101
    %1057 = vperm.xlu0 %1056, %v127
    %v1058 = vpop.permute.xlu0 %1057
    %v1060 = vperm.slane %v149, 5
    %v1061 = vadd.f32 %v1054, %v1060
    %v1062 = vadd.f32 %v1058, %v1060
    %v1063 = vmul.f32 %v1061, 0.2
    %v1064 = vmul.f32 %v1062, 0.2
    %v1065 = vmax.f32 %v1061, %v1063
    %v1066 = vmax.f32 %v1062, %v1064
    %s1067 = sld [smem:[#allocation9 + $0x105]]
    %v1068 = vstv %s1067
    %v1069 = vmul.f32 %v1068, %v1065
    %v1070 = vmul.f32 %v1068, %v1066
    %v1071 = vadd.f32 %v1050, %v1069
    %v1072 = vadd.f32 %v1051, %v1070
    %1073 = vset.pattern.permute.xlu0 102
    %1074 = vperm.xlu0 %1073, %v125
    %v1075 = vpop.permute.xlu0 %1074
    %1077 = vset.pattern.permute.xlu0 102
    %1078 = vperm.xlu0 %1077, %v127
    %v1079 = vpop.permute.xlu0 %1078
    %v1081 = vperm.slane %v149, 6
    %v1082 = vadd.f32 %v1075, %v1081
    %v1083 = vadd.f32 %v1079, %v1081
    %v1084 = vmul.f32 %v1082, 0.2
    %v1085 = vmul.f32 %v1083, 0.2
    %v1086 = vmax.f32 %v1082, %v1084
    %v1087 = vmax.f32 %v1083, %v1085
    %s1088 = sld [smem:[#allocation9 + $0x106]]
    %v1089 = vstv %s1088
    %v1090 = vmul.f32 %v1089, %v1086
    %v1091 = vmul.f32 %v1089, %v1087
    %v1092 = vadd.f32 %v1071, %v1090
    %v1093 = vadd.f32 %v1072, %v1091
    %1094 = vset.pattern.permute.xlu0 103
    %1095 = vperm.xlu0 %1094, %v125
    %v1096 = vpop.permute.xlu0 %1095
    %1098 = vset.pattern.permute.xlu0 103
    %1099 = vperm.xlu0 %1098, %v127
    %v1100 = vpop.permute.xlu0 %1099
    %v1102 = vperm.slane %v149, 7
    %v1103 = vadd.f32 %v1096, %v1102
    %v1104 = vadd.f32 %v1100, %v1102
    %v1105 = vmul.f32 %v1103, 0.2
    %v1106 = vmul.f32 %v1104, 0.2
    %v1107 = vmax.f32 %v1103, %v1105
    %v1108 = vmax.f32 %v1104, %v1106
    %s1109 = sld [smem:[#allocation9 + $0x107]]
    %v1110 = vstv %s1109
    %v1111 = vmul.f32 %v1110, %v1107
    %v1112 = vmul.f32 %v1110, %v1108
    %v1113 = vadd.f32 %v1092, %v1111
    %v1114 = vadd.f32 %v1093, %v1112
    %1115 = vset.pattern.permute.xlu0 104
    %1116 = vperm.xlu0 %1115, %v125
    %v1117 = vpop.permute.xlu0 %1116
    %1119 = vset.pattern.permute.xlu0 104
    %1120 = vperm.xlu0 %1119, %v127
    %v1121 = vpop.permute.xlu0 %1120
    %v1123 = vperm.slane %v150, 0
    %v1124 = vadd.f32 %v1117, %v1123
    %v1125 = vadd.f32 %v1121, %v1123
    %v1126 = vmul.f32 %v1124, 0.2
    %v1127 = vmul.f32 %v1125, 0.2
    %v1128 = vmax.f32 %v1124, %v1126
    %v1129 = vmax.f32 %v1125, %v1127
    %s1130 = sld [smem:[#allocation9 + $0x108]]
    %v1131 = vstv %s1130
    %v1132 = vmul.f32 %v1131, %v1128
    %v1133 = vmul.f32 %v1131, %v1129
    %v1134 = vadd.f32 %v1113, %v1132
    %v1135 = vadd.f32 %v1114, %v1133
    %1136 = vset.pattern.permute.xlu0 105
    %1137 = vperm.xlu0 %1136, %v125
    %v1138 = vpop.permute.xlu0 %1137
    %1140 = vset.pattern.permute.xlu0 105
    %1141 = vperm.xlu0 %1140, %v127
    %v1142 = vpop.permute.xlu0 %1141
    %v1144 = vperm.slane %v150, 1
    %v1145 = vadd.f32 %v1138, %v1144
    %v1146 = vadd.f32 %v1142, %v1144
    %v1147 = vmul.f32 %v1145, 0.2
    %v1148 = vmul.f32 %v1146, 0.2
    %v1149 = vmax.f32 %v1145, %v1147
    %v1150 = vmax.f32 %v1146, %v1148
    %s1151 = sld [smem:[#allocation9 + $0x109]]
    %v1152 = vstv %s1151
    %v1153 = vmul.f32 %v1152, %v1149
    %v1154 = vmul.f32 %v1152, %v1150
    %v1155 = vadd.f32 %v1134, %v1153
    %v1156 = vadd.f32 %v1135, %v1154
    %1157 = vset.pattern.permute.xlu0 106
    %1158 = vperm.xlu0 %1157, %v125
    %v1159 = vpop.permute.xlu0 %1158
    %1161 = vset.pattern.permute.xlu0 106
    %1162 = vperm.xlu0 %1161, %v127
    %v1163 = vpop.permute.xlu0 %1162
    %v1165 = vperm.slane %v150, 2
    %v1166 = vadd.f32 %v1159, %v1165
    %v1167 = vadd.f32 %v1163, %v1165
    %v1168 = vmul.f32 %v1166, 0.2
    %v1169 = vmul.f32 %v1167, 0.2
    %v1170 = vmax.f32 %v1166, %v1168
    %v1171 = vmax.f32 %v1167, %v1169
    %s1172 = sld [smem:[#allocation9 + $0x10a]]
    %v1173 = vstv %s1172
    %v1174 = vmul.f32 %v1173, %v1170
    %v1175 = vmul.f32 %v1173, %v1171
    %v1176 = vadd.f32 %v1155, %v1174
    %v1177 = vadd.f32 %v1156, %v1175
    %1178 = vset.pattern.permute.xlu0 107
    %1179 = vperm.xlu0 %1178, %v125
    %v1180 = vpop.permute.xlu0 %1179
    %1182 = vset.pattern.permute.xlu0 107
    %1183 = vperm.xlu0 %1182, %v127
    %v1184 = vpop.permute.xlu0 %1183
    %v1186 = vperm.slane %v150, 3
    %v1187 = vadd.f32 %v1180, %v1186
    %v1188 = vadd.f32 %v1184, %v1186
    %v1189 = vmul.f32 %v1187, 0.2
    %v1190 = vmul.f32 %v1188, 0.2
    %v1191 = vmax.f32 %v1187, %v1189
    %v1192 = vmax.f32 %v1188, %v1190
    %s1193 = sld [smem:[#allocation9 + $0x10b]]
    %v1194 = vstv %s1193
    %v1195 = vmul.f32 %v1194, %v1191
    %v1196 = vmul.f32 %v1194, %v1192
    %v1197 = vadd.f32 %v1176, %v1195
    %v1198 = vadd.f32 %v1177, %v1196
    %1199 = vset.pattern.permute.xlu0 108
    %1200 = vperm.xlu0 %1199, %v125
    %v1201 = vpop.permute.xlu0 %1200
    %1203 = vset.pattern.permute.xlu0 108
    %1204 = vperm.xlu0 %1203, %v127
    %v1205 = vpop.permute.xlu0 %1204
    %v1207 = vperm.slane %v150, 4
    %v1208 = vadd.f32 %v1201, %v1207
    %v1209 = vadd.f32 %v1205, %v1207
    %v1210 = vmul.f32 %v1208, 0.2
    %v1211 = vmul.f32 %v1209, 0.2
    %v1212 = vmax.f32 %v1208, %v1210
    %v1213 = vmax.f32 %v1209, %v1211
    %s1214 = sld [smem:[#allocation9 + $0x10c]]
    %v1215 = vstv %s1214
    %v1216 = vmul.f32 %v1215, %v1212
    %v1217 = vmul.f32 %v1215, %v1213
    %v1218 = vadd.f32 %v1197, %v1216
    %v1219 = vadd.f32 %v1198, %v1217
    %1220 = vset.pattern.permute.xlu0 109
    %1221 = vperm.xlu0 %1220, %v125
    %v1222 = vpop.permute.xlu0 %1221
    %1224 = vset.pattern.permute.xlu0 109
    %1225 = vperm.xlu0 %1224, %v127
    %v1226 = vpop.permute.xlu0 %1225
    %v1228 = vperm.slane %v150, 5
    %v1229 = vadd.f32 %v1222, %v1228
    %v1230 = vadd.f32 %v1226, %v1228
    %v1231 = vmul.f32 %v1229, 0.2
    %v1232 = vmul.f32 %v1230, 0.2
    %v1233 = vmax.f32 %v1229, %v1231
    %v1234 = vmax.f32 %v1230, %v1232
    %s1235 = sld [smem:[#allocation9 + $0x10d]]
    %v1236 = vstv %s1235
    %v1237 = vmul.f32 %v1236, %v1233
    %v1238 = vmul.f32 %v1236, %v1234
    %v1239 = vadd.f32 %v1218, %v1237
    %v1240 = vadd.f32 %v1219, %v1238
    %1241 = vset.pattern.permute.xlu0 110
    %1242 = vperm.xlu0 %1241, %v125
    %v1243 = vpop.permute.xlu0 %1242
    %1245 = vset.pattern.permute.xlu0 110
    %1246 = vperm.xlu0 %1245, %v127
    %v1247 = vpop.permute.xlu0 %1246
    %v1249 = vperm.slane %v150, 6
    %v1250 = vadd.f32 %v1243, %v1249
    %v1251 = vadd.f32 %v1247, %v1249
    %v1252 = vmul.f32 %v1250, 0.2
    %v1253 = vmul.f32 %v1251, 0.2
    %v1254 = vmax.f32 %v1250, %v1252
    %v1255 = vmax.f32 %v1251, %v1253
    %s1256 = sld [smem:[#allocation9 + $0x10e]]
    %v1257 = vstv %s1256
    %v1258 = vmul.f32 %v1257, %v1254
    %v1259 = vmul.f32 %v1257, %v1255
    %v1260 = vadd.f32 %v1239, %v1258
    %v1261 = vadd.f32 %v1240, %v1259
    %1262 = vset.pattern.permute.xlu0 111
    %1263 = vperm.xlu0 %1262, %v125
    %v1264 = vpop.permute.xlu0 %1263
    %1266 = vset.pattern.permute.xlu0 111
    %1267 = vperm.xlu0 %1266, %v127
    %v1268 = vpop.permute.xlu0 %1267
    %v1270 = vperm.slane %v150, 7
    %v1271 = vadd.f32 %v1264, %v1270
    %v1272 = vadd.f32 %v1268, %v1270
    %v1273 = vmul.f32 %v1271, 0.2
    %v1274 = vmul.f32 %v1272, 0.2
    %v1275 = vmax.f32 %v1271, %v1273
    %v1276 = vmax.f32 %v1272, %v1274
    %s1277 = sld [smem:[#allocation9 + $0x10f]]
    %v1278 = vstv %s1277
    %v1279 = vmul.f32 %v1278, %v1275
    %v1280 = vmul.f32 %v1278, %v1276
    %v1281 = vadd.f32 %v1260, %v1279
    %v1282 = vadd.f32 %v1261, %v1280
    %v1283 = vsel %vm111, %v1281, -inf
    %1284 = vmax.xlane.f32.xlu0 %v1283
    %v1285 = vpop.xlane.xlu0 %1284
    %v1286 = vsel %vm111, %v1282, -inf
    %1287 = vmax.xlane.f32.xlu0 %v1286
    %v1288 = vpop.xlane.xlu0 %1287
    %v1289 = vsub.f32 %v1281, %v1285
    %v1290 = vsub.f32 %v1282, %v1288
    %v1291 = vmul.f32 %v1289, 1.442695
    %v1292 = vpow.pop %v1291
    %v1293 = vmul.f32 %v1290, 1.442695
    %v1294 = vpow.pop %v1293
    %v1295 = vsel %vm111, %v1292, 0.0
    %1296 = vadd.xlane.f32.xlu0 %v1295
    %v1297 = vpop.xlane.xlu0 %1296
    %v1298 = vsel %vm111, %v1294, 0.0
    %1299 = vadd.xlane.f32.xlu0 %v1298
    %v1300 = vpop.xlane.xlu0 %1299
    %v1301 = vrcp.pop %v1297
    %v1302 = vrcp.pop %v1300
    %v1303 = vpack.c.bf16 %v1294, %v1292
    %1304 = vrot.lane.b32.xlu0 %v534, 96
    %v1305 = vpop.permute.xlu0 %1304
    %v1308 = vsel %vm111, %v1303, 0
    %1310 = vmatpush.bf16.msra.mxu0 0
    %1311 = vmatpush.bf16.msra.mxu0 0
    %1312 = vmatpush.bf16.msra.mxu0 0
    %1313 = vmatpush.bf16.msra.mxu0 0
    %1314 = vmatpush.bf16.msra.mxu0 0
    %1315 = vmatpush.bf16.msra.mxu0 0
    %1316 = vmatpush.bf16.msra.mxu0 0
    %1317 = vmatpush.bf16.msra.mxu0 %v1305
    %1318 = vmatmul.bf16.gmra.mxu0 %v1308
    %v1319 = vpop.f32.mrf.mxu0
    %v1320 = vadd.f32 0.0, %v1319
    %v1321 = vpop.f32.mrf.mxu0
    %v1322 = vadd.f32 0.0, %v1321
    %1323 = vdwg.mxu0
    %v1324 = vmul.f32 %v1320, %v1301
    %v1325 = vmul.f32 %v1322, %v1302
    %1328 = vrot.lane.b32.xlu0 %v1324, 32
    %v1329 = vpop.permute.xlu0 %1328
    %1330 = vrot.lane.b32.xlu0 %v1325, 32
    %v1331 = vpop.permute.xlu0 %1330
    %vm1334 = vcmask 392448
    %1335 = vst.msk [vmem:[#allocation2] sm:$0xff] %vm1334, %v1329
    %1336 = vst.msk [vmem:[#allocation2 + $0x8] sm:$0xff] %vm1334, %v1331
    %1337 = vset.pattern.permute.xlu0 112
    %1338 = vperm.xlu0 %1337, %v125
    %v1339 = vpop.permute.xlu0 %1338
    %1341 = vset.pattern.permute.xlu0 112
    %1342 = vperm.xlu0 %1341, %v127
    %v1343 = vpop.permute.xlu0 %1342
    %v1345 = vperm.slane %v151, 0
    %v1346 = vadd.f32 %v1339, %v1345
    %v1347 = vadd.f32 %v1343, %v1345
    %v1348 = vmul.f32 %v1346, 0.2
    %v1349 = vmul.f32 %v1347, 0.2
    %v1350 = vmax.f32 %v1346, %v1348
    %v1351 = vmax.f32 %v1347, %v1349
    %s1352 = sld [smem:[#allocation9 + $0x180]]
    %v1353 = vstv %s1352
    %v1354 = vmul.f32 %v1353, %v1350
    %v1355 = vmul.f32 %v1353, %v1351
    %v1356 = vadd.f32 %v169, %v1354
    %v1357 = vadd.f32 %v170, %v1355
    %1358 = vset.pattern.permute.xlu0 113
    %1359 = vperm.xlu0 %1358, %v125
    %v1360 = vpop.permute.xlu0 %1359
    %1362 = vset.pattern.permute.xlu0 113
    %1363 = vperm.xlu0 %1362, %v127
    %v1364 = vpop.permute.xlu0 %1363
    %v1366 = vperm.slane %v151, 1
    %v1367 = vadd.f32 %v1360, %v1366
    %v1368 = vadd.f32 %v1364, %v1366
    %v1369 = vmul.f32 %v1367, 0.2
    %v1370 = vmul.f32 %v1368, 0.2
    %v1371 = vmax.f32 %v1367, %v1369
    %v1372 = vmax.f32 %v1368, %v1370
    %s1373 = sld [smem:[#allocation9 + $0x181]]
    %v1374 = vstv %s1373
    %v1375 = vmul.f32 %v1374, %v1371
    %v1376 = vmul.f32 %v1374, %v1372
    %v1377 = vadd.f32 %v1356, %v1375
    %v1378 = vadd.f32 %v1357, %v1376
    %1379 = vset.pattern.permute.xlu0 114
    %1380 = vperm.xlu0 %1379, %v125
    %v1381 = vpop.permute.xlu0 %1380
    %1383 = vset.pattern.permute.xlu0 114
    %1384 = vperm.xlu0 %1383, %v127
    %v1385 = vpop.permute.xlu0 %1384
    %v1387 = vperm.slane %v151, 2
    %v1388 = vadd.f32 %v1381, %v1387
    %v1389 = vadd.f32 %v1385, %v1387
    %v1390 = vmul.f32 %v1388, 0.2
    %v1391 = vmul.f32 %v1389, 0.2
    %v1392 = vmax.f32 %v1388, %v1390
    %v1393 = vmax.f32 %v1389, %v1391
    %s1394 = sld [smem:[#allocation9 + $0x182]]
    %v1395 = vstv %s1394
    %v1396 = vmul.f32 %v1395, %v1392
    %v1397 = vmul.f32 %v1395, %v1393
    %v1398 = vadd.f32 %v1377, %v1396
    %v1399 = vadd.f32 %v1378, %v1397
    %1400 = vset.pattern.permute.xlu0 115
    %1401 = vperm.xlu0 %1400, %v125
    %v1402 = vpop.permute.xlu0 %1401
    %1404 = vset.pattern.permute.xlu0 115
    %1405 = vperm.xlu0 %1404, %v127
    %v1406 = vpop.permute.xlu0 %1405
    %v1408 = vperm.slane %v151, 3
    %v1409 = vadd.f32 %v1402, %v1408
    %v1410 = vadd.f32 %v1406, %v1408
    %v1411 = vmul.f32 %v1409, 0.2
    %v1412 = vmul.f32 %v1410, 0.2
    %v1413 = vmax.f32 %v1409, %v1411
    %v1414 = vmax.f32 %v1410, %v1412
    %s1415 = sld [smem:[#allocation9 + $0x183]]
    %v1416 = vstv %s1415
    %v1417 = vmul.f32 %v1416, %v1413
    %v1418 = vmul.f32 %v1416, %v1414
    %v1419 = vadd.f32 %v1398, %v1417
    %v1420 = vadd.f32 %v1399, %v1418
    %1421 = vset.pattern.permute.xlu0 116
    %1422 = vperm.xlu0 %1421, %v125
    %v1423 = vpop.permute.xlu0 %1422
    %1425 = vset.pattern.permute.xlu0 116
    %1426 = vperm.xlu0 %1425, %v127
    %v1427 = vpop.permute.xlu0 %1426
    %v1429 = vperm.slane %v151, 4
    %v1430 = vadd.f32 %v1423, %v1429
    %v1431 = vadd.f32 %v1427, %v1429
    %v1432 = vmul.f32 %v1430, 0.2
    %v1433 = vmul.f32 %v1431, 0.2
    %v1434 = vmax.f32 %v1430, %v1432
    %v1435 = vmax.f32 %v1431, %v1433
    %s1436 = sld [smem:[#allocation9 + $0x184]]
    %v1437 = vstv %s1436
    %v1438 = vmul.f32 %v1437, %v1434
    %v1439 = vmul.f32 %v1437, %v1435
    %v1440 = vadd.f32 %v1419, %v1438
    %v1441 = vadd.f32 %v1420, %v1439
    %1442 = vset.pattern.permute.xlu0 117
    %1443 = vperm.xlu0 %1442, %v125
    %v1444 = vpop.permute.xlu0 %1443
    %1446 = vset.pattern.permute.xlu0 117
    %1447 = vperm.xlu0 %1446, %v127
    %v1448 = vpop.permute.xlu0 %1447
    %v1450 = vperm.slane %v151, 5
    %v1451 = vadd.f32 %v1444, %v1450
    %v1452 = vadd.f32 %v1448, %v1450
    %v1453 = vmul.f32 %v1451, 0.2
    %v1454 = vmul.f32 %v1452, 0.2
    %v1455 = vmax.f32 %v1451, %v1453
    %v1456 = vmax.f32 %v1452, %v1454
    %s1457 = sld [smem:[#allocation9 + $0x185]]
    %v1458 = vstv %s1457
    %v1459 = vmul.f32 %v1458, %v1455
    %v1460 = vmul.f32 %v1458, %v1456
    %v1461 = vadd.f32 %v1440, %v1459
    %v1462 = vadd.f32 %v1441, %v1460
    %1463 = vset.pattern.permute.xlu0 118
    %1464 = vperm.xlu0 %1463, %v125
    %v1465 = vpop.permute.xlu0 %1464
    %1467 = vset.pattern.permute.xlu0 118
    %1468 = vperm.xlu0 %1467, %v127
    %v1469 = vpop.permute.xlu0 %1468
    %v1471 = vperm.slane %v151, 6
    %v1472 = vadd.f32 %v1465, %v1471
    %v1473 = vadd.f32 %v1469, %v1471
    %v1474 = vmul.f32 %v1472, 0.2
    %v1475 = vmul.f32 %v1473, 0.2
    %v1476 = vmax.f32 %v1472, %v1474
    %v1477 = vmax.f32 %v1473, %v1475
    %s1478 = sld [smem:[#allocation9 + $0x186]]
    %v1479 = vstv %s1478
    %v1480 = vmul.f32 %v1479, %v1476
    %v1481 = vmul.f32 %v1479, %v1477
    %v1482 = vadd.f32 %v1461, %v1480
    %v1483 = vadd.f32 %v1462, %v1481
    %1484 = vset.pattern.permute.xlu0 119
    %1485 = vperm.xlu0 %1484, %v125
    %v1486 = vpop.permute.xlu0 %1485
    %1488 = vset.pattern.permute.xlu0 119
    %1489 = vperm.xlu0 %1488, %v127
    %v1490 = vpop.permute.xlu0 %1489
    %v1492 = vperm.slane %v151, 7
    %v1493 = vadd.f32 %v1486, %v1492
    %v1494 = vadd.f32 %v1490, %v1492
    %v1495 = vmul.f32 %v1493, 0.2
    %v1496 = vmul.f32 %v1494, 0.2
    %v1497 = vmax.f32 %v1493, %v1495
    %v1498 = vmax.f32 %v1494, %v1496
    %s1499 = sld [smem:[#allocation9 + $0x187]]
    %v1500 = vstv %s1499
    %v1501 = vmul.f32 %v1500, %v1497
    %v1502 = vmul.f32 %v1500, %v1498
    %v1503 = vadd.f32 %v1482, %v1501
    %v1504 = vadd.f32 %v1483, %v1502
    %1505 = vset.pattern.permute.xlu0 120
    %1506 = vperm.xlu0 %1505, %v125
    %v1507 = vpop.permute.xlu0 %1506
    %1509 = vset.pattern.permute.xlu0 120
    %1510 = vperm.xlu0 %1509, %v127
    %v1511 = vpop.permute.xlu0 %1510
    %v1513 = vperm.slane %v152, 0
    %v1514 = vadd.f32 %v1507, %v1513
    %v1515 = vadd.f32 %v1511, %v1513
    %v1516 = vmul.f32 %v1514, 0.2
    %v1517 = vmul.f32 %v1515, 0.2
    %v1518 = vmax.f32 %v1514, %v1516
    %v1519 = vmax.f32 %v1515, %v1517
    %s1520 = sld [smem:[#allocation9 + $0x188]]
    %v1521 = vstv %s1520
    %v1522 = vmul.f32 %v1521, %v1518
    %v1523 = vmul.f32 %v1521, %v1519
    %v1524 = vadd.f32 %v1503, %v1522
    %v1525 = vadd.f32 %v1504, %v1523
    %1526 = vset.pattern.permute.xlu0 121
    %1527 = vperm.xlu0 %1526, %v125
    %v1528 = vpop.permute.xlu0 %1527
    %1530 = vset.pattern.permute.xlu0 121
    %1531 = vperm.xlu0 %1530, %v127
    %v1532 = vpop.permute.xlu0 %1531
    %v1534 = vperm.slane %v152, 1
    %v1535 = vadd.f32 %v1528, %v1534
    %v1536 = vadd.f32 %v1532, %v1534
    %v1537 = vmul.f32 %v1535, 0.2
    %v1538 = vmul.f32 %v1536, 0.2
    %v1539 = vmax.f32 %v1535, %v1537
    %v1540 = vmax.f32 %v1536, %v1538
    %s1541 = sld [smem:[#allocation9 + $0x189]]
    %v1542 = vstv %s1541
    %v1543 = vmul.f32 %v1542, %v1539
    %v1544 = vmul.f32 %v1542, %v1540
    %v1545 = vadd.f32 %v1524, %v1543
    %v1546 = vadd.f32 %v1525, %v1544
    %1547 = vset.pattern.permute.xlu0 122
    %1548 = vperm.xlu0 %1547, %v125
    %v1549 = vpop.permute.xlu0 %1548
    %1551 = vset.pattern.permute.xlu0 122
    %1552 = vperm.xlu0 %1551, %v127
    %v1553 = vpop.permute.xlu0 %1552
    %v1555 = vperm.slane %v152, 2
    %v1556 = vadd.f32 %v1549, %v1555
    %v1557 = vadd.f32 %v1553, %v1555
    %v1558 = vmul.f32 %v1556, 0.2
    %v1559 = vmul.f32 %v1557, 0.2
    %v1560 = vmax.f32 %v1556, %v1558
    %v1561 = vmax.f32 %v1557, %v1559
    %s1562 = sld [smem:[#allocation9 + $0x18a]]
    %v1563 = vstv %s1562
    %v1564 = vmul.f32 %v1563, %v1560
    %v1565 = vmul.f32 %v1563, %v1561
    %v1566 = vadd.f32 %v1545, %v1564
    %v1567 = vadd.f32 %v1546, %v1565
    %1568 = vset.pattern.permute.xlu0 123
    %1569 = vperm.xlu0 %1568, %v125
    %v1570 = vpop.permute.xlu0 %1569
    %1572 = vset.pattern.permute.xlu0 123
    %1573 = vperm.xlu0 %1572, %v127
    %v1574 = vpop.permute.xlu0 %1573
    %v1576 = vperm.slane %v152, 3
    %v1577 = vadd.f32 %v1570, %v1576
    %v1578 = vadd.f32 %v1574, %v1576
    %v1579 = vmul.f32 %v1577, 0.2
    %v1580 = vmul.f32 %v1578, 0.2
    %v1581 = vmax.f32 %v1577, %v1579
    %v1582 = vmax.f32 %v1578, %v1580
    %s1583 = sld [smem:[#allocation9 + $0x18b]]
    %v1584 = vstv %s1583
    %v1585 = vmul.f32 %v1584, %v1581
    %v1586 = vmul.f32 %v1584, %v1582
    %v1587 = vadd.f32 %v1566, %v1585
    %v1588 = vadd.f32 %v1567, %v1586
    %1589 = vset.pattern.permute.xlu0 124
    %1590 = vperm.xlu0 %1589, %v125
    %v1591 = vpop.permute.xlu0 %1590
    %1593 = vset.pattern.permute.xlu0 124
    %1594 = vperm.xlu0 %1593, %v127
    %v1595 = vpop.permute.xlu0 %1594
    %v1597 = vperm.slane %v152, 4
    %v1598 = vadd.f32 %v1591, %v1597
    %v1599 = vadd.f32 %v1595, %v1597
    %v1600 = vmul.f32 %v1598, 0.2
    %v1601 = vmul.f32 %v1599, 0.2
    %v1602 = vmax.f32 %v1598, %v1600
    %v1603 = vmax.f32 %v1599, %v1601
    %s1604 = sld [smem:[#allocation9 + $0x18c]]
    %v1605 = vstv %s1604
    %v1606 = vmul.f32 %v1605, %v1602
    %v1607 = vmul.f32 %v1605, %v1603
    %v1608 = vadd.f32 %v1587, %v1606
    %v1609 = vadd.f32 %v1588, %v1607
    %1610 = vset.pattern.permute.xlu0 125
    %1611 = vperm.xlu0 %1610, %v125
    %v1612 = vpop.permute.xlu0 %1611
    %1614 = vset.pattern.permute.xlu0 125
    %1615 = vperm.xlu0 %1614, %v127
    %v1616 = vpop.permute.xlu0 %1615
    %v1618 = vperm.slane %v152, 5
    %v1619 = vadd.f32 %v1612, %v1618
    %v1620 = vadd.f32 %v1616, %v1618
    %v1621 = vmul.f32 %v1619, 0.2
    %v1622 = vmul.f32 %v1620, 0.2
    %v1623 = vmax.f32 %v1619, %v1621
    %v1624 = vmax.f32 %v1620, %v1622
    %s1625 = sld [smem:[#allocation9 + $0x18d]]
    %v1626 = vstv %s1625
    %v1627 = vmul.f32 %v1626, %v1623
    %v1628 = vmul.f32 %v1626, %v1624
    %v1629 = vadd.f32 %v1608, %v1627
    %v1630 = vadd.f32 %v1609, %v1628
    %1631 = vset.pattern.permute.xlu0 126
    %1632 = vperm.xlu0 %1631, %v125
    %v1633 = vpop.permute.xlu0 %1632
    %1635 = vset.pattern.permute.xlu0 126
    %1636 = vperm.xlu0 %1635, %v127
    %v1637 = vpop.permute.xlu0 %1636
    %v1639 = vperm.slane %v152, 6
    %v1640 = vadd.f32 %v1633, %v1639
    %v1641 = vadd.f32 %v1637, %v1639
    %v1642 = vmul.f32 %v1640, 0.2
    %v1643 = vmul.f32 %v1641, 0.2
    %v1644 = vmax.f32 %v1640, %v1642
    %v1645 = vmax.f32 %v1641, %v1643
    %s1646 = sld [smem:[#allocation9 + $0x18e]]
    %v1647 = vstv %s1646
    %v1648 = vmul.f32 %v1647, %v1644
    %v1649 = vmul.f32 %v1647, %v1645
    %v1650 = vadd.f32 %v1629, %v1648
    %v1651 = vadd.f32 %v1630, %v1649
    %1652 = vset.pattern.permute.xlu0 127
    %1653 = vperm.xlu0 %1652, %v125
    %v1654 = vpop.permute.xlu0 %1653
    %1656 = vset.pattern.permute.xlu0 127
    %1657 = vperm.xlu0 %1656, %v127
    %v1658 = vpop.permute.xlu0 %1657
    %v1660 = vperm.slane %v152, 7
    %v1661 = vadd.f32 %v1654, %v1660
    %v1662 = vadd.f32 %v1658, %v1660
    %v1663 = vmul.f32 %v1661, 0.2
    %v1664 = vmul.f32 %v1662, 0.2
    %v1665 = vmax.f32 %v1661, %v1663
    %v1666 = vmax.f32 %v1662, %v1664
    %s1667 = sld [smem:[#allocation9 + $0x18f]]
    %v1668 = vstv %s1667
    %v1669 = vmul.f32 %v1668, %v1665
    %v1670 = vmul.f32 %v1668, %v1666
    %v1671 = vadd.f32 %v1650, %v1669
    %v1672 = vadd.f32 %v1651, %v1670
    %v1673 = vsel %vm111, %v1671, -inf
    %1674 = vmax.xlane.f32.xlu0 %v1673
    %v1675 = vpop.xlane.xlu0 %1674
    %v1676 = vsel %vm111, %v1672, -inf
    %1677 = vmax.xlane.f32.xlu0 %v1676
    %v1678 = vpop.xlane.xlu0 %1677
    %v1679 = vsub.f32 %v1671, %v1675
    %v1680 = vsub.f32 %v1672, %v1678
    %v1681 = vmul.f32 %v1679, 1.442695
    %v1682 = vpow.pop %v1681
    %v1683 = vmul.f32 %v1680, 1.442695
    %v1684 = vpow.pop %v1683
    %v1685 = vsel %vm111, %v1682, 0.0
    %1686 = vadd.xlane.f32.xlu0 %v1685
    %v1687 = vpop.xlane.xlu0 %1686
    %v1688 = vsel %vm111, %v1684, 0.0
    %1689 = vadd.xlane.f32.xlu0 %v1688
    %v1690 = vpop.xlane.xlu0 %1689
    %v1691 = vrcp.pop %v1687
    %v1692 = vrcp.pop %v1690
    %v1693 = vpack.c.bf16 %v1684, %v1682
    %1694 = vrot.lane.b32.xlu0 %v534, 80
    %v1695 = vpop.permute.xlu0 %1694
    %v1698 = vsel %vm111, %v1693, 0
    %1700 = vmatpush.bf16.msra.mxu0 0
    %1701 = vmatpush.bf16.msra.mxu0 0
    %1702 = vmatpush.bf16.msra.mxu0 0
    %1703 = vmatpush.bf16.msra.mxu0 0
    %1704 = vmatpush.bf16.msra.mxu0 0
    %1705 = vmatpush.bf16.msra.mxu0 0
    %1706 = vmatpush.bf16.msra.mxu0 0
    %1707 = vmatpush.bf16.msra.mxu0 %v1695
    %1708 = vmatmul.bf16.gmra.mxu0 %v1698
    %v1709 = vpop.f32.mrf.mxu0
    %v1710 = vadd.f32 0.0, %v1709
    %v1711 = vpop.f32.mrf.mxu0
    %v1712 = vadd.f32 0.0, %v1711
    %1713 = vdwg.mxu0
    %v1714 = vmul.f32 %v1710, %v1691
    %v1715 = vmul.f32 %v1712, %v1692
    %1718 = vrot.lane.b32.xlu0 %v1714, 48
    %v1719 = vpop.permute.xlu0 %1718
    %1720 = vrot.lane.b32.xlu0 %v1715, 48
    %v1721 = vpop.permute.xlu0 %1720
    %vm1724 = vcmask 523648
    %1725 = vst.msk [vmem:[#allocation2] sm:$0xff] %vm1724, %v1719
    %1726 = vst.msk [vmem:[#allocation2 + $0x8] sm:$0xff] %vm1724, %v1721
    %v1727 = vld [vmem:[#allocation2] sm:$0xff]
    %v1728 = vld [vmem:[#allocation2 + $0x8] sm:$0xff]
    %v1729 = vld [vmem:[#allocation10] sm:$0x1]
    %v1731 = vperm.slane %v1729, 0
    %v1733 = vadd.f32 %v1727, %v1731
    %v1734 = vadd.f32 %v1728, %v1731
    %v1735 = vmax.f32 %v1733, 0.0
    %v1736 = vmax.f32 %v1734, 0.0
    %vm1737 = vcmask 523264
    %1738 = vst.msk [vmem:[%s6] sm:$0xff] %vm1737, %v1735
    %1739 = vst.msk [vmem:[%s6 + $0x8] sm:$0xff] %vm1737, %v1736
    // Predicated region
    $region46: #{forward.2} parent=1 // pred_check
      _
    $region47: #{forward.2} parent=1 // pred_check_branch
      %1741 = sbr.rel (0) target = $region49
    $region48: #{forward.2} parent=1 // pred_region
      _
    $region49: #{forward.2} parent=1 // pred_fallthru
      _
    // Predicated region
    $region50: #{forward.2} parent=1 // pred_check
      _
    $region51: #{forward.2} parent=1 // pred_check_branch
      %1743 = sbr.rel (0) target = $region53
    $region52: #{forward.2} parent=1 // pred_region
      _
    $region53: #{forward.2} parent=1 // pred_fallthru
      _
    %1744 = vsyncpa [#allocation4], 1
    %1745 = vsyncpa [#allocation7], 1
    %1746 = vsyncpa [#allocation11], 1
    %1747 = vsyncpa [#allocation5], 1

</llo_original>
